<compile_context>
chip_gen: v6e
topology: v6e:2x2x1
jax: 0.10.0
libtpu: 0.0.40
codegen_flags: <defaults>
</compile_context>

<pallas_src>
import jax
import jax.numpy as jnp
from jax import lax
from jax.experimental import pallas as pl
from jax.experimental.pallas import tpu as pltpu


def _round_up(x, m):
    return ((x + m - 1) // m) * m


def _conv_out(n):
    return (n - 3) // 2 + 1


# ---------------------------------------------------------------------------
# Fused CNN kernel: [conv3x3/s2 + folded-BN + ReLU] x 3 + global avg-pool
# ---------------------------------------------------------------------------
def make_cnn_forward(B, Bblk, H0, W0, cout_pads, k_pads):
    n_layers = len(cout_pads)
    hs, ws = [H0], [W0]
    for _ in range(n_layers):
        hs.append(_conv_out(hs[-1]))
        ws.append(_conv_out(ws[-1]))
    out_hw = list(zip(hs[1:], ws[1:]))          # spatial size after each layer
    npos1 = out_hw[0][0] * out_hw[0][1]
    nblk = B // Bblk

    def kernel(xc_ref, *refs):
        w_refs = refs[0:2 * n_layers:2]          # folded conv weights (bf16)
        b_refs = refs[1:2 * n_layers:2]          # folded per-channel bias (f32)
        o_ref = refs[2 * n_layers]               # (Bblk, C_last_pad) pooled out

        # ---- layer 1: host-extracted patch rows -> one (npos1*Bblk, K1) GEMM.
        y = jnp.dot(xc_ref[...], w_refs[0][...],
                    preferred_element_type=jnp.float32)
        y = jnp.maximum(y + b_refs[0][...], 0.0)

        ho_prev, wo_prev = out_hw[0]
        for l in range(1, n_layers):
            act = y.astype(jnp.bfloat16)         # bf16 inter-layer activations
            ho_l, wo_l = out_hw[l]
            pos_rows = []
            for ho in range(ho_l):               # VMEM-resident im2col built
                for wo in range(wo_l):           # from static contiguous row
                    taps = []                    # slices only.
                    for kh in range(3):
                        for kw in range(3):
                            src = (2 * ho + kh) * wo_prev + (2 * wo + kw)
                            taps.append(act[src * Bblk:(src + 1) * Bblk, :])
                    pos_rows.append(jnp.concatenate(taps, axis=-1))
            lhs = (pos_rows[0] if len(pos_rows) == 1
                   else jnp.concatenate(pos_rows, axis=0))
            y = jnp.dot(lhs, w_refs[l][...],
                        preferred_element_type=jnp.float32)
            y = jnp.maximum(y + b_refs[l][...], 0.0)
            ho_prev, wo_prev = ho_l, wo_l

        # F.avg_pool2d over the remaining spatial positions (1x1 here).
        npos_last = ho_prev * wo_prev
        pooled = y[0:Bblk, :]
        for p in range(1, npos_last):
            pooled = pooled + y[p * Bblk:(p + 1) * Bblk, :]
        o_ref[...] = pooled * (1.0 / float(npos_last))

    def forward(x_col, w_list, b_list):
        in_specs = [pl.BlockSpec((npos1 * Bblk, k_pads[0]), lambda i: (i, 0))]
        args = [x_col]
        for l in range(n_layers):
            # Grid-invariant weights / biases (full blocks).
            # TODO(synk): pipeline_mode=pl.Buffered(1) would drop their second
            #             buffer (~1 MiB) if VMEM ever gets tight on v7x.
            in_specs.append(pl.BlockSpec(tuple(w_list[l].shape), lambda i: (0, 0)))
            in_specs.append(pl.BlockSpec(tuple(b_list[l].shape), lambda i: (0, 0)))
            args += [w_list[l], b_list[l]]
        grid_spec = pltpu.PrefetchScalarGridSpec(
            num_scalar_prefetch=0,
            grid=(nblk,),
            in_specs=in_specs,
            out_specs=pl.BlockSpec((Bblk, cout_pads[-1]), lambda i: (i, 0)),
        )
        return pl.pallas_call(
            kernel,
            out_shape=jax.ShapeDtypeStruct((B, cout_pads[-1]), jnp.float32),
            grid_spec=grid_spec,
            compiler_params=pltpu.CompilerParams(
                dimension_semantics=("parallel",),   # grid=2 -> v7x megacore
                vmem_limit_bytes=32 * 1024 * 1024,
            ),
        )(*args)

    return forward


# ---------------------------------------------------------------------------
# Fused LSTM + hidden2tag kernel: single step, unrolled recurrence over T
# ---------------------------------------------------------------------------
def make_lstm_head_forward(T, batch, hid_pad, nclass_pad):
    def kernel(x_ref, wih_ref, whh_ref, bg_ref, wtag_ref, btag_ref, o_ref):
        # Non-recurrent input projection hoisted out of the recurrence:
        # one (T*batch, in_pad) x (in_pad, 4*hid_pad) matmul.
        gx = jnp.dot(x_ref[...].astype(jnp.bfloat16), wih_ref[...],
                     preferred_element_type=jnp.float32) + bg_ref[...]
        whh = whh_ref[...]
        h = jnp.zeros((batch, hid_pad), jnp.float32)
        c = jnp.zeros((batch, hid_pad), jnp.float32)
        hs = []
        for t in range(T):    # fully unrolled recurrence (T is small & static)
            z = gx[t * batch:(t + 1) * batch, :] + jnp.dot(
                h, whh, preferred_element_type=jnp.float32)
            # Gates padded to 128 lanes each -> tile-aligned slices (i, f, g, o).
            i_g = 1.0 / (1.0 + jnp.exp(-z[:, 0:hid_pad]))
            f_g = 1.0 / (1.0 + jnp.exp(-z[:, hid_pad:2 * hid_pad]))
            g_g = jnp.tanh(z[:, 2 * hid_pad:3 * hid_pad])
            o_g = 1.0 / (1.0 + jnp.exp(-z[:, 3 * hid_pad:4 * hid_pad]))
            c = f_g * c + i_g * g_g
            h = o_g * jnp.tanh(c)
            hs.append(h)
        hs_all = jnp.concatenate(hs, axis=0)          # (T*batch, hid_pad)
        # TODO(synk): Dropout(p=0.2) is identity in inference mode; train mode
        #             would mask hs_all here (pltpu.prng_*).
        # hidden2tag hoisted out of the time loop: one dense GEMM.
        o_ref[...] = (jnp.dot(hs_all, wtag_ref[...],
                              preferred_element_type=jnp.float32)
                      + btag_ref[...])

    def forward(feats_tb, p):
        return pl.pallas_call(
            kernel,
            out_shape=jax.ShapeDtypeStruct((T * batch, nclass_pad), jnp.float32),
        )(feats_tb, p["wih"], p["whh"], p["bg"], p["wtag"], p["btag"])

    return forward


# ---------------------------------------------------------------------------
# Parameter setup (once, outside jit): BN folding, layout, lane padding
# ---------------------------------------------------------------------------
def init_raw_params(key, in_c, channels, hidden, nclass):
    conv = []
    cin = in_c
    for cout in channels:
        key, kw_, kb_, kg_, kbe_, km_, kv_ = jax.random.split(key, 7)
        fan_in = cin * 9
        conv.append(dict(
            w=jax.random.normal(kw_, (cout, cin, 3, 3), jnp.float32)
              * (2.0 / fan_in) ** 0.5,
            b=0.1 * jax.random.normal(kb_, (cout,), jnp.float32),
            gamma=1.0 + 0.1 * jax.random.normal(kg_, (cout,), jnp.float32),
            beta=0.1 * jax.random.normal(kbe_, (cout,), jnp.float32),
            mean=0.1 * jax.random.normal(km_, (cout,), jnp.float32),
            var=jnp.abs(jax.random.normal(kv_, (cout,), jnp.float32)) + 0.5,
        ))
        cin = cout
    k = 1.0 / hidden ** 0.5
    key, k1, k2, k3, k4, k5, k6 = jax.random.split(key, 7)
    lstm_in = channels[-1]
    lstm = dict(
        Wih=jax.random.uniform(k1, (4 * hidden, lstm_in), jnp.float32, -k, k),
        Whh=jax.random.uniform(k2, (4 * hidden, hidden), jnp.float32, -k, k),
        bih=jax.random.uniform(k3, (4 * hidden,), jnp.float32, -k, k),
        bhh=jax.random.uniform(k4, (4 * hidden,), jnp.float32, -k, k),
    )
    head = dict(
        W=jax.random.uniform(k5, (nclass, hidden), jnp.float32, -k, k),
        b=jax.random.uniform(k6, (nclass,), jnp.float32, -k, k),
    )
    return dict(conv=conv, lstm=lstm, head=head)


def prepare_cnn_kernel_params(conv_raw, in_c, eps=1e-5):
    """Fold eval-mode BN into the conv weights, lay out per-layer (K, Cout_pad)."""
    w_list, b_list, cout_pads, k_pads = [], [], [], []
    cin_kernel = in_c                     # per-tap channel width the kernel sees
    for lp in conv_raw:
        cout, cin = lp["w"].shape[0], lp["w"].shape[1]
        scale = lp["gamma"] / jnp.sqrt(lp["var"] + eps)
        bias_eff = (lp["b"] - lp["mean"]) * scale + lp["beta"]
        wf = lp["w"] * scale[:, None, None, None]          # BN scale folded in
        w_t = jnp.transpose(wf, (2, 3, 1, 0))              # (3,3,cin,cout)
        cout_pad = _round_up(cout, 128)                    # lane-dense outputs
        w_t = jnp.pad(w_t, ((0, 0), (0, 0),
                            (0, cin_kernel - cin), (0, cout_pad - cout)))
        w_k = w_t.reshape(9 * cin_kernel, cout_pad)        # K order = (kh,kw,cin)
        k_pad = _round_up(9 * cin_kernel, 128)
        w_k = jnp.pad(w_k, ((0, k_pad - 9 * cin_kernel), (0, 0)))
        b_k = jnp.pad(bias_eff, (0, cout_pad - cout)).reshape(1, cout_pad)
        w_list.append(w_k.astype(jnp.bfloat16))
        b_list.append(b_k.astype(jnp.float32))
        cout_pads.append(cout_pad)
        k_pads.append(k_pad)
        cin_kernel = cout_pad
    return w_list, b_list, cout_pads, k_pads


def prepare_lstm_kernel_params(lstm_raw, head_raw, in_pad, hidden, hid_pad,
                               nclass, nclass_pad):
    """Gate-wise 128-lane padding.  PyTorch packs the 4H axis as [i,f,g,o];
    padded hidden lanes stay exactly zero through the recurrence."""
    Wih, Whh = lstm_raw["Wih"], lstm_raw["Whh"]
    bsum = lstm_raw["bih"] + lstm_raw["bhh"]
    lstm_in = Wih.shape[1]
    wih = jnp.zeros((in_pad, 4 * hid_pad), jnp.float32)
    whh = jnp.zeros((hid_pad, 4 * hid_pad), jnp.float32)
    bg = jnp.zeros((1, 4 * hid_pad), jnp.float32)
    for g in range(4):
        wih = wih.at[:lstm_in, g * hid_pad:g * hid_pad + hidden].set(
            Wih[g * hidden:(g + 1) * hidden, :].T)
        whh = whh.at[:hidden, g * hid_pad:g * hid_pad + hidden].set(
            Whh[g * hidden:(g + 1) * hidden, :].T)
        bg = bg.at[0, g * hid_pad:g * hid_pad + hidden].set(
            bsum[g * hidden:(g + 1) * hidden])
    wtag = jnp.zeros((hid_pad, nclass_pad), jnp.float32)
    wtag = wtag.at[:hidden, :nclass].set(head_raw["W"].T)
    btag = jnp.zeros((1, nclass_pad), jnp.float32)
    btag = btag.at[0, :nclass].set(head_raw["b"])
    return dict(wih=wih.astype(jnp.bfloat16), whh=whh, bg=bg,
                wtag=wtag, btag=btag)


# ---------------------------------------------------------------------------
# Full CNN_LSTM forward
# ---------------------------------------------------------------------------
def make_cnn_lstm_forward(batch, seq, in_c, H0, W0, cout_pads, k_pads,
                          nclass, nclass_pad, hid_pad, Bblk):
    B = batch * seq
    assert B % Bblk == 0
    Ho1, Wo1 = _conv_out(H0), _conv_out(W0)
    nblk = B // Bblk
    k1 = 9 * in_c
    cnn_fwd = make_cnn_forward(B, Bblk, H0, W0, cout_pads, k_pads)
    lstm_fwd = make_lstm_head_forward(seq, batch, hid_pad, nclass_pad)

    @jax.jit
    def forward(x5d, w_list, b_list, lstm_p):
        # NCHW -> NHWC, then extract the layer-1 3x3/stride-2 windows once in
        # XLA (tiny at in_c=8).  Layers 2/3 im2col never leaves VMEM.
        # TODO(synk): for large in_c, move this window extraction into the
        #             kernel (2x2 space-to-depth input) to avoid HBM inflation.
        x = x5d.reshape(B, in_c, H0, W0).transpose(0, 2, 3, 1)
        cols = []
        for kh in range(3):
            for kw in range(3):
                cols.append(x[:, kh:kh + 2 * Ho1 - 1:2,
                              kw:kw + 2 * Wo1 - 1:2, :])
        pat = jnp.concatenate(cols, axis=-1)            # (B, Ho1, Wo1, 9*in_c)
        pat = jnp.pad(pat, ((0, 0), (0, 0), (0, 0), (0, k_pads[0] - k1)))
        # Row order (frame-block, spatial position, frame-in-block): each grid
        # step reads one contiguous lane+sublane-dense (npos*Bblk, K) slab.
        pat = pat.reshape(nblk, Bblk, Ho1 * Wo1, k_pads[0])
        pat = pat.transpose(0, 2, 1, 3).reshape(
            nblk * Ho1 * Wo1 * Bblk, k_pads[0]).astype(jnp.bfloat16)

        feat = cnn_fwd(pat, w_list, b_list)             # (B, C_pad) f32
        feats_tb = feat.reshape(batch, seq, cout_pads[-1]).transpose(1, 0, 2)
        feats_tb = feats_tb.reshape(seq * batch, cout_pads[-1])
        tags = lstm_fwd(feats_tb, lstm_p)               # (seq*batch, nclass_pad)
        tags = tags.reshape(seq, batch, nclass_pad).transpose(1, 0, 2)
        return tags[:, :, :nclass]

    return forward


# ---------------------------------------------------------------------------
# Pure-JAX f32 reference (PyTorch semantics, eval-mode BN / Dropout)
# ---------------------------------------------------------------------------
def reference_forward(x5d, raw, eps=1e-5):
    b, T, c, h0, w0 = x5d.shape
    x = x5d.reshape(b * T, c, h0, w0)
    for lp in raw["conv"]:
        y = lax.conv_general_dilated(
            x, lp["w"], window_strides=(2, 2), padding="VALID",
            dimension_numbers=("NCHW", "OIHW", "NCHW"),
        ) + lp["b"][None, :, None, None]
        scale = (lp["gamma"] / jnp.sqrt(lp["var"] + eps))[None, :, None, None]
        y = (y - lp["mean"][None, :, None, None]) * scale + lp["beta"][None, :, None, None]
        x = jnp.maximum(y, 0.0)
    feat = jnp.mean(x, axis=(2, 3)).reshape(b, T, -1)

    Wih, Whh = raw["lstm"]["Wih"], raw["lstm"]["Whh"]
    bsum = raw["lstm"]["bih"] + raw["lstm"]["bhh"]
    H = Whh.shape[1]

    def sig(v):
        return 1.0 / (1.0 + jnp.exp(-v))

    def step(carry, x_t):
        hp, cp = carry
        z = x_t @ Wih.T + hp @ Whh.T + bsum
        i = sig(z[:, :H])
        f = sig(z[:, H:2 * H])
        g = jnp.tanh(z[:, 2 * H:3 * H])
        o = sig(z[:, 3 * H:])
        cn = f * cp + i * g
        hn = o * jnp.tanh(cn)
        return (hn, cn), hn

    init = (jnp.zeros((b, H), jnp.float32), jnp.zeros((b, H), jnp.float32))
    _, hs = lax.scan(step, init, feat.transpose(1, 0, 2))
    hs = hs.transpose(1, 0, 2)                        # (b, T, H)
    return hs @ raw["head"]["W"].T + raw["head"]["b"]


if __name__ == "__main__":
    # Small shapes consistent with CNN_LSTM's forward: inputs['feats'] is
    # (b, seq, c, h, w); basemodel -> only the feat_cnn stream.
    batch, seq = 2, 8
    in_c, H0, W0 = 8, 16, 16            # spatial 16 -> 7 -> 3 -> 1
    out_c = 64                          # small stream1_output_channel
    channels = [256, out_c, out_c]      # CnnModule(is_mask_stream=False) stack
    hidden, nclass = 64, 10             # nn.LSTM(hidden_dim=64), hidden2tag
    Bblk = 8                            # frames per CNN grid step (grid = 2)

    key = jax.random.PRNGKey(0)
    key, kx = jax.random.split(key)
    x = jax.random.normal(kx, (batch, seq, in_c, H0, W0), jnp.float32)
    raw = init_raw_params(key, in_c, channels, hidden, nclass)

    w_list, b_list, cout_pads, k_pads = prepare_cnn_kernel_params(raw["conv"], in_c)
    hid_pad = _round_up(hidden, 128)
    nclass_pad = _round_up(nclass, 128)
    lstm_p = prepare_lstm_kernel_params(raw["lstm"], raw["head"],
                                        cout_pads[-1], hidden, hid_pad,
                                        nclass, nclass_pad)

    forward = make_cnn_lstm_forward(batch, seq, in_c, H0, W0, cout_pads,
                                    k_pads, nclass, nclass_pad, hid_pad, Bblk)
    out = jax.block_until_ready(forward(x, tuple(w_list), tuple(b_list), lstm_p))

    ref = reference_forward(x, raw)
    assert out.shape == (batch, seq, nclass), out.shape
    max_err = float(jnp.max(jnp.abs(out - ref)))
    # bf16 MXU operands (f32 accumulation) in the conv stack / input projection.
    assert jnp.allclose(out, ref, atol=3e-2, rtol=3e-2), max_err
    print("KERNEL_OK")
</pallas_src>

<mosaic_0001>
module attributes {stable_mosaic.version = 11 : i64} {
  func.func @kernel(%arg0: i32, %arg1: memref<392x128xbf16, #tpu.memory_space<vmem>>, %arg2: memref<128x256xbf16, #tpu.memory_space<vmem>>, %arg3: memref<1x256xf32, #tpu.memory_space<vmem>>, %arg4: memref<2304x128xbf16, #tpu.memory_space<vmem>>, %arg5: memref<1x128xf32, #tpu.memory_space<vmem>>, %arg6: memref<1152x128xbf16, #tpu.memory_space<vmem>>, %arg7: memref<1x128xf32, #tpu.memory_space<vmem>>, %arg8: memref<8x128xf32, #tpu.memory_space<vmem>>) attributes {dimension_semantics = [#tpu.dimension_semantics<parallel>], iteration_bounds = array<i64: 2>, scalar_prefetch = 0 : i64, scratch_operands = 0 : i64, tpu.core_type = #tpu.core_type<tc>, window_params = [{transform_indices = @transform_0, window_bounds = array<i64: 392, 128>}, {pipeline_mode = #tpu.pipeline_mode<synchronous>, transform_indices = @transform_1, window_bounds = array<i64: 128, 256>}, {pipeline_mode = #tpu.pipeline_mode<synchronous>, transform_indices = @transform_2, window_bounds = array<i64: 1, 256>}, {pipeline_mode = #tpu.pipeline_mode<synchronous>, transform_indices = @transform_3, window_bounds = array<i64: 2304, 128>}, {pipeline_mode = #tpu.pipeline_mode<synchronous>, transform_indices = @transform_4, window_bounds = array<i64: 1, 128>}, {pipeline_mode = #tpu.pipeline_mode<synchronous>, transform_indices = @transform_5, window_bounds = array<i64: 1152, 128>}, {pipeline_mode = #tpu.pipeline_mode<synchronous>, transform_indices = @transform_6, window_bounds = array<i64: 1, 128>}, {transform_indices = @transform_7, window_bounds = array<i64: 8, 128>}]} {
    %c0 = arith.constant 0 : index
    %c0_0 = arith.constant 0 : index
    %0 = vector.load %arg1[%c0, %c0_0] : memref<392x128xbf16, #tpu.memory_space<vmem>>, vector<392x128xbf16>
    %c0_1 = arith.constant 0 : index
    %c0_2 = arith.constant 0 : index
    %1 = vector.load %arg2[%c0_1, %c0_2] : memref<128x256xbf16, #tpu.memory_space<vmem>>, vector<128x256xbf16>
    %cst = arith.constant dense<0.000000e+00> : vector<392x256xf32>
    %2 = tpu.matmul %0, %1, %cst {dimension_numbers = #tpu.dot_dimension_numbers<[1], [0], [0], [1], [0, 0, 1, 1], [], []>} : vector<392x128xbf16>, vector<128x256xbf16>, vector<392x256xf32> -> vector<392x256xf32>
    %c0_3 = arith.constant 0 : index
    %c0_4 = arith.constant 0 : index
    %3 = vector.load %arg3[%c0_3, %c0_4] : memref<1x256xf32, #tpu.memory_space<vmem>>, vector<1x256xf32>
    %4 = vector.broadcast %3 : vector<1x256xf32> to vector<392x256xf32>
    %5 = arith.addf %2, %4 : vector<392x256xf32>
    %cst_5 = arith.constant 0.000000e+00 : f32
    %6 = vector.broadcast %cst_5 : f32 to vector<392x256xf32>
    %7 = arith.maximumf %5, %6 : vector<392x256xf32>
    %8 = arith.truncf %7 : vector<392x256xf32> to vector<392x256xbf16>
    %9 = vector.extract_strided_slice %8 {offsets = [0, 0], sizes = [8, 256], strides = [1, 1]} : vector<392x256xbf16> to vector<8x256xbf16>
    %10 = vector.extract_strided_slice %8 {offsets = [8, 0], sizes = [8, 256], strides = [1, 1]} : vector<392x256xbf16> to vector<8x256xbf16>
    %11 = vector.extract_strided_slice %8 {offsets = [16, 0], sizes = [8, 256], strides = [1, 1]} : vector<392x256xbf16> to vector<8x256xbf16>
    %12 = vector.extract_strided_slice %8 {offsets = [56, 0], sizes = [8, 256], strides = [1, 1]} : vector<392x256xbf16> to vector<8x256xbf16>
    %13 = vector.extract_strided_slice %8 {offsets = [64, 0], sizes = [8, 256], strides = [1, 1]} : vector<392x256xbf16> to vector<8x256xbf16>
    %14 = vector.extract_strided_slice %8 {offsets = [72, 0], sizes = [8, 256], strides = [1, 1]} : vector<392x256xbf16> to vector<8x256xbf16>
    %15 = vector.extract_strided_slice %8 {offsets = [112, 0], sizes = [8, 256], strides = [1, 1]} : vector<392x256xbf16> to vector<8x256xbf16>
    %16 = vector.extract_strided_slice %8 {offsets = [120, 0], sizes = [8, 256], strides = [1, 1]} : vector<392x256xbf16> to vector<8x256xbf16>
    %17 = vector.extract_strided_slice %8 {offsets = [128, 0], sizes = [8, 256], strides = [1, 1]} : vector<392x256xbf16> to vector<8x256xbf16>
    %18 = tpu.concatenate %9, %10, %11, %12, %13, %14, %15, %16, %17 in 1 : vector<8x256xbf16>, vector<8x256xbf16>, vector<8x256xbf16>, vector<8x256xbf16>, vector<8x256xbf16>, vector<8x256xbf16>, vector<8x256xbf16>, vector<8x256xbf16>, vector<8x256xbf16> -> vector<8x2304xbf16>
    %19 = vector.extract_strided_slice %8 {offsets = [16, 0], sizes = [8, 256], strides = [1, 1]} : vector<392x256xbf16> to vector<8x256xbf16>
    %20 = vector.extract_strided_slice %8 {offsets = [24, 0], sizes = [8, 256], strides = [1, 1]} : vector<392x256xbf16> to vector<8x256xbf16>
    %21 = vector.extract_strided_slice %8 {offsets = [32, 0], sizes = [8, 256], strides = [1, 1]} : vector<392x256xbf16> to vector<8x256xbf16>
    %22 = vector.extract_strided_slice %8 {offsets = [72, 0], sizes = [8, 256], strides = [1, 1]} : vector<392x256xbf16> to vector<8x256xbf16>
    %23 = vector.extract_strided_slice %8 {offsets = [80, 0], sizes = [8, 256], strides = [1, 1]} : vector<392x256xbf16> to vector<8x256xbf16>
    %24 = vector.extract_strided_slice %8 {offsets = [88, 0], sizes = [8, 256], strides = [1, 1]} : vector<392x256xbf16> to vector<8x256xbf16>
    %25 = vector.extract_strided_slice %8 {offsets = [128, 0], sizes = [8, 256], strides = [1, 1]} : vector<392x256xbf16> to vector<8x256xbf16>
    %26 = vector.extract_strided_slice %8 {offsets = [136, 0], sizes = [8, 256], strides = [1, 1]} : vector<392x256xbf16> to vector<8x256xbf16>
    %27 = vector.extract_strided_slice %8 {offsets = [144, 0], sizes = [8, 256], strides = [1, 1]} : vector<392x256xbf16> to vector<8x256xbf16>
    %28 = tpu.concatenate %19, %20, %21, %22, %23, %24, %25, %26, %27 in 1 : vector<8x256xbf16>, vector<8x256xbf16>, vector<8x256xbf16>, vector<8x256xbf16>, vector<8x256xbf16>, vector<8x256xbf16>, vector<8x256xbf16>, vector<8x256xbf16>, vector<8x256xbf16> -> vector<8x2304xbf16>
    %29 = vector.extract_strided_slice %8 {offsets = [32, 0], sizes = [8, 256], strides = [1, 1]} : vector<392x256xbf16> to vector<8x256xbf16>
    %30 = vector.extract_strided_slice %8 {offsets = [40, 0], sizes = [8, 256], strides = [1, 1]} : vector<392x256xbf16> to vector<8x256xbf16>
    %31 = vector.extract_strided_slice %8 {offsets = [48, 0], sizes = [8, 256], strides = [1, 1]} : vector<392x256xbf16> to vector<8x256xbf16>
    %32 = vector.extract_strided_slice %8 {offsets = [88, 0], sizes = [8, 256], strides = [1, 1]} : vector<392x256xbf16> to vector<8x256xbf16>
    %33 = vector.extract_strided_slice %8 {offsets = [96, 0], sizes = [8, 256], strides = [1, 1]} : vector<392x256xbf16> to vector<8x256xbf16>
    %34 = vector.extract_strided_slice %8 {offsets = [104, 0], sizes = [8, 256], strides = [1, 1]} : vector<392x256xbf16> to vector<8x256xbf16>
    %35 = vector.extract_strided_slice %8 {offsets = [144, 0], sizes = [8, 256], strides = [1, 1]} : vector<392x256xbf16> to vector<8x256xbf16>
    %36 = vector.extract_strided_slice %8 {offsets = [152, 0], sizes = [8, 256], strides = [1, 1]} : vector<392x256xbf16> to vector<8x256xbf16>
    %37 = vector.extract_strided_slice %8 {offsets = [160, 0], sizes = [8, 256], strides = [1, 1]} : vector<392x256xbf16> to vector<8x256xbf16>
    %38 = tpu.concatenate %29, %30, %31, %32, %33, %34, %35, %36, %37 in 1 : vector<8x256xbf16>, vector<8x256xbf16>, vector<8x256xbf16>, vector<8x256xbf16>, vector<8x256xbf16>, vector<8x256xbf16>, vector<8x256xbf16>, vector<8x256xbf16>, vector<8x256xbf16> -> vector<8x2304xbf16>
    %39 = vector.extract_strided_slice %8 {offsets = [112, 0], sizes = [8, 256], strides = [1, 1]} : vector<392x256xbf16> to vector<8x256xbf16>
    %40 = vector.extract_strided_slice %8 {offsets = [120, 0], sizes = [8, 256], strides = [1, 1]} : vector<392x256xbf16> to vector<8x256xbf16>
    %41 = vector.extract_strided_slice %8 {offsets = [128, 0], sizes = [8, 256], strides = [1, 1]} : vector<392x256xbf16> to vector<8x256xbf16>
    %42 = vector.extract_strided_slice %8 {offsets = [168, 0], sizes = [8, 256], strides = [1, 1]} : vector<392x256xbf16> to vector<8x256xbf16>
    %43 = vector.extract_strided_slice %8 {offsets = [176, 0], sizes = [8, 256], strides = [1, 1]} : vector<392x256xbf16> to vector<8x256xbf16>
    %44 = vector.extract_strided_slice %8 {offsets = [184, 0], sizes = [8, 256], strides = [1, 1]} : vector<392x256xbf16> to vector<8x256xbf16>
    %45 = vector.extract_strided_slice %8 {offsets = [224, 0], sizes = [8, 256], strides = [1, 1]} : vector<392x256xbf16> to vector<8x256xbf16>
    %46 = vector.extract_strided_slice %8 {offsets = [232, 0], sizes = [8, 256], strides = [1, 1]} : vector<392x256xbf16> to vector<8x256xbf16>
    %47 = vector.extract_strided_slice %8 {offsets = [240, 0], sizes = [8, 256], strides = [1, 1]} : vector<392x256xbf16> to vector<8x256xbf16>
    %48 = tpu.concatenate %39, %40, %41, %42, %43, %44, %45, %46, %47 in 1 : vector<8x256xbf16>, vector<8x256xbf16>, vector<8x256xbf16>, vector<8x256xbf16>, vector<8x256xbf16>, vector<8x256xbf16>, vector<8x256xbf16>, vector<8x256xbf16>, vector<8x256xbf16> -> vector<8x2304xbf16>
    %49 = vector.extract_strided_slice %8 {offsets = [128, 0], sizes = [8, 256], strides = [1, 1]} : vector<392x256xbf16> to vector<8x256xbf16>
    %50 = vector.extract_strided_slice %8 {offsets = [136, 0], sizes = [8, 256], strides = [1, 1]} : vector<392x256xbf16> to vector<8x256xbf16>
    %51 = vector.extract_strided_slice %8 {offsets = [144, 0], sizes = [8, 256], strides = [1, 1]} : vector<392x256xbf16> to vector<8x256xbf16>
    %52 = vector.extract_strided_slice %8 {offsets = [184, 0], sizes = [8, 256], strides = [1, 1]} : vector<392x256xbf16> to vector<8x256xbf16>
    %53 = vector.extract_strided_slice %8 {offsets = [192, 0], sizes = [8, 256], strides = [1, 1]} : vector<392x256xbf16> to vector<8x256xbf16>
    %54 = vector.extract_strided_slice %8 {offsets = [200, 0], sizes = [8, 256], strides = [1, 1]} : vector<392x256xbf16> to vector<8x256xbf16>
    %55 = vector.extract_strided_slice %8 {offsets = [240, 0], sizes = [8, 256], strides = [1, 1]} : vector<392x256xbf16> to vector<8x256xbf16>
    %56 = vector.extract_strided_slice %8 {offsets = [248, 0], sizes = [8, 256], strides = [1, 1]} : vector<392x256xbf16> to vector<8x256xbf16>
    %57 = vector.extract_strided_slice %8 {offsets = [256, 0], sizes = [8, 256], strides = [1, 1]} : vector<392x256xbf16> to vector<8x256xbf16>
    %58 = tpu.concatenate %49, %50, %51, %52, %53, %54, %55, %56, %57 in 1 : vector<8x256xbf16>, vector<8x256xbf16>, vector<8x256xbf16>, vector<8x256xbf16>, vector<8x256xbf16>, vector<8x256xbf16>, vector<8x256xbf16>, vector<8x256xbf16>, vector<8x256xbf16> -> vector<8x2304xbf16>
    %59 = vector.extract_strided_slice %8 {offsets = [144, 0], sizes = [8, 256], strides = [1, 1]} : vector<392x256xbf16> to vector<8x256xbf16>
    %60 = vector.extract_strided_slice %8 {offsets = [152, 0], sizes = [8, 256], strides = [1, 1]} : vector<392x256xbf16> to vector<8x256xbf16>
    %61 = vector.extract_strided_slice %8 {offsets = [160, 0], sizes = [8, 256], strides = [1, 1]} : vector<392x256xbf16> to vector<8x256xbf16>
    %62 = vector.extract_strided_slice %8 {offsets = [200, 0], sizes = [8, 256], strides = [1, 1]} : vector<392x256xbf16> to vector<8x256xbf16>
    %63 = vector.extract_strided_slice %8 {offsets = [208, 0], sizes = [8, 256], strides = [1, 1]} : vector<392x256xbf16> to vector<8x256xbf16>
    %64 = vector.extract_strided_slice %8 {offsets = [216, 0], sizes = [8, 256], strides = [1, 1]} : vector<392x256xbf16> to vector<8x256xbf16>
    %65 = vector.extract_strided_slice %8 {offsets = [256, 0], sizes = [8, 256], strides = [1, 1]} : vector<392x256xbf16> to vector<8x256xbf16>
    %66 = vector.extract_strided_slice %8 {offsets = [264, 0], sizes = [8, 256], strides = [1, 1]} : vector<392x256xbf16> to vector<8x256xbf16>
    %67 = vector.extract_strided_slice %8 {offsets = [272, 0], sizes = [8, 256], strides = [1, 1]} : vector<392x256xbf16> to vector<8x256xbf16>
    %68 = tpu.concatenate %59, %60, %61, %62, %63, %64, %65, %66, %67 in 1 : vector<8x256xbf16>, vector<8x256xbf16>, vector<8x256xbf16>, vector<8x256xbf16>, vector<8x256xbf16>, vector<8x256xbf16>, vector<8x256xbf16>, vector<8x256xbf16>, vector<8x256xbf16> -> vector<8x2304xbf16>
    %69 = vector.extract_strided_slice %8 {offsets = [224, 0], sizes = [8, 256], strides = [1, 1]} : vector<392x256xbf16> to vector<8x256xbf16>
    %70 = vector.extract_strided_slice %8 {offsets = [232, 0], sizes = [8, 256], strides = [1, 1]} : vector<392x256xbf16> to vector<8x256xbf16>
    %71 = vector.extract_strided_slice %8 {offsets = [240, 0], sizes = [8, 256], strides = [1, 1]} : vector<392x256xbf16> to vector<8x256xbf16>
    %72 = vector.extract_strided_slice %8 {offsets = [280, 0], sizes = [8, 256], strides = [1, 1]} : vector<392x256xbf16> to vector<8x256xbf16>
    %73 = vector.extract_strided_slice %8 {offsets = [288, 0], sizes = [8, 256], strides = [1, 1]} : vector<392x256xbf16> to vector<8x256xbf16>
    %74 = vector.extract_strided_slice %8 {offsets = [296, 0], sizes = [8, 256], strides = [1, 1]} : vector<392x256xbf16> to vector<8x256xbf16>
    %75 = vector.extract_strided_slice %8 {offsets = [336, 0], sizes = [8, 256], strides = [1, 1]} : vector<392x256xbf16> to vector<8x256xbf16>
    %76 = vector.extract_strided_slice %8 {offsets = [344, 0], sizes = [8, 256], strides = [1, 1]} : vector<392x256xbf16> to vector<8x256xbf16>
    %77 = vector.extract_strided_slice %8 {offsets = [352, 0], sizes = [8, 256], strides = [1, 1]} : vector<392x256xbf16> to vector<8x256xbf16>
    %78 = tpu.concatenate %69, %70, %71, %72, %73, %74, %75, %76, %77 in 1 : vector<8x256xbf16>, vector<8x256xbf16>, vector<8x256xbf16>, vector<8x256xbf16>, vector<8x256xbf16>, vector<8x256xbf16>, vector<8x256xbf16>, vector<8x256xbf16>, vector<8x256xbf16> -> vector<8x2304xbf16>
    %79 = vector.extract_strided_slice %8 {offsets = [240, 0], sizes = [8, 256], strides = [1, 1]} : vector<392x256xbf16> to vector<8x256xbf16>
    %80 = vector.extract_strided_slice %8 {offsets = [248, 0], sizes = [8, 256], strides = [1, 1]} : vector<392x256xbf16> to vector<8x256xbf16>
    %81 = vector.extract_strided_slice %8 {offsets = [256, 0], sizes = [8, 256], strides = [1, 1]} : vector<392x256xbf16> to vector<8x256xbf16>
    %82 = vector.extract_strided_slice %8 {offsets = [296, 0], sizes = [8, 256], strides = [1, 1]} : vector<392x256xbf16> to vector<8x256xbf16>
    %83 = vector.extract_strided_slice %8 {offsets = [304, 0], sizes = [8, 256], strides = [1, 1]} : vector<392x256xbf16> to vector<8x256xbf16>
    %84 = vector.extract_strided_slice %8 {offsets = [312, 0], sizes = [8, 256], strides = [1, 1]} : vector<392x256xbf16> to vector<8x256xbf16>
    %85 = vector.extract_strided_slice %8 {offsets = [352, 0], sizes = [8, 256], strides = [1, 1]} : vector<392x256xbf16> to vector<8x256xbf16>
    %86 = vector.extract_strided_slice %8 {offsets = [360, 0], sizes = [8, 256], strides = [1, 1]} : vector<392x256xbf16> to vector<8x256xbf16>
    %87 = vector.extract_strided_slice %8 {offsets = [368, 0], sizes = [8, 256], strides = [1, 1]} : vector<392x256xbf16> to vector<8x256xbf16>
    %88 = tpu.concatenate %79, %80, %81, %82, %83, %84, %85, %86, %87 in 1 : vector<8x256xbf16>, vector<8x256xbf16>, vector<8x256xbf16>, vector<8x256xbf16>, vector<8x256xbf16>, vector<8x256xbf16>, vector<8x256xbf16>, vector<8x256xbf16>, vector<8x256xbf16> -> vector<8x2304xbf16>
    %89 = vector.extract_strided_slice %8 {offsets = [256, 0], sizes = [8, 256], strides = [1, 1]} : vector<392x256xbf16> to vector<8x256xbf16>
    %90 = vector.extract_strided_slice %8 {offsets = [264, 0], sizes = [8, 256], strides = [1, 1]} : vector<392x256xbf16> to vector<8x256xbf16>
    %91 = vector.extract_strided_slice %8 {offsets = [272, 0], sizes = [8, 256], strides = [1, 1]} : vector<392x256xbf16> to vector<8x256xbf16>
    %92 = vector.extract_strided_slice %8 {offsets = [312, 0], sizes = [8, 256], strides = [1, 1]} : vector<392x256xbf16> to vector<8x256xbf16>
    %93 = vector.extract_strided_slice %8 {offsets = [320, 0], sizes = [8, 256], strides = [1, 1]} : vector<392x256xbf16> to vector<8x256xbf16>
    %94 = vector.extract_strided_slice %8 {offsets = [328, 0], sizes = [8, 256], strides = [1, 1]} : vector<392x256xbf16> to vector<8x256xbf16>
    %95 = vector.extract_strided_slice %8 {offsets = [368, 0], sizes = [8, 256], strides = [1, 1]} : vector<392x256xbf16> to vector<8x256xbf16>
    %96 = vector.extract_strided_slice %8 {offsets = [376, 0], sizes = [8, 256], strides = [1, 1]} : vector<392x256xbf16> to vector<8x256xbf16>
    %97 = vector.extract_strided_slice %8 {offsets = [384, 0], sizes = [8, 256], strides = [1, 1]} : vector<392x256xbf16> to vector<8x256xbf16>
    %98 = tpu.concatenate %89, %90, %91, %92, %93, %94, %95, %96, %97 in 1 : vector<8x256xbf16>, vector<8x256xbf16>, vector<8x256xbf16>, vector<8x256xbf16>, vector<8x256xbf16>, vector<8x256xbf16>, vector<8x256xbf16>, vector<8x256xbf16>, vector<8x256xbf16> -> vector<8x2304xbf16>
    %99 = tpu.concatenate %18, %28, %38, %48, %58, %68, %78, %88, %98 in 0 : vector<8x2304xbf16>, vector<8x2304xbf16>, vector<8x2304xbf16>, vector<8x2304xbf16>, vector<8x2304xbf16>, vector<8x2304xbf16>, vector<8x2304xbf16>, vector<8x2304xbf16>, vector<8x2304xbf16> -> vector<72x2304xbf16>
    %c0_6 = arith.constant 0 : index
    %c0_7 = arith.constant 0 : index
    %100 = vector.load %arg4[%c0_6, %c0_7] : memref<2304x128xbf16, #tpu.memory_space<vmem>>, vector<2304x128xbf16>
    %cst_8 = arith.constant dense<0.000000e+00> : vector<72x128xf32>
    %101 = tpu.matmul %99, %100, %cst_8 {dimension_numbers = #tpu.dot_dimension_numbers<[1], [0], [0], [1], [0, 0, 1, 1], [], []>} : vector<72x2304xbf16>, vector<2304x128xbf16>, vector<72x128xf32> -> vector<72x128xf32>
    %c0_9 = arith.constant 0 : index
    %c0_10 = arith.constant 0 : index
    %102 = vector.load %arg5[%c0_9, %c0_10] : memref<1x128xf32, #tpu.memory_space<vmem>>, vector<1x128xf32>
    %103 = vector.broadcast %102 : vector<1x128xf32> to vector<72x128xf32>
    %104 = arith.addf %101, %103 : vector<72x128xf32>
    %cst_11 = arith.constant 0.000000e+00 : f32
    %105 = vector.broadcast %cst_11 : f32 to vector<72x128xf32>
    %106 = arith.maximumf %104, %105 : vector<72x128xf32>
    %107 = arith.truncf %106 : vector<72x128xf32> to vector<72x128xbf16>
    %108 = vector.extract_strided_slice %107 {offsets = [0, 0], sizes = [8, 128], strides = [1, 1]} : vector<72x128xbf16> to vector<8x128xbf16>
    %109 = vector.extract_strided_slice %107 {offsets = [8, 0], sizes = [8, 128], strides = [1, 1]} : vector<72x128xbf16> to vector<8x128xbf16>
    %110 = vector.extract_strided_slice %107 {offsets = [16, 0], sizes = [8, 128], strides = [1, 1]} : vector<72x128xbf16> to vector<8x128xbf16>
    %111 = vector.extract_strided_slice %107 {offsets = [24, 0], sizes = [8, 128], strides = [1, 1]} : vector<72x128xbf16> to vector<8x128xbf16>
    %112 = vector.extract_strided_slice %107 {offsets = [32, 0], sizes = [8, 128], strides = [1, 1]} : vector<72x128xbf16> to vector<8x128xbf16>
    %113 = vector.extract_strided_slice %107 {offsets = [40, 0], sizes = [8, 128], strides = [1, 1]} : vector<72x128xbf16> to vector<8x128xbf16>
    %114 = vector.extract_strided_slice %107 {offsets = [48, 0], sizes = [8, 128], strides = [1, 1]} : vector<72x128xbf16> to vector<8x128xbf16>
    %115 = vector.extract_strided_slice %107 {offsets = [56, 0], sizes = [8, 128], strides = [1, 1]} : vector<72x128xbf16> to vector<8x128xbf16>
    %116 = vector.extract_strided_slice %107 {offsets = [64, 0], sizes = [8, 128], strides = [1, 1]} : vector<72x128xbf16> to vector<8x128xbf16>
    %117 = tpu.concatenate %108, %109, %110, %111, %112, %113, %114, %115, %116 in 1 : vector<8x128xbf16>, vector<8x128xbf16>, vector<8x128xbf16>, vector<8x128xbf16>, vector<8x128xbf16>, vector<8x128xbf16>, vector<8x128xbf16>, vector<8x128xbf16>, vector<8x128xbf16> -> vector<8x1152xbf16>
    %c0_12 = arith.constant 0 : index
    %c0_13 = arith.constant 0 : index
    %118 = vector.load %arg6[%c0_12, %c0_13] : memref<1152x128xbf16, #tpu.memory_space<vmem>>, vector<1152x128xbf16>
    %cst_14 = arith.constant dense<0.000000e+00> : vector<8x128xf32>
    %119 = tpu.matmul %117, %118, %cst_14 {dimension_numbers = #tpu.dot_dimension_numbers<[1], [0], [0], [1], [0, 0, 1, 1], [], []>} : vector<8x1152xbf16>, vector<1152x128xbf16>, vector<8x128xf32> -> vector<8x128xf32>
    %c0_15 = arith.constant 0 : index
    %c0_16 = arith.constant 0 : index
    %120 = vector.load %arg7[%c0_15, %c0_16] : memref<1x128xf32, #tpu.memory_space<vmem>>, vector<1x128xf32>
    %121 = vector.broadcast %120 : vector<1x128xf32> to vector<8x128xf32>
    %122 = arith.addf %119, %121 : vector<8x128xf32>
    %cst_17 = arith.constant 0.000000e+00 : f32
    %123 = vector.broadcast %cst_17 : f32 to vector<8x128xf32>
    %124 = arith.maximumf %122, %123 : vector<8x128xf32>
    %cst_18 = arith.constant 1.000000e+00 : f32
    %125 = vector.broadcast %cst_18 : f32 to vector<8x128xf32>
    %126 = arith.mulf %124, %125 : vector<8x128xf32>
    %c0_19 = arith.constant 0 : index
    %c0_20 = arith.constant 0 : index
    %127 = vector.load %arg8[%c0_19, %c0_20] : memref<8x128xf32, #tpu.memory_space<vmem>>, vector<8x128xf32>
    tpu.vector_store %arg8[%c0_19, %c0_20], %126 {strides = array<i32>} : memref<8x128xf32, #tpu.memory_space<vmem>>, vector<8x128xf32>,
    return
  }
  func.func @transform_0(%arg0: i32) -> (i32, i32) {
    %c0_i32 = arith.constant 0 : i32
    %c0_i32_0 = arith.constant 0 : i32
    return %arg0, %c0_i32 : i32, i32
  }
  func.func @transform_1(%arg0: i32) -> (i32, i32) {
    %c0_i32 = arith.constant 0 : i32
    %c0_i32_0 = arith.constant 0 : i32
    %c0_i32_1 = arith.constant 0 : i32
    return %c0_i32, %c0_i32_0 : i32, i32
  }
  func.func @transform_2(%arg0: i32) -> (i32, i32) {
    %c0_i32 = arith.constant 0 : i32
    %c0_i32_0 = arith.constant 0 : i32
    %c0_i32_1 = arith.constant 0 : i32
    return %c0_i32, %c0_i32_0 : i32, i32
  }
  func.func @transform_3(%arg0: i32) -> (i32, i32) {
    %c0_i32 = arith.constant 0 : i32
    %c0_i32_0 = arith.constant 0 : i32
    %c0_i32_1 = arith.constant 0 : i32
    return %c0_i32, %c0_i32_0 : i32, i32
  }
  func.func @transform_4(%arg0: i32) -> (i32, i32) {
    %c0_i32 = arith.constant 0 : i32
    %c0_i32_0 = arith.constant 0 : i32
    %c0_i32_1 = arith.constant 0 : i32
    return %c0_i32, %c0_i32_0 : i32, i32
  }
  func.func @transform_5(%arg0: i32) -> (i32, i32) {
    %c0_i32 = arith.constant 0 : i32
    %c0_i32_0 = arith.constant 0 : i32
    %c0_i32_1 = arith.constant 0 : i32
    return %c0_i32, %c0_i32_0 : i32, i32
  }
  func.func @transform_6(%arg0: i32) -> (i32, i32) {
    %c0_i32 = arith.constant 0 : i32
    %c0_i32_0 = arith.constant 0 : i32
    %c0_i32_1 = arith.constant 0 : i32
    return %c0_i32, %c0_i32_0 : i32, i32
  }
  func.func @transform_7(%arg0: i32) -> (i32, i32) {
    %c0_i32 = arith.constant 0 : i32
    %c0_i32_0 = arith.constant 0 : i32
    return %arg0, %c0_i32 : i32, i32
  }
}

module attributes {stable_mosaic.version = 11 : i64} {
  func.func @kernel(%arg0: memref<16x128xf32, #tpu.memory_space<vmem>>, %arg1: memref<128x512xbf16, #tpu.memory_space<vmem>>, %arg2: memref<128x512xf32, #tpu.memory_space<vmem>>, %arg3: memref<1x512xf32, #tpu.memory_space<vmem>>, %arg4: memref<128x128xf32, #tpu.memory_space<vmem>>, %arg5: memref<1x128xf32, #tpu.memory_space<vmem>>, %arg6: memref<16x128xf32, #tpu.memory_space<vmem>>) attributes {dimension_semantics = [], scalar_prefetch = 0 : i64, scratch_operands = 0 : i64, tpu.core_type = #tpu.core_type<tc>} {
    %c0 = arith.constant 0 : index
    %c0_0 = arith.constant 0 : index
    %0 = vector.load %arg0[%c0, %c0_0] : memref<16x128xf32, #tpu.memory_space<vmem>>, vector<16x128xf32>
    %1 = arith.truncf %0 : vector<16x128xf32> to vector<16x128xbf16>
    %c0_1 = arith.constant 0 : index
    %c0_2 = arith.constant 0 : index
    %2 = vector.load %arg1[%c0_1, %c0_2] : memref<128x512xbf16, #tpu.memory_space<vmem>>, vector<128x512xbf16>
    %cst = arith.constant dense<0.000000e+00> : vector<16x512xf32>
    %3 = tpu.matmul %1, %2, %cst {dimension_numbers = #tpu.dot_dimension_numbers<[1], [0], [0], [1], [0, 0, 1, 1], [], []>} : vector<16x128xbf16>, vector<128x512xbf16>, vector<16x512xf32> -> vector<16x512xf32>
    %c0_3 = arith.constant 0 : index
    %c0_4 = arith.constant 0 : index
    %4 = vector.load %arg3[%c0_3, %c0_4] : memref<1x512xf32, #tpu.memory_space<vmem>>, vector<1x512xf32>
    %5 = vector.broadcast %4 : vector<1x512xf32> to vector<16x512xf32>
    %6 = arith.addf %3, %5 : vector<16x512xf32>
    %c0_5 = arith.constant 0 : index
    %c0_6 = arith.constant 0 : index
    %7 = vector.load %arg2[%c0_5, %c0_6] : memref<128x512xf32, #tpu.memory_space<vmem>>, vector<128x512xf32>
    %cst_7 = arith.constant 0.000000e+00 : f32
    %8 = vector.broadcast %cst_7 : f32 to vector<2x128xf32>
    %cst_8 = arith.constant 0.000000e+00 : f32
    %9 = vector.broadcast %cst_8 : f32 to vector<2x128xf32>
    %10 = vector.extract_strided_slice %6 {offsets = [0, 0], sizes = [2, 512], strides = [1, 1]} : vector<16x512xf32> to vector<2x512xf32>
    %cst_9 = arith.constant dense<0.000000e+00> : vector<2x512xf32>
    %11 = tpu.matmul %8, %7, %cst_9 {dimension_numbers = #tpu.dot_dimension_numbers<[1], [0], [0], [1], [0, 0, 1, 1], [], []>} : vector<2x128xf32>, vector<128x512xf32>, vector<2x512xf32> -> vector<2x512xf32>
    %12 = arith.addf %10, %11 : vector<2x512xf32>
    %13 = vector.extract_strided_slice %12 {offsets = [0, 0], sizes = [2, 128], strides = [1, 1]} : vector<2x512xf32> to vector<2x128xf32>
    %cst_10 = arith.constant 0.000000e+00 : f32
    %14 = vector.broadcast %cst_10 : f32 to vector<2x128xf32>
    %15 = arith.subf %14, %13 : vector<2x128xf32>
    %16 = math.exp %15 : vector<2x128xf32>
    %cst_11 = arith.constant 1.000000e+00 : f32
    %17 = vector.broadcast %cst_11 : f32 to vector<2x128xf32>
    %18 = arith.addf %17, %16 : vector<2x128xf32>
    %cst_12 = arith.constant 1.000000e+00 : f32
    %19 = vector.broadcast %cst_12 : f32 to vector<2x128xf32>
    %20 = arith.divf %19, %18 : vector<2x128xf32>
    %21 = vector.extract_strided_slice %12 {offsets = [0, 128], sizes = [2, 128], strides = [1, 1]} : vector<2x512xf32> to vector<2x128xf32>
    %cst_13 = arith.constant 0.000000e+00 : f32
    %22 = vector.broadcast %cst_13 : f32 to vector<2x128xf32>
    %23 = arith.subf %22, %21 : vector<2x128xf32>
    %24 = math.exp %23 : vector<2x128xf32>
    %cst_14 = arith.constant 1.000000e+00 : f32
    %25 = vector.broadcast %cst_14 : f32 to vector<2x128xf32>
    %26 = arith.addf %25, %24 : vector<2x128xf32>
    %cst_15 = arith.constant 1.000000e+00 : f32
    %27 = vector.broadcast %cst_15 : f32 to vector<2x128xf32>
    %28 = arith.divf %27, %26 : vector<2x128xf32>
    %29 = vector.extract_strided_slice %12 {offsets = [0, 256], sizes = [2, 128], strides = [1, 1]} : vector<2x512xf32> to vector<2x128xf32>
    %30 = math.tanh %29 : vector<2x128xf32>
    %31 = vector.extract_strided_slice %12 {offsets = [0, 384], sizes = [2, 128], strides = [1, 1]} : vector<2x512xf32> to vector<2x128xf32>
    %cst_16 = arith.constant 0.000000e+00 : f32
    %32 = vector.broadcast %cst_16 : f32 to vector<2x128xf32>
    %33 = arith.subf %32, %31 : vector<2x128xf32>
    %34 = math.exp %33 : vector<2x128xf32>
    %cst_17 = arith.constant 1.000000e+00 : f32
    %35 = vector.broadcast %cst_17 : f32 to vector<2x128xf32>
    %36 = arith.addf %35, %34 : vector<2x128xf32>
    %cst_18 = arith.constant 1.000000e+00 : f32
    %37 = vector.broadcast %cst_18 : f32 to vector<2x128xf32>
    %38 = arith.divf %37, %36 : vector<2x128xf32>
    %39 = arith.mulf %28, %9 : vector<2x128xf32>
    %40 = arith.mulf %20, %30 : vector<2x128xf32>
    %41 = arith.addf %39, %40 : vector<2x128xf32>
    %42 = math.tanh %41 : vector<2x128xf32>
    %43 = arith.mulf %38, %42 : vector<2x128xf32>
    %44 = vector.extract_strided_slice %6 {offsets = [2, 0], sizes = [2, 512], strides = [1, 1]} : vector<16x512xf32> to vector<2x512xf32>
    %cst_19 = arith.constant dense<0.000000e+00> : vector<2x512xf32>
    %45 = tpu.matmul %43, %7, %cst_19 {dimension_numbers = #tpu.dot_dimension_numbers<[1], [0], [0], [1], [0, 0, 1, 1], [], []>} : vector<2x128xf32>, vector<128x512xf32>, vector<2x512xf32> -> vector<2x512xf32>
    %46 = arith.addf %44, %45 : vector<2x512xf32>
    %47 = vector.extract_strided_slice %46 {offsets = [0, 0], sizes = [2, 128], strides = [1, 1]} : vector<2x512xf32> to vector<2x128xf32>
    %cst_20 = arith.constant 0.000000e+00 : f32
    %48 = vector.broadcast %cst_20 : f32 to vector<2x128xf32>
    %49 = arith.subf %48, %47 : vector<2x128xf32>
    %50 = math.exp %49 : vector<2x128xf32>
    %cst_21 = arith.constant 1.000000e+00 : f32
    %51 = vector.broadcast %cst_21 : f32 to vector<2x128xf32>
    %52 = arith.addf %51, %50 : vector<2x128xf32>
    %cst_22 = arith.constant 1.000000e+00 : f32
    %53 = vector.broadcast %cst_22 : f32 to vector<2x128xf32>
    %54 = arith.divf %53, %52 : vector<2x128xf32>
    %55 = vector.extract_strided_slice %46 {offsets = [0, 128], sizes = [2, 128], strides = [1, 1]} : vector<2x512xf32> to vector<2x128xf32>
    %cst_23 = arith.constant 0.000000e+00 : f32
    %56 = vector.broadcast %cst_23 : f32 to vector<2x128xf32>
    %57 = arith.subf %56, %55 : vector<2x128xf32>
    %58 = math.exp %57 : vector<2x128xf32>
    %cst_24 = arith.constant 1.000000e+00 : f32
    %59 = vector.broadcast %cst_24 : f32 to vector<2x128xf32>
    %60 = arith.addf %59, %58 : vector<2x128xf32>
    %cst_25 = arith.constant 1.000000e+00 : f32
    %61 = vector.broadcast %cst_25 : f32 to vector<2x128xf32>
    %62 = arith.divf %61, %60 : vector<2x128xf32>
    %63 = vector.extract_strided_slice %46 {offsets = [0, 256], sizes = [2, 128], strides = [1, 1]} : vector<2x512xf32> to vector<2x128xf32>
    %64 = math.tanh %63 : vector<2x128xf32>
    %65 = vector.extract_strided_slice %46 {offsets = [0, 384], sizes = [2, 128], strides = [1, 1]} : vector<2x512xf32> to vector<2x128xf32>
    %cst_26 = arith.constant 0.000000e+00 : f32
    %66 = vector.broadcast %cst_26 : f32 to vector<2x128xf32>
    %67 = arith.subf %66, %65 : vector<2x128xf32>
    %68 = math.exp %67 : vector<2x128xf32>
    %cst_27 = arith.constant 1.000000e+00 : f32
    %69 = vector.broadcast %cst_27 : f32 to vector<2x128xf32>
    %70 = arith.addf %69, %68 : vector<2x128xf32>
    %cst_28 = arith.constant 1.000000e+00 : f32
    %71 = vector.broadcast %cst_28 : f32 to vector<2x128xf32>
    %72 = arith.divf %71, %70 : vector<2x128xf32>
    %73 = arith.mulf %62, %41 : vector<2x128xf32>
    %74 = arith.mulf %54, %64 : vector<2x128xf32>
    %75 = arith.addf %73, %74 : vector<2x128xf32>
    %76 = math.tanh %75 : vector<2x128xf32>
    %77 = arith.mulf %72, %76 : vector<2x128xf32>
    %78 = vector.extract_strided_slice %6 {offsets = [4, 0], sizes = [2, 512], strides = [1, 1]} : vector<16x512xf32> to vector<2x512xf32>
    %cst_29 = arith.constant dense<0.000000e+00> : vector<2x512xf32>
    %79 = tpu.matmul %77, %7, %cst_29 {dimension_numbers = #tpu.dot_dimension_numbers<[1], [0], [0], [1], [0, 0, 1, 1], [], []>} : vector<2x128xf32>, vector<128x512xf32>, vector<2x512xf32> -> vector<2x512xf32>
    %80 = arith.addf %78, %79 : vector<2x512xf32>
    %81 = vector.extract_strided_slice %80 {offsets = [0, 0], sizes = [2, 128], strides = [1, 1]} : vector<2x512xf32> to vector<2x128xf32>
    %cst_30 = arith.constant 0.000000e+00 : f32
    %82 = vector.broadcast %cst_30 : f32 to vector<2x128xf32>
    %83 = arith.subf %82, %81 : vector<2x128xf32>
    %84 = math.exp %83 : vector<2x128xf32>
    %cst_31 = arith.constant 1.000000e+00 : f32
    %85 = vector.broadcast %cst_31 : f32 to vector<2x128xf32>
    %86 = arith.addf %85, %84 : vector<2x128xf32>
    %cst_32 = arith.constant 1.000000e+00 : f32
    %87 = vector.broadcast %cst_32 : f32 to vector<2x128xf32>
    %88 = arith.divf %87, %86 : vector<2x128xf32>
    %89 = vector.extract_strided_slice %80 {offsets = [0, 128], sizes = [2, 128], strides = [1, 1]} : vector<2x512xf32> to vector<2x128xf32>
    %cst_33 = arith.constant 0.000000e+00 : f32
    %90 = vector.broadcast %cst_33 : f32 to vector<2x128xf32>
    %91 = arith.subf %90, %89 : vector<2x128xf32>
    %92 = math.exp %91 : vector<2x128xf32>
    %cst_34 = arith.constant 1.000000e+00 : f32
    %93 = vector.broadcast %cst_34 : f32 to vector<2x128xf32>
    %94 = arith.addf %93, %92 : vector<2x128xf32>
    %cst_35 = arith.constant 1.000000e+00 : f32
    %95 = vector.broadcast %cst_35 : f32 to vector<2x128xf32>
    %96 = arith.divf %95, %94 : vector<2x128xf32>
    %97 = vector.extract_strided_slice %80 {offsets = [0, 256], sizes = [2, 128], strides = [1, 1]} : vector<2x512xf32> to vector<2x128xf32>
    %98 = math.tanh %97 : vector<2x128xf32>
    %99 = vector.extract_strided_slice %80 {offsets = [0, 384], sizes = [2, 128], strides = [1, 1]} : vector<2x512xf32> to vector<2x128xf32>
    %cst_36 = arith.constant 0.000000e+00 : f32
    %100 = vector.broadcast %cst_36 : f32 to vector<2x128xf32>
    %101 = arith.subf %100, %99 : vector<2x128xf32>
    %102 = math.exp %101 : vector<2x128xf32>
    %cst_37 = arith.constant 1.000000e+00 : f32
    %103 = vector.broadcast %cst_37 : f32 to vector<2x128xf32>
    %104 = arith.addf %103, %102 : vector<2x128xf32>
    %cst_38 = arith.constant 1.000000e+00 : f32
    %105 = vector.broadcast %cst_38 : f32 to vector<2x128xf32>
    %106 = arith.divf %105, %104 : vector<2x128xf32>
    %107 = arith.mulf %96, %75 : vector<2x128xf32>
    %108 = arith.mulf %88, %98 : vector<2x128xf32>
    %109 = arith.addf %107, %108 : vector<2x128xf32>
    %110 = math.tanh %109 : vector<2x128xf32>
    %111 = arith.mulf %106, %110 : vector<2x128xf32>
    %112 = vector.extract_strided_slice %6 {offsets = [6, 0], sizes = [2, 512], strides = [1, 1]} : vector<16x512xf32> to vector<2x512xf32>
    %cst_39 = arith.constant dense<0.000000e+00> : vector<2x512xf32>
    %113 = tpu.matmul %111, %7, %cst_39 {dimension_numbers = #tpu.dot_dimension_numbers<[1], [0], [0], [1], [0, 0, 1, 1], [], []>} : vector<2x128xf32>, vector<128x512xf32>, vector<2x512xf32> -> vector<2x512xf32>
    %114 = arith.addf %112, %113 : vector<2x512xf32>
    %115 = vector.extract_strided_slice %114 {offsets = [0, 0], sizes = [2, 128], strides = [1, 1]} : vector<2x512xf32> to vector<2x128xf32>
    %cst_40 = arith.constant 0.000000e+00 : f32
    %116 = vector.broadcast %cst_40 : f32 to vector<2x128xf32>
    %117 = arith.subf %116, %115 : vector<2x128xf32>
    %118 = math.exp %117 : vector<2x128xf32>
    %cst_41 = arith.constant 1.000000e+00 : f32
    %119 = vector.broadcast %cst_41 : f32 to vector<2x128xf32>
    %120 = arith.addf %119, %118 : vector<2x128xf32>
    %cst_42 = arith.constant 1.000000e+00 : f32
    %121 = vector.broadcast %cst_42 : f32 to vector<2x128xf32>
    %122 = arith.divf %121, %120 : vector<2x128xf32>
    %123 = vector.extract_strided_slice %114 {offsets = [0, 128], sizes = [2, 128], strides = [1, 1]} : vector<2x512xf32> to vector<2x128xf32>
    %cst_43 = arith.constant 0.000000e+00 : f32
    %124 = vector.broadcast %cst_43 : f32 to vector<2x128xf32>
    %125 = arith.subf %124, %123 : vector<2x128xf32>
    %126 = math.exp %125 : vector<2x128xf32>
    %cst_44 = arith.constant 1.000000e+00 : f32
    %127 = vector.broadcast %cst_44 : f32 to vector<2x128xf32>
    %128 = arith.addf %127, %126 : vector<2x128xf32>
    %cst_45 = arith.constant 1.000000e+00 : f32
    %129 = vector.broadcast %cst_45 : f32 to vector<2x128xf32>
    %130 = arith.divf %129, %128 : vector<2x128xf32>
    %131 = vector.extract_strided_slice %114 {offsets = [0, 256], sizes = [2, 128], strides = [1, 1]} : vector<2x512xf32> to vector<2x128xf32>
    %132 = math.tanh %131 : vector<2x128xf32>
    %133 = vector.extract_strided_slice %114 {offsets = [0, 384], sizes = [2, 128], strides = [1, 1]} : vector<2x512xf32> to vector<2x128xf32>
    %cst_46 = arith.constant 0.000000e+00 : f32
    %134 = vector.broadcast %cst_46 : f32 to vector<2x128xf32>
    %135 = arith.subf %134, %133 : vector<2x128xf32>
    %136 = math.exp %135 : vector<2x128xf32>
    %cst_47 = arith.constant 1.000000e+00 : f32
    %137 = vector.broadcast %cst_47 : f32 to vector<2x128xf32>
    %138 = arith.addf %137, %136 : vector<2x128xf32>
    %cst_48 = arith.constant 1.000000e+00 : f32
    %139 = vector.broadcast %cst_48 : f32 to vector<2x128xf32>
    %140 = arith.divf %139, %138 : vector<2x128xf32>
    %141 = arith.mulf %130, %109 : vector<2x128xf32>
    %142 = arith.mulf %122, %132 : vector<2x128xf32>
    %143 = arith.addf %141, %142 : vector<2x128xf32>
    %144 = math.tanh %143 : vector<2x128xf32>
    %145 = arith.mulf %140, %144 : vector<2x128xf32>
    %146 = vector.extract_strided_slice %6 {offsets = [8, 0], sizes = [2, 512], strides = [1, 1]} : vector<16x512xf32> to vector<2x512xf32>
    %cst_49 = arith.constant dense<0.000000e+00> : vector<2x512xf32>
    %147 = tpu.matmul %145, %7, %cst_49 {dimension_numbers = #tpu.dot_dimension_numbers<[1], [0], [0], [1], [0, 0, 1, 1], [], []>} : vector<2x128xf32>, vector<128x512xf32>, vector<2x512xf32> -> vector<2x512xf32>
    %148 = arith.addf %146, %147 : vector<2x512xf32>
    %149 = vector.extract_strided_slice %148 {offsets = [0, 0], sizes = [2, 128], strides = [1, 1]} : vector<2x512xf32> to vector<2x128xf32>
    %cst_50 = arith.constant 0.000000e+00 : f32
    %150 = vector.broadcast %cst_50 : f32 to vector<2x128xf32>
    %151 = arith.subf %150, %149 : vector<2x128xf32>
    %152 = math.exp %151 : vector<2x128xf32>
    %cst_51 = arith.constant 1.000000e+00 : f32
    %153 = vector.broadcast %cst_51 : f32 to vector<2x128xf32>
    %154 = arith.addf %153, %152 : vector<2x128xf32>
    %cst_52 = arith.constant 1.000000e+00 : f32
    %155 = vector.broadcast %cst_52 : f32 to vector<2x128xf32>
    %156 = arith.divf %155, %154 : vector<2x128xf32>
    %157 = vector.extract_strided_slice %148 {offsets = [0, 128], sizes = [2, 128], strides = [1, 1]} : vector<2x512xf32> to vector<2x128xf32>
    %cst_53 = arith.constant 0.000000e+00 : f32
    %158 = vector.broadcast %cst_53 : f32 to vector<2x128xf32>
    %159 = arith.subf %158, %157 : vector<2x128xf32>
    %160 = math.exp %159 : vector<2x128xf32>
    %cst_54 = arith.constant 1.000000e+00 : f32
    %161 = vector.broadcast %cst_54 : f32 to vector<2x128xf32>
    %162 = arith.addf %161, %160 : vector<2x128xf32>
    %cst_55 = arith.constant 1.000000e+00 : f32
    %163 = vector.broadcast %cst_55 : f32 to vector<2x128xf32>
    %164 = arith.divf %163, %162 : vector<2x128xf32>
    %165 = vector.extract_strided_slice %148 {offsets = [0, 256], sizes = [2, 128], strides = [1, 1]} : vector<2x512xf32> to vector<2x128xf32>
    %166 = math.tanh %165 : vector<2x128xf32>
    %167 = vector.extract_strided_slice %148 {offsets = [0, 384], sizes = [2, 128], strides = [1, 1]} : vector<2x512xf32> to vector<2x128xf32>
    %cst_56 = arith.constant 0.000000e+00 : f32
    %168 = vector.broadcast %cst_56 : f32 to vector<2x128xf32>
    %169 = arith.subf %168, %167 : vector<2x128xf32>
    %170 = math.exp %169 : vector<2x128xf32>
    %cst_57 = arith.constant 1.000000e+00 : f32
    %171 = vector.broadcast %cst_57 : f32 to vector<2x128xf32>
    %172 = arith.addf %171, %170 : vector<2x128xf32>
    %cst_58 = arith.constant 1.000000e+00 : f32
    %173 = vector.broadcast %cst_58 : f32 to vector<2x128xf32>
    %174 = arith.divf %173, %172 : vector<2x128xf32>
    %175 = arith.mulf %164, %143 : vector<2x128xf32>
    %176 = arith.mulf %156, %166 : vector<2x128xf32>
    %177 = arith.addf %175, %176 : vector<2x128xf32>
    %178 = math.tanh %177 : vector<2x128xf32>
    %179 = arith.mulf %174, %178 : vector<2x128xf32>
    %180 = vector.extract_strided_slice %6 {offsets = [10, 0], sizes = [2, 512], strides = [1, 1]} : vector<16x512xf32> to vector<2x512xf32>
    %cst_59 = arith.constant dense<0.000000e+00> : vector<2x512xf32>
    %181 = tpu.matmul %179, %7, %cst_59 {dimension_numbers = #tpu.dot_dimension_numbers<[1], [0], [0], [1], [0, 0, 1, 1], [], []>} : vector<2x128xf32>, vector<128x512xf32>, vector<2x512xf32> -> vector<2x512xf32>
    %182 = arith.addf %180, %181 : vector<2x512xf32>
    %183 = vector.extract_strided_slice %182 {offsets = [0, 0], sizes = [2, 128], strides = [1, 1]} : vector<2x512xf32> to vector<2x128xf32>
    %cst_60 = arith.constant 0.000000e+00 : f32
    %184 = vector.broadcast %cst_60 : f32 to vector<2x128xf32>
    %185 = arith.subf %184, %183 : vector<2x128xf32>
    %186 = math.exp %185 : vector<2x128xf32>
    %cst_61 = arith.constant 1.000000e+00 : f32
    %187 = vector.broadcast %cst_61 : f32 to vector<2x128xf32>
    %188 = arith.addf %187, %186 : vector<2x128xf32>
    %cst_62 = arith.constant 1.000000e+00 : f32
    %189 = vector.broadcast %cst_62 : f32 to vector<2x128xf32>
    %190 = arith.divf %189, %188 : vector<2x128xf32>
    %191 = vector.extract_strided_slice %182 {offsets = [0, 128], sizes = [2, 128], strides = [1, 1]} : vector<2x512xf32> to vector<2x128xf32>
    %cst_63 = arith.constant 0.000000e+00 : f32
    %192 = vector.broadcast %cst_63 : f32 to vector<2x128xf32>
    %193 = arith.subf %192, %191 : vector<2x128xf32>
    %194 = math.exp %193 : vector<2x128xf32>
    %cst_64 = arith.constant 1.000000e+00 : f32
    %195 = vector.broadcast %cst_64 : f32 to vector<2x128xf32>
    %196 = arith.addf %195, %194 : vector<2x128xf32>
    %cst_65 = arith.constant 1.000000e+00 : f32
    %197 = vector.broadcast %cst_65 : f32 to vector<2x128xf32>
    %198 = arith.divf %197, %196 : vector<2x128xf32>
    %199 = vector.extract_strided_slice %182 {offsets = [0, 256], sizes = [2, 128], strides = [1, 1]} : vector<2x512xf32> to vector<2x128xf32>
    %200 = math.tanh %199 : vector<2x128xf32>
    %201 = vector.extract_strided_slice %182 {offsets = [0, 384], sizes = [2, 128], strides = [1, 1]} : vector<2x512xf32> to vector<2x128xf32>
    %cst_66 = arith.constant 0.000000e+00 : f32
    %202 = vector.broadcast %cst_66 : f32 to vector<2x128xf32>
    %203 = arith.subf %202, %201 : vector<2x128xf32>
    %204 = math.exp %203 : vector<2x128xf32>
    %cst_67 = arith.constant 1.000000e+00 : f32
    %205 = vector.broadcast %cst_67 : f32 to vector<2x128xf32>
    %206 = arith.addf %205, %204 : vector<2x128xf32>
    %cst_68 = arith.constant 1.000000e+00 : f32
    %207 = vector.broadcast %cst_68 : f32 to vector<2x128xf32>
    %208 = arith.divf %207, %206 : vector<2x128xf32>
    %209 = arith.mulf %198, %177 : vector<2x128xf32>
    %210 = arith.mulf %190, %200 : vector<2x128xf32>
    %211 = arith.addf %209, %210 : vector<2x128xf32>
    %212 = math.tanh %211 : vector<2x128xf32>
    %213 = arith.mulf %208, %212 : vector<2x128xf32>
    %214 = vector.extract_strided_slice %6 {offsets = [12, 0], sizes = [2, 512], strides = [1, 1]} : vector<16x512xf32> to vector<2x512xf32>
    %cst_69 = arith.constant dense<0.000000e+00> : vector<2x512xf32>
    %215 = tpu.matmul %213, %7, %cst_69 {dimension_numbers = #tpu.dot_dimension_numbers<[1], [0], [0], [1], [0, 0, 1, 1], [], []>} : vector<2x128xf32>, vector<128x512xf32>, vector<2x512xf32> -> vector<2x512xf32>
    %216 = arith.addf %214, %215 : vector<2x512xf32>
    %217 = vector.extract_strided_slice %216 {offsets = [0, 0], sizes = [2, 128], strides = [1, 1]} : vector<2x512xf32> to vector<2x128xf32>
    %cst_70 = arith.constant 0.000000e+00 : f32
    %218 = vector.broadcast %cst_70 : f32 to vector<2x128xf32>
    %219 = arith.subf %218, %217 : vector<2x128xf32>
    %220 = math.exp %219 : vector<2x128xf32>
    %cst_71 = arith.constant 1.000000e+00 : f32
    %221 = vector.broadcast %cst_71 : f32 to vector<2x128xf32>
    %222 = arith.addf %221, %220 : vector<2x128xf32>
    %cst_72 = arith.constant 1.000000e+00 : f32
    %223 = vector.broadcast %cst_72 : f32 to vector<2x128xf32>
    %224 = arith.divf %223, %222 : vector<2x128xf32>
    %225 = vector.extract_strided_slice %216 {offsets = [0, 128], sizes = [2, 128], strides = [1, 1]} : vector<2x512xf32> to vector<2x128xf32>
    %cst_73 = arith.constant 0.000000e+00 : f32
    %226 = vector.broadcast %cst_73 : f32 to vector<2x128xf32>
    %227 = arith.subf %226, %225 : vector<2x128xf32>
    %228 = math.exp %227 : vector<2x128xf32>
    %cst_74 = arith.constant 1.000000e+00 : f32
    %229 = vector.broadcast %cst_74 : f32 to vector<2x128xf32>
    %230 = arith.addf %229, %228 : vector<2x128xf32>
    %cst_75 = arith.constant 1.000000e+00 : f32
    %231 = vector.broadcast %cst_75 : f32 to vector<2x128xf32>
    %232 = arith.divf %231, %230 : vector<2x128xf32>
    %233 = vector.extract_strided_slice %216 {offsets = [0, 256], sizes = [2, 128], strides = [1, 1]} : vector<2x512xf32> to vector<2x128xf32>
    %234 = math.tanh %233 : vector<2x128xf32>
    %235 = vector.extract_strided_slice %216 {offsets = [0, 384], sizes = [2, 128], strides = [1, 1]} : vector<2x512xf32> to vector<2x128xf32>
    %cst_76 = arith.constant 0.000000e+00 : f32
    %236 = vector.broadcast %cst_76 : f32 to vector<2x128xf32>
    %237 = arith.subf %236, %235 : vector<2x128xf32>
    %238 = math.exp %237 : vector<2x128xf32>
    %cst_77 = arith.constant 1.000000e+00 : f32
    %239 = vector.broadcast %cst_77 : f32 to vector<2x128xf32>
    %240 = arith.addf %239, %238 : vector<2x128xf32>
    %cst_78 = arith.constant 1.000000e+00 : f32
    %241 = vector.broadcast %cst_78 : f32 to vector<2x128xf32>
    %242 = arith.divf %241, %240 : vector<2x128xf32>
    %243 = arith.mulf %232, %211 : vector<2x128xf32>
    %244 = arith.mulf %224, %234 : vector<2x128xf32>
    %245 = arith.addf %243, %244 : vector<2x128xf32>
    %246 = math.tanh %245 : vector<2x128xf32>
    %247 = arith.mulf %242, %246 : vector<2x128xf32>
    %248 = vector.extract_strided_slice %6 {offsets = [14, 0], sizes = [2, 512], strides = [1, 1]} : vector<16x512xf32> to vector<2x512xf32>
    %cst_79 = arith.constant dense<0.000000e+00> : vector<2x512xf32>
    %249 = tpu.matmul %247, %7, %cst_79 {dimension_numbers = #tpu.dot_dimension_numbers<[1], [0], [0], [1], [0, 0, 1, 1], [], []>} : vector<2x128xf32>, vector<128x512xf32>, vector<2x512xf32> -> vector<2x512xf32>
    %250 = arith.addf %248, %249 : vector<2x512xf32>
    %251 = vector.extract_strided_slice %250 {offsets = [0, 0], sizes = [2, 128], strides = [1, 1]} : vector<2x512xf32> to vector<2x128xf32>
    %cst_80 = arith.constant 0.000000e+00 : f32
    %252 = vector.broadcast %cst_80 : f32 to vector<2x128xf32>
    %253 = arith.subf %252, %251 : vector<2x128xf32>
    %254 = math.exp %253 : vector<2x128xf32>
    %cst_81 = arith.constant 1.000000e+00 : f32
    %255 = vector.broadcast %cst_81 : f32 to vector<2x128xf32>
    %256 = arith.addf %255, %254 : vector<2x128xf32>
    %cst_82 = arith.constant 1.000000e+00 : f32
    %257 = vector.broadcast %cst_82 : f32 to vector<2x128xf32>
    %258 = arith.divf %257, %256 : vector<2x128xf32>
    %259 = vector.extract_strided_slice %250 {offsets = [0, 128], sizes = [2, 128], strides = [1, 1]} : vector<2x512xf32> to vector<2x128xf32>
    %cst_83 = arith.constant 0.000000e+00 : f32
    %260 = vector.broadcast %cst_83 : f32 to vector<2x128xf32>
    %261 = arith.subf %260, %259 : vector<2x128xf32>
    %262 = math.exp %261 : vector<2x128xf32>
    %cst_84 = arith.constant 1.000000e+00 : f32
    %263 = vector.broadcast %cst_84 : f32 to vector<2x128xf32>
    %264 = arith.addf %263, %262 : vector<2x128xf32>
    %cst_85 = arith.constant 1.000000e+00 : f32
    %265 = vector.broadcast %cst_85 : f32 to vector<2x128xf32>
    %266 = arith.divf %265, %264 : vector<2x128xf32>
    %267 = vector.extract_strided_slice %250 {offsets = [0, 256], sizes = [2, 128], strides = [1, 1]} : vector<2x512xf32> to vector<2x128xf32>
    %268 = math.tanh %267 : vector<2x128xf32>
    %269 = vector.extract_strided_slice %250 {offsets = [0, 384], sizes = [2, 128], strides = [1, 1]} : vector<2x512xf32> to vector<2x128xf32>
    %cst_86 = arith.constant 0.000000e+00 : f32
    %270 = vector.broadcast %cst_86 : f32 to vector<2x128xf32>
    %271 = arith.subf %270, %269 : vector<2x128xf32>
    %272 = math.exp %271 : vector<2x128xf32>
    %cst_87 = arith.constant 1.000000e+00 : f32
    %273 = vector.broadcast %cst_87 : f32 to vector<2x128xf32>
    %274 = arith.addf %273, %272 : vector<2x128xf32>
    %cst_88 = arith.constant 1.000000e+00 : f32
    %275 = vector.broadcast %cst_88 : f32 to vector<2x128xf32>
    %276 = arith.divf %275, %274 : vector<2x128xf32>
    %277 = arith.mulf %266, %245 : vector<2x128xf32>
    %278 = arith.mulf %258, %268 : vector<2x128xf32>
    %279 = arith.addf %277, %278 : vector<2x128xf32>
    %280 = math.tanh %279 : vector<2x128xf32>
    %281 = arith.mulf %276, %280 : vector<2x128xf32>
    %282 = tpu.concatenate %43, %77, %111, %145, %179, %213, %247, %281 in 0 : vector<2x128xf32>, vector<2x128xf32>, vector<2x128xf32>, vector<2x128xf32>, vector<2x128xf32>, vector<2x128xf32>, vector<2x128xf32>, vector<2x128xf32> -> vector<16x128xf32>
    %c0_89 = arith.constant 0 : index
    %c0_90 = arith.constant 0 : index
    %283 = vector.load %arg4[%c0_89, %c0_90] : memref<128x128xf32, #tpu.memory_space<vmem>>, vector<128x128xf32>
    %cst_91 = arith.constant dense<0.000000e+00> : vector<16x128xf32>
    %284 = tpu.matmul %282, %283, %cst_91 {dimension_numbers = #tpu.dot_dimension_numbers<[1], [0], [0], [1], [0, 0, 1, 1], [], []>} : vector<16x128xf32>, vector<128x128xf32>, vector<16x128xf32> -> vector<16x128xf32>
    %c0_92 = arith.constant 0 : index
    %c0_93 = arith.constant 0 : index
    %285 = vector.load %arg5[%c0_92, %c0_93] : memref<1x128xf32, #tpu.memory_space<vmem>>, vector<1x128xf32>
    %286 = vector.broadcast %285 : vector<1x128xf32> to vector<16x128xf32>
    %287 = arith.addf %284, %286 : vector<16x128xf32>
    %c0_94 = arith.constant 0 : index
    %c0_95 = arith.constant 0 : index
    %288 = vector.load %arg6[%c0_94, %c0_95] : memref<16x128xf32, #tpu.memory_space<vmem>>, vector<16x128xf32>
    tpu.vector_store %arg6[%c0_94, %c0_95], %287 {strides = array<i32>} : memref<16x128xf32, #tpu.memory_space<vmem>>, vector<16x128xf32>,
    return
  }
}

</mosaic_0001>

<llo_original>
// kernel: forward.3
$region0: #{forward.3}
  #allocation0 [shape = 'u32[]', space=smem, size = 0x4, offset = 0x4, fixed_abs, tag = 'smem constant byte address 0x4 - core index']
  #allocation1 [shape = 'u32[144,128]{1,0:T(1,128)}', space=vmem, size = 0x12000, scoped, tag = 'internal scratch']
  %s0 = inlined_call_operand.vmem [shape: f32[16,128], index: 0, kind: input, shape index: {}]
  %s1 = inlined_call_operand.vmem [shape: bf16[128,512], index: 1, kind: input, shape index: {}]
  %s2 = inlined_call_operand.vmem [shape: f32[128,512], index: 2, kind: input, shape index: {}]
  %s3 = inlined_call_operand.vmem [shape: f32[1,512], index: 3, kind: input, shape index: {}]
  %s4 = inlined_call_operand.vmem [shape: f32[128,128], index: 4, kind: input, shape index: {}]
  %s5 = inlined_call_operand.vmem [shape: f32[1,128], index: 5, kind: input, shape index: {}]
  %s6 = inlined_call_operand.vmem [shape: f32[16,128], index: 6, kind: output, shape index: {}]
  %s7 = sld [smem:[#allocation0]]
  $region34: #{forward.3} parent=0
    _
  %s9 = ssub.s32 1, %s7
  %s10 = scalar_select 0, %s9, %s7
  // Predicated region
  $region2: #{forward.3} parent=0 // pred_check
    _
  $region3: #{forward.3} parent=0 // pred_check_branch
    %12 = sbr.rel (0) target = $region5
  $region4: #{forward.3} parent=0 // pred_region
    _
  $region5: #{forward.3} parent=0 // pred_fallthru
    _
  // Predicated region
  $region6: #{forward.3} parent=0 // pred_check
    _
  $region7: #{forward.3} parent=0 // pred_check_branch
    %14 = sbr.rel (0) target = $region9
  $region8: #{forward.3} parent=0 // pred_region
    _
  $region9: #{forward.3} parent=0 // pred_fallthru
    _
  // Predicated region
  $region10: #{forward.3} parent=0 // pred_check
    _
  $region11: #{forward.3} parent=0 // pred_check_branch
    %16 = sbr.rel (0) target = $region13
  $region12: #{forward.3} parent=0 // pred_region
    _
  $region13: #{forward.3} parent=0 // pred_fallthru
    _
  // Predicated region
  $region14: #{forward.3} parent=0 // pred_check
    _
  $region15: #{forward.3} parent=0 // pred_check_branch
    %18 = sbr.rel (0) target = $region17
  $region16: #{forward.3} parent=0 // pred_region
    _
  $region17: #{forward.3} parent=0 // pred_fallthru
    _
  // Predicated region
  $region18: #{forward.3} parent=0 // pred_check
    _
  $region19: #{forward.3} parent=0 // pred_check_branch
    %20 = sbr.rel (0) target = $region21
  $region20: #{forward.3} parent=0 // pred_region
    _
  $region21: #{forward.3} parent=0 // pred_fallthru
    _
  // Predicated region
  $region22: #{forward.3} parent=0 // pred_check
    _
  $region23: #{forward.3} parent=0 // pred_check_branch
    %22 = sbr.rel (0) target = $region25
  $region24: #{forward.3} parent=0 // pred_region
    _
  $region25: #{forward.3} parent=0 // pred_fallthru
    _
  %v24 = vld [vmem:[%s0] sm:$0xff]
  %v25 = vld [vmem:[%s0 + $0x8] sm:$0xff]
  %v26 = vpack.c.bf16 %v25, %v24
  %v27 = vld [vmem:[%s1] sm:$0xff]
  %v28 = vld [vmem:[%s1 + $0x8] sm:$0xff]
  %v29 = vld [vmem:[%s1 + $0x10] sm:$0xff]
  %v30 = vld [vmem:[%s1 + $0x18] sm:$0xff]
  %v31 = vld [vmem:[%s1 + $0x20] sm:$0xff]
  %v32 = vld [vmem:[%s1 + $0x28] sm:$0xff]
  %v33 = vld [vmem:[%s1 + $0x30] sm:$0xff]
  %v34 = vld [vmem:[%s1 + $0x38] sm:$0xff]
  %v35 = vld [vmem:[%s1 + $0x40] sm:$0xff]
  %v36 = vld [vmem:[%s1 + $0x48] sm:$0xff]
  %v37 = vld [vmem:[%s1 + $0x50] sm:$0xff]
  %v38 = vld [vmem:[%s1 + $0x58] sm:$0xff]
  %v39 = vld [vmem:[%s1 + $0x60] sm:$0xff]
  %v40 = vld [vmem:[%s1 + $0x68] sm:$0xff]
  %v41 = vld [vmem:[%s1 + $0x70] sm:$0xff]
  %v42 = vld [vmem:[%s1 + $0x78] sm:$0xff]
  %v43 = vld [vmem:[%s1 + $0x80] sm:$0xff]
  %v44 = vld [vmem:[%s1 + $0x88] sm:$0xff]
  %v45 = vld [vmem:[%s1 + $0x90] sm:$0xff]
  %v46 = vld [vmem:[%s1 + $0x98] sm:$0xff]
  %v47 = vld [vmem:[%s1 + $0xa0] sm:$0xff]
  %v48 = vld [vmem:[%s1 + $0xa8] sm:$0xff]
  %v49 = vld [vmem:[%s1 + $0xb0] sm:$0xff]
  %v50 = vld [vmem:[%s1 + $0xb8] sm:$0xff]
  %v51 = vld [vmem:[%s1 + $0xc0] sm:$0xff]
  %v52 = vld [vmem:[%s1 + $0xc8] sm:$0xff]
  %v53 = vld [vmem:[%s1 + $0xd0] sm:$0xff]
  %v54 = vld [vmem:[%s1 + $0xd8] sm:$0xff]
  %v55 = vld [vmem:[%s1 + $0xe0] sm:$0xff]
  %v56 = vld [vmem:[%s1 + $0xe8] sm:$0xff]
  %v57 = vld [vmem:[%s1 + $0xf0] sm:$0xff]
  %v58 = vld [vmem:[%s1 + $0xf8] sm:$0xff]
  %v59 = vld [vmem:[%s3] sm:$0xf]
  %v61 = vlaneseq
  %v62 = vshrl.u32 %v61, 7
  %v63 = vsub.s32 0, %v62
  %v64 = vrot.slane %v59, %v63
  %v65 = vlaneseq
  %v66 = vshrl.u32 %v65, 7
  %v67 = vsub.s32 1, %v66
  %v68 = vrot.slane %v59, %v67
  %v69 = vlaneseq
  %v70 = vshrl.u32 %v69, 7
  %v71 = vsub.s32 2, %v70
  %v72 = vrot.slane %v59, %v71
  %v73 = vlaneseq
  %v74 = vshrl.u32 %v73, 7
  %v75 = vsub.s32 3, %v74
  %v76 = vrot.slane %v59, %v75
  %v113 = vunpack.c.l.b16 %v27
  %v114 = vunpack.c.h.b16 %v27
  %v115 = vunpack.c.l.b16 %v28
  %v116 = vunpack.c.h.b16 %v28
  %v117 = vunpack.c.l.b16 %v29
  %v118 = vunpack.c.h.b16 %v29
  %v119 = vunpack.c.l.b16 %v30
  %v120 = vunpack.c.h.b16 %v30
  %v121 = vunpack.c.l.b16 %v31
  %v122 = vunpack.c.h.b16 %v31
  %v123 = vunpack.c.l.b16 %v32
  %v124 = vunpack.c.h.b16 %v32
  %v125 = vunpack.c.l.b16 %v33
  %v126 = vunpack.c.h.b16 %v33
  %v127 = vunpack.c.l.b16 %v34
  %v128 = vunpack.c.h.b16 %v34
  %v129 = vunpack.c.l.b16 %v35
  %v130 = vunpack.c.h.b16 %v35
  %v131 = vunpack.c.l.b16 %v36
  %v132 = vunpack.c.h.b16 %v36
  %v133 = vunpack.c.l.b16 %v37
  %v134 = vunpack.c.h.b16 %v37
  %v135 = vunpack.c.l.b16 %v38
  %v136 = vunpack.c.h.b16 %v38
  %v137 = vunpack.c.l.b16 %v39
  %v138 = vunpack.c.h.b16 %v39
  %v139 = vunpack.c.l.b16 %v40
  %v140 = vunpack.c.h.b16 %v40
  %v141 = vunpack.c.l.b16 %v41
  %v142 = vunpack.c.h.b16 %v41
  %v143 = vunpack.c.l.b16 %v42
  %v144 = vunpack.c.h.b16 %v42
  %v145 = vunpack.c.l.b16 %v43
  %v146 = vunpack.c.h.b16 %v43
  %v147 = vunpack.c.l.b16 %v44
  %v148 = vunpack.c.h.b16 %v44
  %v149 = vunpack.c.l.b16 %v45
  %v150 = vunpack.c.h.b16 %v45
  %v151 = vunpack.c.l.b16 %v46
  %v152 = vunpack.c.h.b16 %v46
  %v153 = vunpack.c.l.b16 %v47
  %v154 = vunpack.c.h.b16 %v47
  %v155 = vunpack.c.l.b16 %v48
  %v156 = vunpack.c.h.b16 %v48
  %v157 = vunpack.c.l.b16 %v49
  %v158 = vunpack.c.h.b16 %v49
  %v159 = vunpack.c.l.b16 %v50
  %v160 = vunpack.c.h.b16 %v50
  %v161 = vunpack.c.l.b16 %v51
  %v162 = vunpack.c.h.b16 %v51
  %v163 = vunpack.c.l.b16 %v52
  %v164 = vunpack.c.h.b16 %v52
  %v165 = vunpack.c.l.b16 %v53
  %v166 = vunpack.c.h.b16 %v53
  %v167 = vunpack.c.l.b16 %v54
  %v168 = vunpack.c.h.b16 %v54
  %v169 = vunpack.c.l.b16 %v55
  %v170 = vunpack.c.h.b16 %v55
  %v171 = vunpack.c.l.b16 %v56
  %v172 = vunpack.c.h.b16 %v56
  %v173 = vunpack.c.l.b16 %v57
  %v174 = vunpack.c.h.b16 %v57
  %v175 = vunpack.c.l.b16 %v58
  %v176 = vunpack.c.h.b16 %v58
  %v177 = vpack.c.b16 %v117, %v113
  %v178 = vpack.c.b16 %v118, %v114
  %v179 = vpack.c.b16 %v119, %v115
  %v180 = vpack.c.b16 %v120, %v116
  %v181 = vpack.c.b16 %v125, %v121
  %v182 = vpack.c.b16 %v126, %v122
  %v183 = vpack.c.b16 %v127, %v123
  %v184 = vpack.c.b16 %v128, %v124
  %v185 = vpack.c.b16 %v133, %v129
  %v186 = vpack.c.b16 %v134, %v130
  %v187 = vpack.c.b16 %v135, %v131
  %v188 = vpack.c.b16 %v136, %v132
  %v189 = vpack.c.b16 %v141, %v137
  %v190 = vpack.c.b16 %v142, %v138
  %v191 = vpack.c.b16 %v143, %v139
  %v192 = vpack.c.b16 %v144, %v140
  %v193 = vpack.c.b16 %v149, %v145
  %v194 = vpack.c.b16 %v150, %v146
  %v195 = vpack.c.b16 %v151, %v147
  %v196 = vpack.c.b16 %v152, %v148
  %v197 = vpack.c.b16 %v157, %v153
  %v198 = vpack.c.b16 %v158, %v154
  %v199 = vpack.c.b16 %v159, %v155
  %v200 = vpack.c.b16 %v160, %v156
  %v201 = vpack.c.b16 %v165, %v161
  %v202 = vpack.c.b16 %v166, %v162
  %v203 = vpack.c.b16 %v167, %v163
  %v204 = vpack.c.b16 %v168, %v164
  %v205 = vpack.c.b16 %v173, %v169
  %v206 = vpack.c.b16 %v174, %v170
  %v207 = vpack.c.b16 %v175, %v171
  %v208 = vpack.c.b16 %v176, %v172
  %241 = vmatprep.subr.bf16.mxu0 %v206
  %242 = vmatpush1.bf16.msra.mxu0 %v205
  %243 = vmatprep.subr.bf16.mxu0 %v202
  %244 = vmatpush1.bf16.msra.mxu0 %v201
  %245 = vmatprep.subr.bf16.mxu0 %v198
  %246 = vmatpush1.bf16.msra.mxu0 %v197
  %247 = vmatprep.subr.bf16.mxu0 %v194
  %248 = vmatpush1.bf16.msra.mxu0 %v193
  %249 = vmatprep.subr.bf16.mxu0 %v190
  %250 = vmatpush1.bf16.msra.mxu0 %v189
  %251 = vmatprep.subr.bf16.mxu0 %v186
  %252 = vmatpush1.bf16.msra.mxu0 %v185
  %253 = vmatprep.subr.bf16.mxu0 %v182
  %254 = vmatpush1.bf16.msra.mxu0 %v181
  %255 = vmatprep.subr.bf16.mxu0 %v178
  %256 = vmatpush1.bf16.msra.mxu0 %v177
  %257 = vmatprep.subr.bf16.mxu0 0
  %258 = vmatpush2.bf16.msra.mxu0 0
  %259 = vmatprep.subr.bf16.mxu0 0
  %260 = vmatpush2.bf16.msra.mxu0 0
  %261 = vmatprep.subr.bf16.mxu0 0
  %262 = vmatpush2.bf16.msra.mxu0 0
  %263 = vmatprep.subr.bf16.mxu0 0
  %264 = vmatpush2.bf16.msra.mxu0 0
  %265 = vmatprep.subr.bf16.mxu0 0
  %266 = vmatpush2.bf16.msra.mxu0 0
  %267 = vmatprep.subr.bf16.mxu0 0
  %268 = vmatpush2.bf16.msra.mxu0 0
  %269 = vmatprep.subr.bf16.mxu0 0
  %270 = vmatpush2.bf16.msra.mxu0 0
  %271 = vmatprep.subr.bf16.mxu0 0
  %272 = vmatpush2.bf16.msra.mxu0 0
  %273 = vmatprep.mubr.bf16.mxu0 0
  %274 = vmatmul.mubr.bf16.gmra.mxu0 %v26
  %v275 = vpop.f32.mrf.mxu0
  %v276 = vadd.f32 %v64, %v275
  %v277 = vpop.f32.mrf.mxu0
  %v278 = vadd.f32 %v68, %v277
  %v279 = vpop.f32.mrf.mxu0
  %v280 = vadd.f32 %v64, %v279
  %v281 = vpop.f32.mrf.mxu0
  %v282 = vadd.f32 %v68, %v281
  %283 = vdwg.mxu0
  %284 = vmatprep.subr.bf16.mxu0 %v208
  %285 = vmatpush1.bf16.msra.mxu0 %v207
  %286 = vmatprep.subr.bf16.mxu0 %v204
  %287 = vmatpush1.bf16.msra.mxu0 %v203
  %288 = vmatprep.subr.bf16.mxu0 %v200
  %289 = vmatpush1.bf16.msra.mxu0 %v199
  %290 = vmatprep.subr.bf16.mxu0 %v196
  %291 = vmatpush1.bf16.msra.mxu0 %v195
  %292 = vmatprep.subr.bf16.mxu0 %v192
  %293 = vmatpush1.bf16.msra.mxu0 %v191
  %294 = vmatprep.subr.bf16.mxu0 %v188
  %295 = vmatpush1.bf16.msra.mxu0 %v187
  %296 = vmatprep.subr.bf16.mxu0 %v184
  %297 = vmatpush1.bf16.msra.mxu0 %v183
  %298 = vmatprep.subr.bf16.mxu0 %v180
  %299 = vmatpush1.bf16.msra.mxu0 %v179
  %300 = vmatprep.subr.bf16.mxu0 0
  %301 = vmatpush2.bf16.msra.mxu0 0
  %302 = vmatprep.subr.bf16.mxu0 0
  %303 = vmatpush2.bf16.msra.mxu0 0
  %304 = vmatprep.subr.bf16.mxu0 0
  %305 = vmatpush2.bf16.msra.mxu0 0
  %306 = vmatprep.subr.bf16.mxu0 0
  %307 = vmatpush2.bf16.msra.mxu0 0
  %308 = vmatprep.subr.bf16.mxu0 0
  %309 = vmatpush2.bf16.msra.mxu0 0
  %310 = vmatprep.subr.bf16.mxu0 0
  %311 = vmatpush2.bf16.msra.mxu0 0
  %312 = vmatprep.subr.bf16.mxu0 0
  %313 = vmatpush2.bf16.msra.mxu0 0
  %314 = vmatprep.subr.bf16.mxu0 0
  %315 = vmatpush2.bf16.msra.mxu0 0
  %316 = vmatprep.mubr.bf16.mxu0 0
  %317 = vmatmul.mubr.bf16.gmra.mxu0 %v26
  %v318 = vpop.f32.mrf.mxu0
  %v319 = vadd.f32 %v72, %v318
  %v320 = vpop.f32.mrf.mxu0
  %v321 = vadd.f32 %v76, %v320
  %v322 = vpop.f32.mrf.mxu0
  %v323 = vadd.f32 %v72, %v322
  %v324 = vpop.f32.mrf.mxu0
  %v325 = vadd.f32 %v76, %v324
  %326 = vdwg.mxu0
  %v327 = vld [vmem:[%s2] sm:$0xff]
  %v328 = vld [vmem:[%s2 + $0x8] sm:$0xff]
  %v329 = vld [vmem:[%s2 + $0x10] sm:$0xff]
  %v330 = vld [vmem:[%s2 + $0x18] sm:$0xff]
  %v331 = vld [vmem:[%s2 + $0x20] sm:$0xff]
  %v332 = vld [vmem:[%s2 + $0x28] sm:$0xff]
  %v333 = vld [vmem:[%s2 + $0x30] sm:$0xff]
  %v334 = vld [vmem:[%s2 + $0x38] sm:$0xff]
  %v335 = vld [vmem:[%s2 + $0x40] sm:$0xff]
  %v336 = vld [vmem:[%s2 + $0x48] sm:$0xff]
  %v337 = vld [vmem:[%s2 + $0x50] sm:$0xff]
  %v338 = vld [vmem:[%s2 + $0x58] sm:$0xff]
  %v339 = vld [vmem:[%s2 + $0x60] sm:$0xff]
  %v340 = vld [vmem:[%s2 + $0x68] sm:$0xff]
  %v341 = vld [vmem:[%s2 + $0x70] sm:$0xff]
  %v342 = vld [vmem:[%s2 + $0x78] sm:$0xff]
  %v343 = vld [vmem:[%s2 + $0x80] sm:$0xff]
  %v344 = vld [vmem:[%s2 + $0x88] sm:$0xff]
  %v345 = vld [vmem:[%s2 + $0x90] sm:$0xff]
  %v346 = vld [vmem:[%s2 + $0x98] sm:$0xff]
  %v347 = vld [vmem:[%s2 + $0xa0] sm:$0xff]
  %v348 = vld [vmem:[%s2 + $0xa8] sm:$0xff]
  %v349 = vld [vmem:[%s2 + $0xb0] sm:$0xff]
  %v350 = vld [vmem:[%s2 + $0xb8] sm:$0xff]
  %v351 = vld [vmem:[%s2 + $0xc0] sm:$0xff]
  %v352 = vld [vmem:[%s2 + $0xc8] sm:$0xff]
  %v353 = vld [vmem:[%s2 + $0xd0] sm:$0xff]
  %v354 = vld [vmem:[%s2 + $0xd8] sm:$0xff]
  %v355 = vld [vmem:[%s2 + $0xe0] sm:$0xff]
  %v356 = vld [vmem:[%s2 + $0xe8] sm:$0xff]
  %v357 = vld [vmem:[%s2 + $0xf0] sm:$0xff]
  %v358 = vld [vmem:[%s2 + $0xf8] sm:$0xff]
  %v359 = vld [vmem:[%s2 + $0x100] sm:$0xff]
  %v360 = vld [vmem:[%s2 + $0x108] sm:$0xff]
  %v361 = vld [vmem:[%s2 + $0x110] sm:$0xff]
  %v362 = vld [vmem:[%s2 + $0x118] sm:$0xff]
  %v363 = vld [vmem:[%s2 + $0x120] sm:$0xff]
  %v364 = vld [vmem:[%s2 + $0x128] sm:$0xff]
  %v365 = vld [vmem:[%s2 + $0x130] sm:$0xff]
  %v366 = vld [vmem:[%s2 + $0x138] sm:$0xff]
  %v367 = vld [vmem:[%s2 + $0x140] sm:$0xff]
  %v368 = vld [vmem:[%s2 + $0x148] sm:$0xff]
  %v369 = vld [vmem:[%s2 + $0x150] sm:$0xff]
  %v370 = vld [vmem:[%s2 + $0x158] sm:$0xff]
  %v371 = vld [vmem:[%s2 + $0x160] sm:$0xff]
  %v372 = vld [vmem:[%s2 + $0x168] sm:$0xff]
  %v373 = vld [vmem:[%s2 + $0x170] sm:$0xff]
  %v374 = vld [vmem:[%s2 + $0x178] sm:$0xff]
  %v375 = vld [vmem:[%s2 + $0x180] sm:$0xff]
  %v376 = vld [vmem:[%s2 + $0x188] sm:$0xff]
  %v377 = vld [vmem:[%s2 + $0x190] sm:$0xff]
  %v378 = vld [vmem:[%s2 + $0x198] sm:$0xff]
  %v379 = vld [vmem:[%s2 + $0x1a0] sm:$0xff]
  %v380 = vld [vmem:[%s2 + $0x1a8] sm:$0xff]
  %v381 = vld [vmem:[%s2 + $0x1b0] sm:$0xff]
  %v382 = vld [vmem:[%s2 + $0x1b8] sm:$0xff]
  %v383 = vld [vmem:[%s2 + $0x1c0] sm:$0xff]
  %v384 = vld [vmem:[%s2 + $0x1c8] sm:$0xff]
  %v385 = vld [vmem:[%s2 + $0x1d0] sm:$0xff]
  %v386 = vld [vmem:[%s2 + $0x1d8] sm:$0xff]
  %v387 = vld [vmem:[%s2 + $0x1e0] sm:$0xff]
  %v388 = vld [vmem:[%s2 + $0x1e8] sm:$0xff]
  %v389 = vld [vmem:[%s2 + $0x1f0] sm:$0xff]
  %v390 = vld [vmem:[%s2 + $0x1f8] sm:$0xff]
  %391 = vmatprep.subr.mxu0 %v388
  %392 = vmatpush1.msra.mxu0 %v387
  %393 = vmatprep.subr.mxu0 %v384
  %394 = vmatpush1.msra.mxu0 %v383
  %395 = vmatprep.subr.mxu0 %v380
  %396 = vmatpush1.msra.mxu0 %v379
  %397 = vmatprep.subr.mxu0 %v376
  %398 = vmatpush1.msra.mxu0 %v375
  %399 = vmatprep.subr.mxu0 %v372
  %400 = vmatpush1.msra.mxu0 %v371
  %401 = vmatprep.subr.mxu0 %v368
  %402 = vmatpush1.msra.mxu0 %v367
  %403 = vmatprep.subr.mxu0 %v364
  %404 = vmatpush1.msra.mxu0 %v363
  %405 = vmatprep.subr.mxu0 %v360
  %406 = vmatpush1.msra.mxu0 %v359
  %407 = vmatprep.subr.mxu0 %v356
  %408 = vmatpush1.msra.mxu0 %v355
  %409 = vmatprep.subr.mxu0 %v352
  %410 = vmatpush1.msra.mxu0 %v351
  %411 = vmatprep.subr.mxu0 %v348
  %412 = vmatpush1.msra.mxu0 %v347
  %413 = vmatprep.subr.mxu0 %v344
  %414 = vmatpush1.msra.mxu0 %v343
  %415 = vmatprep.subr.mxu0 %v340
  %416 = vmatpush1.msra.mxu0 %v339
  %417 = vmatprep.subr.mxu0 %v336
  %418 = vmatpush1.msra.mxu0 %v335
  %419 = vmatprep.subr.mxu0 %v332
  %420 = vmatpush1.msra.mxu0 %v331
  %421 = vmatprep.subr.mxu0 %v328
  %422 = vmatpush1.msra.mxu0 %v327
  %423 = vmatprep.subr.mxu0 0.0
  %424 = vmatpush2.msra.mxu0 0.0
  %425 = vmatprep.subr.mxu0 0.0
  %426 = vmatpush2.msra.mxu0 0.0
  %427 = vmatprep.subr.mxu0 0.0
  %428 = vmatpush2.msra.mxu0 0.0
  %429 = vmatprep.subr.mxu0 0.0
  %430 = vmatpush2.msra.mxu0 0.0
  %431 = vmatprep.subr.mxu0 0.0
  %432 = vmatpush2.msra.mxu0 0.0
  %433 = vmatprep.subr.mxu0 0.0
  %434 = vmatpush2.msra.mxu0 0.0
  %435 = vmatprep.subr.mxu0 0.0
  %436 = vmatpush2.msra.mxu0 0.0
  %437 = vmatprep.subr.mxu0 0.0
  %438 = vmatpush2.msra.mxu0 0.0
  %439 = vmatprep.subr.mxu0 0.0
  %440 = vmatpush2.msra.mxu0 0.0
  %441 = vmatprep.subr.mxu0 0.0
  %442 = vmatpush2.msra.mxu0 0.0
  %443 = vmatprep.subr.mxu0 0.0
  %444 = vmatpush2.msra.mxu0 0.0
  %445 = vmatprep.subr.mxu0 0.0
  %446 = vmatpush2.msra.mxu0 0.0
  %447 = vmatprep.subr.mxu0 0.0
  %448 = vmatpush2.msra.mxu0 0.0
  %449 = vmatprep.subr.mxu0 0.0
  %450 = vmatpush2.msra.mxu0 0.0
  %451 = vmatprep.subr.mxu0 0.0
  %452 = vmatpush2.msra.mxu0 0.0
  %453 = vmatprep.subr.mxu0 0.0
  %454 = vmatpush2.msra.mxu0 0.0
  %455 = vmatprep.mubr.f32.mxu0 0.0
  %456 = vmatmul.mubr.f32.gmra.mxu0 0.0
  %v457 = vpop.f32.mrf.mxu0
  %v458 = vadd.f32 0.0, %v457
  %v459 = vpop.f32.mrf.mxu0
  %v460 = vadd.f32 0.0, %v459
  %461 = vdwg.mxu0
  %462 = vmatprep.subr.mxu0 %v390
  %463 = vmatpush1.msra.mxu0 %v389
  %464 = vmatprep.subr.mxu0 %v386
  %465 = vmatpush1.msra.mxu0 %v385
  %466 = vmatprep.subr.mxu0 %v382
  %467 = vmatpush1.msra.mxu0 %v381
  %468 = vmatprep.subr.mxu0 %v378
  %469 = vmatpush1.msra.mxu0 %v377
  %470 = vmatprep.subr.mxu0 %v374
  %471 = vmatpush1.msra.mxu0 %v373
  %472 = vmatprep.subr.mxu0 %v370
  %473 = vmatpush1.msra.mxu0 %v369
  %474 = vmatprep.subr.mxu0 %v366
  %475 = vmatpush1.msra.mxu0 %v365
  %476 = vmatprep.subr.mxu0 %v362
  %477 = vmatpush1.msra.mxu0 %v361
  %478 = vmatprep.subr.mxu0 %v358
  %479 = vmatpush1.msra.mxu0 %v357
  %480 = vmatprep.subr.mxu0 %v354
  %481 = vmatpush1.msra.mxu0 %v353
  %482 = vmatprep.subr.mxu0 %v350
  %483 = vmatpush1.msra.mxu0 %v349
  %484 = vmatprep.subr.mxu0 %v346
  %485 = vmatpush1.msra.mxu0 %v345
  %486 = vmatprep.subr.mxu0 %v342
  %487 = vmatpush1.msra.mxu0 %v341
  %488 = vmatprep.subr.mxu0 %v338
  %489 = vmatpush1.msra.mxu0 %v337
  %490 = vmatprep.subr.mxu0 %v334
  %491 = vmatpush1.msra.mxu0 %v333
  %492 = vmatprep.subr.mxu0 %v330
  %493 = vmatpush1.msra.mxu0 %v329
  %494 = vmatprep.subr.mxu0 0.0
  %495 = vmatpush2.msra.mxu0 0.0
  %496 = vmatprep.subr.mxu0 0.0
  %497 = vmatpush2.msra.mxu0 0.0
  %498 = vmatprep.subr.mxu0 0.0
  %499 = vmatpush2.msra.mxu0 0.0
  %500 = vmatprep.subr.mxu0 0.0
  %501 = vmatpush2.msra.mxu0 0.0
  %502 = vmatprep.subr.mxu0 0.0
  %503 = vmatpush2.msra.mxu0 0.0
  %504 = vmatprep.subr.mxu0 0.0
  %505 = vmatpush2.msra.mxu0 0.0
  %506 = vmatprep.subr.mxu0 0.0
  %507 = vmatpush2.msra.mxu0 0.0
  %508 = vmatprep.subr.mxu0 0.0
  %509 = vmatpush2.msra.mxu0 0.0
  %510 = vmatprep.subr.mxu0 0.0
  %511 = vmatpush2.msra.mxu0 0.0
  %512 = vmatprep.subr.mxu0 0.0
  %513 = vmatpush2.msra.mxu0 0.0
  %514 = vmatprep.subr.mxu0 0.0
  %515 = vmatpush2.msra.mxu0 0.0
  %516 = vmatprep.subr.mxu0 0.0
  %517 = vmatpush2.msra.mxu0 0.0
  %518 = vmatprep.subr.mxu0 0.0
  %519 = vmatpush2.msra.mxu0 0.0
  %520 = vmatprep.subr.mxu0 0.0
  %521 = vmatpush2.msra.mxu0 0.0
  %522 = vmatprep.subr.mxu0 0.0
  %523 = vmatpush2.msra.mxu0 0.0
  %524 = vmatprep.subr.mxu0 0.0
  %525 = vmatpush2.msra.mxu0 0.0
  %526 = vmatprep.mubr.f32.mxu0 0.0
  %527 = vmatmul.mubr.f32.gmra.mxu0 0.0
  %v528 = vpop.f32.mrf.mxu0
  %v529 = vadd.f32 0.0, %v528
  %v530 = vpop.f32.mrf.mxu0
  %v531 = vadd.f32 0.0, %v530
  %532 = vdwg.mxu0
  %v533 = vadd.f32 %v276, %v458
  %v534 = vadd.f32 %v278, %v460
  %v535 = vadd.f32 %v319, %v529
  %v536 = vadd.f32 %v321, %v531
  %v537 = vsub.f32 0.0, %v533
  %v538 = vmul.f32 %v537, 1.442695
  %v539 = vpow.pop %v538
  %v540 = vadd.f32 %v539, 1.0
  %v541 = vrcp.pop %v540
  %v542 = vmul.f32 1.0, %v541
  %v543 = vsub.f32 0.0, %v534
  %v544 = vmul.f32 %v543, 1.442695
  %v545 = vpow.pop %v544
  %v546 = vadd.f32 %v545, 1.0
  %v547 = vrcp.pop %v546
  %v548 = vmul.f32 1.0, %v547
  %v549 = vtanh.pop %v535
  %v550 = vsub.f32 0.0, %v536
  %v551 = vmul.f32 %v550, 1.442695
  %v552 = vpow.pop %v551
  %v553 = vadd.f32 %v552, 1.0
  %v554 = vrcp.pop %v553
  %v555 = vmul.f32 1.0, %v554
  %v556 = vmul.f32 %v548, 0.0
  %v557 = vmul.f32 %v542, %v549
  %v558 = vadd.f32 %v556, %v557
  %v559 = vtanh.pop %v558
  %v560 = vmul.f32 %v555, %v559
  %561 = vmatprep.subr.mxu0 %v388
  %562 = vmatpush1.msra.mxu0 %v387
  %563 = vmatprep.subr.mxu0 %v384
  %564 = vmatpush1.msra.mxu0 %v383
  %565 = vmatprep.subr.mxu0 %v380
  %566 = vmatpush1.msra.mxu0 %v379
  %567 = vmatprep.subr.mxu0 %v376
  %568 = vmatpush1.msra.mxu0 %v375
  %569 = vmatprep.subr.mxu0 %v372
  %570 = vmatpush1.msra.mxu0 %v371
  %571 = vmatprep.subr.mxu0 %v368
  %572 = vmatpush1.msra.mxu0 %v367
  %573 = vmatprep.subr.mxu0 %v364
  %574 = vmatpush1.msra.mxu0 %v363
  %575 = vmatprep.subr.mxu0 %v360
  %576 = vmatpush1.msra.mxu0 %v359
  %577 = vmatprep.subr.mxu0 %v356
  %578 = vmatpush1.msra.mxu0 %v355
  %579 = vmatprep.subr.mxu0 %v352
  %580 = vmatpush1.msra.mxu0 %v351
  %581 = vmatprep.subr.mxu0 %v348
  %582 = vmatpush1.msra.mxu0 %v347
  %583 = vmatprep.subr.mxu0 %v344
  %584 = vmatpush1.msra.mxu0 %v343
  %585 = vmatprep.subr.mxu0 %v340
  %586 = vmatpush1.msra.mxu0 %v339
  %587 = vmatprep.subr.mxu0 %v336
  %588 = vmatpush1.msra.mxu0 %v335
  %589 = vmatprep.subr.mxu0 %v332
  %590 = vmatpush1.msra.mxu0 %v331
  %591 = vmatprep.subr.mxu0 %v328
  %592 = vmatpush1.msra.mxu0 %v327
  %593 = vmatprep.subr.mxu0 0.0
  %594 = vmatpush2.msra.mxu0 0.0
  %595 = vmatprep.subr.mxu0 0.0
  %596 = vmatpush2.msra.mxu0 0.0
  %597 = vmatprep.subr.mxu0 0.0
  %598 = vmatpush2.msra.mxu0 0.0
  %599 = vmatprep.subr.mxu0 0.0
  %600 = vmatpush2.msra.mxu0 0.0
  %601 = vmatprep.subr.mxu0 0.0
  %602 = vmatpush2.msra.mxu0 0.0
  %603 = vmatprep.subr.mxu0 0.0
  %604 = vmatpush2.msra.mxu0 0.0
  %605 = vmatprep.subr.mxu0 0.0
  %606 = vmatpush2.msra.mxu0 0.0
  %607 = vmatprep.subr.mxu0 0.0
  %608 = vmatpush2.msra.mxu0 0.0
  %609 = vmatprep.subr.mxu0 0.0
  %610 = vmatpush2.msra.mxu0 0.0
  %611 = vmatprep.subr.mxu0 0.0
  %612 = vmatpush2.msra.mxu0 0.0
  %613 = vmatprep.subr.mxu0 0.0
  %614 = vmatpush2.msra.mxu0 0.0
  %615 = vmatprep.subr.mxu0 0.0
  %616 = vmatpush2.msra.mxu0 0.0
  %617 = vmatprep.subr.mxu0 0.0
  %618 = vmatpush2.msra.mxu0 0.0
  %619 = vmatprep.subr.mxu0 0.0
  %620 = vmatpush2.msra.mxu0 0.0
  %621 = vmatprep.subr.mxu0 0.0
  %622 = vmatpush2.msra.mxu0 0.0
  %623 = vmatprep.subr.mxu0 0.0
  %624 = vmatpush2.msra.mxu0 0.0
  %625 = vmatprep.mubr.f32.mxu0 0.0
  %626 = vmatmul.mubr.f32.gmra.mxu0 %v560
  %v627 = vpop.f32.mrf.mxu0
  %v628 = vadd.f32 0.0, %v627
  %v629 = vpop.f32.mrf.mxu0
  %v630 = vadd.f32 0.0, %v629
  %631 = vdwg.mxu0
  %632 = vmatprep.subr.mxu0 %v390
  %633 = vmatpush1.msra.mxu0 %v389
  %634 = vmatprep.subr.mxu0 %v386
  %635 = vmatpush1.msra.mxu0 %v385
  %636 = vmatprep.subr.mxu0 %v382
  %637 = vmatpush1.msra.mxu0 %v381
  %638 = vmatprep.subr.mxu0 %v378
  %639 = vmatpush1.msra.mxu0 %v377
  %640 = vmatprep.subr.mxu0 %v374
  %641 = vmatpush1.msra.mxu0 %v373
  %642 = vmatprep.subr.mxu0 %v370
  %643 = vmatpush1.msra.mxu0 %v369
  %644 = vmatprep.subr.mxu0 %v366
  %645 = vmatpush1.msra.mxu0 %v365
  %646 = vmatprep.subr.mxu0 %v362
  %647 = vmatpush1.msra.mxu0 %v361
  %648 = vmatprep.subr.mxu0 %v358
  %649 = vmatpush1.msra.mxu0 %v357
  %650 = vmatprep.subr.mxu0 %v354
  %651 = vmatpush1.msra.mxu0 %v353
  %652 = vmatprep.subr.mxu0 %v350
  %653 = vmatpush1.msra.mxu0 %v349
  %654 = vmatprep.subr.mxu0 %v346
  %655 = vmatpush1.msra.mxu0 %v345
  %656 = vmatprep.subr.mxu0 %v342
  %657 = vmatpush1.msra.mxu0 %v341
  %658 = vmatprep.subr.mxu0 %v338
  %659 = vmatpush1.msra.mxu0 %v337
  %660 = vmatprep.subr.mxu0 %v334
  %661 = vmatpush1.msra.mxu0 %v333
  %662 = vmatprep.subr.mxu0 %v330
  %663 = vmatpush1.msra.mxu0 %v329
  %664 = vmatprep.subr.mxu0 0.0
  %665 = vmatpush2.msra.mxu0 0.0
  %666 = vmatprep.subr.mxu0 0.0
  %667 = vmatpush2.msra.mxu0 0.0
  %668 = vmatprep.subr.mxu0 0.0
  %669 = vmatpush2.msra.mxu0 0.0
  %670 = vmatprep.subr.mxu0 0.0
  %671 = vmatpush2.msra.mxu0 0.0
  %672 = vmatprep.subr.mxu0 0.0
  %673 = vmatpush2.msra.mxu0 0.0
  %674 = vmatprep.subr.mxu0 0.0
  %675 = vmatpush2.msra.mxu0 0.0
  %676 = vmatprep.subr.mxu0 0.0
  %677 = vmatpush2.msra.mxu0 0.0
  %678 = vmatprep.subr.mxu0 0.0
  %679 = vmatpush2.msra.mxu0 0.0
  %680 = vmatprep.subr.mxu0 0.0
  %681 = vmatpush2.msra.mxu0 0.0
  %682 = vmatprep.subr.mxu0 0.0
  %683 = vmatpush2.msra.mxu0 0.0
  %684 = vmatprep.subr.mxu0 0.0
  %685 = vmatpush2.msra.mxu0 0.0
  %686 = vmatprep.subr.mxu0 0.0
  %687 = vmatpush2.msra.mxu0 0.0
  %688 = vmatprep.subr.mxu0 0.0
  %689 = vmatpush2.msra.mxu0 0.0
  %690 = vmatprep.subr.mxu0 0.0
  %691 = vmatpush2.msra.mxu0 0.0
  %692 = vmatprep.subr.mxu0 0.0
  %693 = vmatpush2.msra.mxu0 0.0
  %694 = vmatprep.subr.mxu0 0.0
  %695 = vmatpush2.msra.mxu0 0.0
  %696 = vmatprep.mubr.f32.mxu0 0.0
  %697 = vmatmul.mubr.f32.gmra.mxu0 %v560
  %v698 = vpop.f32.mrf.mxu0
  %v699 = vadd.f32 0.0, %v698
  %v700 = vpop.f32.mrf.mxu0
  %v701 = vadd.f32 0.0, %v700
  %702 = vdwg.mxu0
  %v707 = vrot.slane %v628, 6
  %v708 = vrot.slane %v630, 6
  %v709 = vrot.slane %v699, 6
  %v710 = vrot.slane %v701, 6
  %v715 = vadd.f32 %v276, %v707
  %v716 = vadd.f32 %v278, %v708
  %v717 = vadd.f32 %v319, %v709
  %v718 = vadd.f32 %v321, %v710
  %v719 = vsub.f32 0.0, %v715
  %v720 = vmul.f32 %v719, 1.442695
  %v721 = vpow.pop %v720
  %v722 = vadd.f32 %v721, 1.0
  %v723 = vrcp.pop %v722
  %v724 = vmul.f32 1.0, %v723
  %v725 = vsub.f32 0.0, %v716
  %v726 = vmul.f32 %v725, 1.442695
  %v727 = vpow.pop %v726
  %v728 = vadd.f32 %v727, 1.0
  %v729 = vrcp.pop %v728
  %v730 = vmul.f32 1.0, %v729
  %v731 = vtanh.pop %v717
  %v732 = vsub.f32 0.0, %v718
  %v733 = vmul.f32 %v732, 1.442695
  %v734 = vpow.pop %v733
  %v735 = vadd.f32 %v734, 1.0
  %v736 = vrcp.pop %v735
  %v737 = vmul.f32 1.0, %v736
  %v739 = vrot.slane %v558, 6
  %v741 = vmul.f32 %v730, %v739
  %v742 = vmul.f32 %v724, %v731
  %v743 = vadd.f32 %v741, %v742
  %v744 = vtanh.pop %v743
  %v745 = vmul.f32 %v737, %v744
  %v747 = vrot.slane %v745, 2
  %749 = vmatprep.subr.mxu0 %v388
  %750 = vmatpush1.msra.mxu0 %v387
  %751 = vmatprep.subr.mxu0 %v384
  %752 = vmatpush1.msra.mxu0 %v383
  %753 = vmatprep.subr.mxu0 %v380
  %754 = vmatpush1.msra.mxu0 %v379
  %755 = vmatprep.subr.mxu0 %v376
  %756 = vmatpush1.msra.mxu0 %v375
  %757 = vmatprep.subr.mxu0 %v372
  %758 = vmatpush1.msra.mxu0 %v371
  %759 = vmatprep.subr.mxu0 %v368
  %760 = vmatpush1.msra.mxu0 %v367
  %761 = vmatprep.subr.mxu0 %v364
  %762 = vmatpush1.msra.mxu0 %v363
  %763 = vmatprep.subr.mxu0 %v360
  %764 = vmatpush1.msra.mxu0 %v359
  %765 = vmatprep.subr.mxu0 %v356
  %766 = vmatpush1.msra.mxu0 %v355
  %767 = vmatprep.subr.mxu0 %v352
  %768 = vmatpush1.msra.mxu0 %v351
  %769 = vmatprep.subr.mxu0 %v348
  %770 = vmatpush1.msra.mxu0 %v347
  %771 = vmatprep.subr.mxu0 %v344
  %772 = vmatpush1.msra.mxu0 %v343
  %773 = vmatprep.subr.mxu0 %v340
  %774 = vmatpush1.msra.mxu0 %v339
  %775 = vmatprep.subr.mxu0 %v336
  %776 = vmatpush1.msra.mxu0 %v335
  %777 = vmatprep.subr.mxu0 %v332
  %778 = vmatpush1.msra.mxu0 %v331
  %779 = vmatprep.subr.mxu0 %v328
  %780 = vmatpush1.msra.mxu0 %v327
  %781 = vmatprep.subr.mxu0 0.0
  %782 = vmatpush2.msra.mxu0 0.0
  %783 = vmatprep.subr.mxu0 0.0
  %784 = vmatpush2.msra.mxu0 0.0
  %785 = vmatprep.subr.mxu0 0.0
  %786 = vmatpush2.msra.mxu0 0.0
  %787 = vmatprep.subr.mxu0 0.0
  %788 = vmatpush2.msra.mxu0 0.0
  %789 = vmatprep.subr.mxu0 0.0
  %790 = vmatpush2.msra.mxu0 0.0
  %791 = vmatprep.subr.mxu0 0.0
  %792 = vmatpush2.msra.mxu0 0.0
  %793 = vmatprep.subr.mxu0 0.0
  %794 = vmatpush2.msra.mxu0 0.0
  %795 = vmatprep.subr.mxu0 0.0
  %796 = vmatpush2.msra.mxu0 0.0
  %797 = vmatprep.subr.mxu0 0.0
  %798 = vmatpush2.msra.mxu0 0.0
  %799 = vmatprep.subr.mxu0 0.0
  %800 = vmatpush2.msra.mxu0 0.0
  %801 = vmatprep.subr.mxu0 0.0
  %802 = vmatpush2.msra.mxu0 0.0
  %803 = vmatprep.subr.mxu0 0.0
  %804 = vmatpush2.msra.mxu0 0.0
  %805 = vmatprep.subr.mxu0 0.0
  %806 = vmatpush2.msra.mxu0 0.0
  %807 = vmatprep.subr.mxu0 0.0
  %808 = vmatpush2.msra.mxu0 0.0
  %809 = vmatprep.subr.mxu0 0.0
  %810 = vmatpush2.msra.mxu0 0.0
  %811 = vmatprep.subr.mxu0 0.0
  %812 = vmatpush2.msra.mxu0 0.0
  %813 = vmatprep.mubr.f32.mxu0 0.0
  %814 = vmatmul.mubr.f32.gmra.mxu0 %v747
  %v815 = vpop.f32.mrf.mxu0
  %v816 = vadd.f32 0.0, %v815
  %v817 = vpop.f32.mrf.mxu0
  %v818 = vadd.f32 0.0, %v817
  %819 = vdwg.mxu0
  %820 = vmatprep.subr.mxu0 %v390
  %821 = vmatpush1.msra.mxu0 %v389
  %822 = vmatprep.subr.mxu0 %v386
  %823 = vmatpush1.msra.mxu0 %v385
  %824 = vmatprep.subr.mxu0 %v382
  %825 = vmatpush1.msra.mxu0 %v381
  %826 = vmatprep.subr.mxu0 %v378
  %827 = vmatpush1.msra.mxu0 %v377
  %828 = vmatprep.subr.mxu0 %v374
  %829 = vmatpush1.msra.mxu0 %v373
  %830 = vmatprep.subr.mxu0 %v370
  %831 = vmatpush1.msra.mxu0 %v369
  %832 = vmatprep.subr.mxu0 %v366
  %833 = vmatpush1.msra.mxu0 %v365
  %834 = vmatprep.subr.mxu0 %v362
  %835 = vmatpush1.msra.mxu0 %v361
  %836 = vmatprep.subr.mxu0 %v358
  %837 = vmatpush1.msra.mxu0 %v357
  %838 = vmatprep.subr.mxu0 %v354
  %839 = vmatpush1.msra.mxu0 %v353
  %840 = vmatprep.subr.mxu0 %v350
  %841 = vmatpush1.msra.mxu0 %v349
  %842 = vmatprep.subr.mxu0 %v346
  %843 = vmatpush1.msra.mxu0 %v345
  %844 = vmatprep.subr.mxu0 %v342
  %845 = vmatpush1.msra.mxu0 %v341
  %846 = vmatprep.subr.mxu0 %v338
  %847 = vmatpush1.msra.mxu0 %v337
  %848 = vmatprep.subr.mxu0 %v334
  %849 = vmatpush1.msra.mxu0 %v333
  %850 = vmatprep.subr.mxu0 %v330
  %851 = vmatpush1.msra.mxu0 %v329
  %852 = vmatprep.subr.mxu0 0.0
  %853 = vmatpush2.msra.mxu0 0.0
  %854 = vmatprep.subr.mxu0 0.0
  %855 = vmatpush2.msra.mxu0 0.0
  %856 = vmatprep.subr.mxu0 0.0
  %857 = vmatpush2.msra.mxu0 0.0
  %858 = vmatprep.subr.mxu0 0.0
  %859 = vmatpush2.msra.mxu0 0.0
  %860 = vmatprep.subr.mxu0 0.0
  %861 = vmatpush2.msra.mxu0 0.0
  %862 = vmatprep.subr.mxu0 0.0
  %863 = vmatpush2.msra.mxu0 0.0
  %864 = vmatprep.subr.mxu0 0.0
  %865 = vmatpush2.msra.mxu0 0.0
  %866 = vmatprep.subr.mxu0 0.0
  %867 = vmatpush2.msra.mxu0 0.0
  %868 = vmatprep.subr.mxu0 0.0
  %869 = vmatpush2.msra.mxu0 0.0
  %870 = vmatprep.subr.mxu0 0.0
  %871 = vmatpush2.msra.mxu0 0.0
  %872 = vmatprep.subr.mxu0 0.0
  %873 = vmatpush2.msra.mxu0 0.0
  %874 = vmatprep.subr.mxu0 0.0
  %875 = vmatpush2.msra.mxu0 0.0
  %876 = vmatprep.subr.mxu0 0.0
  %877 = vmatpush2.msra.mxu0 0.0
  %878 = vmatprep.subr.mxu0 0.0
  %879 = vmatpush2.msra.mxu0 0.0
  %880 = vmatprep.subr.mxu0 0.0
  %881 = vmatpush2.msra.mxu0 0.0
  %882 = vmatprep.subr.mxu0 0.0
  %883 = vmatpush2.msra.mxu0 0.0
  %884 = vmatprep.mubr.f32.mxu0 0.0
  %885 = vmatmul.mubr.f32.gmra.mxu0 %v747
  %v886 = vpop.f32.mrf.mxu0
  %v887 = vadd.f32 0.0, %v886
  %v888 = vpop.f32.mrf.mxu0
  %v889 = vadd.f32 0.0, %v888
  %890 = vdwg.mxu0
  %v895 = vrot.slane %v816, 4
  %v896 = vrot.slane %v818, 4
  %v897 = vrot.slane %v887, 4
  %v898 = vrot.slane %v889, 4
  %v903 = vadd.f32 %v276, %v895
  %v904 = vadd.f32 %v278, %v896
  %v905 = vadd.f32 %v319, %v897
  %v906 = vadd.f32 %v321, %v898
  %v907 = vsub.f32 0.0, %v903
  %v908 = vmul.f32 %v907, 1.442695
  %v909 = vpow.pop %v908
  %v910 = vadd.f32 %v909, 1.0
  %v911 = vrcp.pop %v910
  %v912 = vmul.f32 1.0, %v911
  %v913 = vsub.f32 0.0, %v904
  %v914 = vmul.f32 %v913, 1.442695
  %v915 = vpow.pop %v914
  %v916 = vadd.f32 %v915, 1.0
  %v917 = vrcp.pop %v916
  %v918 = vmul.f32 1.0, %v917
  %v919 = vtanh.pop %v905
  %v920 = vsub.f32 0.0, %v906
  %v921 = vmul.f32 %v920, 1.442695
  %v922 = vpow.pop %v921
  %v923 = vadd.f32 %v922, 1.0
  %v924 = vrcp.pop %v923
  %v925 = vmul.f32 1.0, %v924
  %v927 = vrot.slane %v743, 6
  %v929 = vmul.f32 %v918, %v927
  %v930 = vmul.f32 %v912, %v919
  %v931 = vadd.f32 %v929, %v930
  %v932 = vtanh.pop %v931
  %v933 = vmul.f32 %v925, %v932
  %v935 = vrot.slane %v933, 4
  %937 = vmatprep.subr.mxu0 %v388
  %938 = vmatpush1.msra.mxu0 %v387
  %939 = vmatprep.subr.mxu0 %v384
  %940 = vmatpush1.msra.mxu0 %v383
  %941 = vmatprep.subr.mxu0 %v380
  %942 = vmatpush1.msra.mxu0 %v379
  %943 = vmatprep.subr.mxu0 %v376
  %944 = vmatpush1.msra.mxu0 %v375
  %945 = vmatprep.subr.mxu0 %v372
  %946 = vmatpush1.msra.mxu0 %v371
  %947 = vmatprep.subr.mxu0 %v368
  %948 = vmatpush1.msra.mxu0 %v367
  %949 = vmatprep.subr.mxu0 %v364
  %950 = vmatpush1.msra.mxu0 %v363
  %951 = vmatprep.subr.mxu0 %v360
  %952 = vmatpush1.msra.mxu0 %v359
  %953 = vmatprep.subr.mxu0 %v356
  %954 = vmatpush1.msra.mxu0 %v355
  %955 = vmatprep.subr.mxu0 %v352
  %956 = vmatpush1.msra.mxu0 %v351
  %957 = vmatprep.subr.mxu0 %v348
  %958 = vmatpush1.msra.mxu0 %v347
  %959 = vmatprep.subr.mxu0 %v344
  %960 = vmatpush1.msra.mxu0 %v343
  %961 = vmatprep.subr.mxu0 %v340
  %962 = vmatpush1.msra.mxu0 %v339
  %963 = vmatprep.subr.mxu0 %v336
  %964 = vmatpush1.msra.mxu0 %v335
  %965 = vmatprep.subr.mxu0 %v332
  %966 = vmatpush1.msra.mxu0 %v331
  %967 = vmatprep.subr.mxu0 %v328
  %968 = vmatpush1.msra.mxu0 %v327
  %969 = vmatprep.subr.mxu0 0.0
  %970 = vmatpush2.msra.mxu0 0.0
  %971 = vmatprep.subr.mxu0 0.0
  %972 = vmatpush2.msra.mxu0 0.0
  %973 = vmatprep.subr.mxu0 0.0
  %974 = vmatpush2.msra.mxu0 0.0
  %975 = vmatprep.subr.mxu0 0.0
  %976 = vmatpush2.msra.mxu0 0.0
  %977 = vmatprep.subr.mxu0 0.0
  %978 = vmatpush2.msra.mxu0 0.0
  %979 = vmatprep.subr.mxu0 0.0
  %980 = vmatpush2.msra.mxu0 0.0
  %981 = vmatprep.subr.mxu0 0.0
  %982 = vmatpush2.msra.mxu0 0.0
  %983 = vmatprep.subr.mxu0 0.0
  %984 = vmatpush2.msra.mxu0 0.0
  %985 = vmatprep.subr.mxu0 0.0
  %986 = vmatpush2.msra.mxu0 0.0
  %987 = vmatprep.subr.mxu0 0.0
  %988 = vmatpush2.msra.mxu0 0.0
  %989 = vmatprep.subr.mxu0 0.0
  %990 = vmatpush2.msra.mxu0 0.0
  %991 = vmatprep.subr.mxu0 0.0
  %992 = vmatpush2.msra.mxu0 0.0
  %993 = vmatprep.subr.mxu0 0.0
  %994 = vmatpush2.msra.mxu0 0.0
  %995 = vmatprep.subr.mxu0 0.0
  %996 = vmatpush2.msra.mxu0 0.0
  %997 = vmatprep.subr.mxu0 0.0
  %998 = vmatpush2.msra.mxu0 0.0
  %999 = vmatprep.subr.mxu0 0.0
  %1000 = vmatpush2.msra.mxu0 0.0
  %1001 = vmatprep.mubr.f32.mxu0 0.0
  %1002 = vmatmul.mubr.f32.gmra.mxu0 %v935
  %v1003 = vpop.f32.mrf.mxu0
  %v1004 = vadd.f32 0.0, %v1003
  %v1005 = vpop.f32.mrf.mxu0
  %v1006 = vadd.f32 0.0, %v1005
  %1007 = vdwg.mxu0
  %1008 = vmatprep.subr.mxu0 %v390
  %1009 = vmatpush1.msra.mxu0 %v389
  %1010 = vmatprep.subr.mxu0 %v386
  %1011 = vmatpush1.msra.mxu0 %v385
  %1012 = vmatprep.subr.mxu0 %v382
  %1013 = vmatpush1.msra.mxu0 %v381
  %1014 = vmatprep.subr.mxu0 %v378
  %1015 = vmatpush1.msra.mxu0 %v377
  %1016 = vmatprep.subr.mxu0 %v374
  %1017 = vmatpush1.msra.mxu0 %v373
  %1018 = vmatprep.subr.mxu0 %v370
  %1019 = vmatpush1.msra.mxu0 %v369
  %1020 = vmatprep.subr.mxu0 %v366
  %1021 = vmatpush1.msra.mxu0 %v365
  %1022 = vmatprep.subr.mxu0 %v362
  %1023 = vmatpush1.msra.mxu0 %v361
  %1024 = vmatprep.subr.mxu0 %v358
  %1025 = vmatpush1.msra.mxu0 %v357
  %1026 = vmatprep.subr.mxu0 %v354
  %1027 = vmatpush1.msra.mxu0 %v353
  %1028 = vmatprep.subr.mxu0 %v350
  %1029 = vmatpush1.msra.mxu0 %v349
  %1030 = vmatprep.subr.mxu0 %v346
  %1031 = vmatpush1.msra.mxu0 %v345
  %1032 = vmatprep.subr.mxu0 %v342
  %1033 = vmatpush1.msra.mxu0 %v341
  %1034 = vmatprep.subr.mxu0 %v338
  %1035 = vmatpush1.msra.mxu0 %v337
  %1036 = vmatprep.subr.mxu0 %v334
  %1037 = vmatpush1.msra.mxu0 %v333
  %1038 = vmatprep.subr.mxu0 %v330
  %1039 = vmatpush1.msra.mxu0 %v329
  %1040 = vmatprep.subr.mxu0 0.0
  %1041 = vmatpush2.msra.mxu0 0.0
  %1042 = vmatprep.subr.mxu0 0.0
  %1043 = vmatpush2.msra.mxu0 0.0
  %1044 = vmatprep.subr.mxu0 0.0
  %1045 = vmatpush2.msra.mxu0 0.0
  %1046 = vmatprep.subr.mxu0 0.0
  %1047 = vmatpush2.msra.mxu0 0.0
  %1048 = vmatprep.subr.mxu0 0.0
  %1049 = vmatpush2.msra.mxu0 0.0
  %1050 = vmatprep.subr.mxu0 0.0
  %1051 = vmatpush2.msra.mxu0 0.0
  %1052 = vmatprep.subr.mxu0 0.0
  %1053 = vmatpush2.msra.mxu0 0.0
  %1054 = vmatprep.subr.mxu0 0.0
  %1055 = vmatpush2.msra.mxu0 0.0
  %1056 = vmatprep.subr.mxu0 0.0
  %1057 = vmatpush2.msra.mxu0 0.0
  %1058 = vmatprep.subr.mxu0 0.0
  %1059 = vmatpush2.msra.mxu0 0.0
  %1060 = vmatprep.subr.mxu0 0.0
  %1061 = vmatpush2.msra.mxu0 0.0
  %1062 = vmatprep.subr.mxu0 0.0
  %1063 = vmatpush2.msra.mxu0 0.0
  %1064 = vmatprep.subr.mxu0 0.0
  %1065 = vmatpush2.msra.mxu0 0.0
  %1066 = vmatprep.subr.mxu0 0.0
  %1067 = vmatpush2.msra.mxu0 0.0
  %1068 = vmatprep.subr.mxu0 0.0
  %1069 = vmatpush2.msra.mxu0 0.0
  %1070 = vmatprep.subr.mxu0 0.0
  %1071 = vmatpush2.msra.mxu0 0.0
  %1072 = vmatprep.mubr.f32.mxu0 0.0
  %1073 = vmatmul.mubr.f32.gmra.mxu0 %v935
  %v1074 = vpop.f32.mrf.mxu0
  %v1075 = vadd.f32 0.0, %v1074
  %v1076 = vpop.f32.mrf.mxu0
  %v1077 = vadd.f32 0.0, %v1076
  %1078 = vdwg.mxu0
  %v1083 = vrot.slane %v1004, 2
  %v1084 = vrot.slane %v1006, 2
  %v1085 = vrot.slane %v1075, 2
  %v1086 = vrot.slane %v1077, 2
  %v1091 = vadd.f32 %v276, %v1083
  %v1092 = vadd.f32 %v278, %v1084
  %v1093 = vadd.f32 %v319, %v1085
  %v1094 = vadd.f32 %v321, %v1086
  %v1095 = vsub.f32 0.0, %v1091
  %v1096 = vmul.f32 %v1095, 1.442695
  %v1097 = vpow.pop %v1096
  %v1098 = vadd.f32 %v1097, 1.0
  %v1099 = vrcp.pop %v1098
  %v1100 = vmul.f32 1.0, %v1099
  %v1101 = vsub.f32 0.0, %v1092
  %v1102 = vmul.f32 %v1101, 1.442695
  %v1103 = vpow.pop %v1102
  %v1104 = vadd.f32 %v1103, 1.0
  %v1105 = vrcp.pop %v1104
  %v1106 = vmul.f32 1.0, %v1105
  %v1107 = vtanh.pop %v1093
  %v1108 = vsub.f32 0.0, %v1094
  %v1109 = vmul.f32 %v1108, 1.442695
  %v1110 = vpow.pop %v1109
  %v1111 = vadd.f32 %v1110, 1.0
  %v1112 = vrcp.pop %v1111
  %v1113 = vmul.f32 1.0, %v1112
  %v1115 = vrot.slane %v931, 6
  %v1117 = vmul.f32 %v1106, %v1115
  %v1118 = vmul.f32 %v1100, %v1107
  %v1119 = vadd.f32 %v1117, %v1118
  %v1120 = vtanh.pop %v1119
  %v1121 = vmul.f32 %v1113, %v1120
  %v1123 = vrot.slane %v1121, 6
  %1125 = vmatprep.subr.mxu0 %v388
  %1126 = vmatpush1.msra.mxu0 %v387
  %1127 = vmatprep.subr.mxu0 %v384
  %1128 = vmatpush1.msra.mxu0 %v383
  %1129 = vmatprep.subr.mxu0 %v380
  %1130 = vmatpush1.msra.mxu0 %v379
  %1131 = vmatprep.subr.mxu0 %v376
  %1132 = vmatpush1.msra.mxu0 %v375
  %1133 = vmatprep.subr.mxu0 %v372
  %1134 = vmatpush1.msra.mxu0 %v371
  %1135 = vmatprep.subr.mxu0 %v368
  %1136 = vmatpush1.msra.mxu0 %v367
  %1137 = vmatprep.subr.mxu0 %v364
  %1138 = vmatpush1.msra.mxu0 %v363
  %1139 = vmatprep.subr.mxu0 %v360
  %1140 = vmatpush1.msra.mxu0 %v359
  %1141 = vmatprep.subr.mxu0 %v356
  %1142 = vmatpush1.msra.mxu0 %v355
  %1143 = vmatprep.subr.mxu0 %v352
  %1144 = vmatpush1.msra.mxu0 %v351
  %1145 = vmatprep.subr.mxu0 %v348
  %1146 = vmatpush1.msra.mxu0 %v347
  %1147 = vmatprep.subr.mxu0 %v344
  %1148 = vmatpush1.msra.mxu0 %v343
  %1149 = vmatprep.subr.mxu0 %v340
  %1150 = vmatpush1.msra.mxu0 %v339
  %1151 = vmatprep.subr.mxu0 %v336
  %1152 = vmatpush1.msra.mxu0 %v335
  %1153 = vmatprep.subr.mxu0 %v332
  %1154 = vmatpush1.msra.mxu0 %v331
  %1155 = vmatprep.subr.mxu0 %v328
  %1156 = vmatpush1.msra.mxu0 %v327
  %1157 = vmatprep.subr.mxu0 0.0
  %1158 = vmatpush2.msra.mxu0 0.0
  %1159 = vmatprep.subr.mxu0 0.0
  %1160 = vmatpush2.msra.mxu0 0.0
  %1161 = vmatprep.subr.mxu0 0.0
  %1162 = vmatpush2.msra.mxu0 0.0
  %1163 = vmatprep.subr.mxu0 0.0
  %1164 = vmatpush2.msra.mxu0 0.0
  %1165 = vmatprep.subr.mxu0 0.0
  %1166 = vmatpush2.msra.mxu0 0.0
  %1167 = vmatprep.subr.mxu0 0.0
  %1168 = vmatpush2.msra.mxu0 0.0
  %1169 = vmatprep.subr.mxu0 0.0
  %1170 = vmatpush2.msra.mxu0 0.0
  %1171 = vmatprep.subr.mxu0 0.0
  %1172 = vmatpush2.msra.mxu0 0.0
  %1173 = vmatprep.subr.mxu0 0.0
  %1174 = vmatpush2.msra.mxu0 0.0
  %1175 = vmatprep.subr.mxu0 0.0
  %1176 = vmatpush2.msra.mxu0 0.0
  %1177 = vmatprep.subr.mxu0 0.0
  %1178 = vmatpush2.msra.mxu0 0.0
  %1179 = vmatprep.subr.mxu0 0.0
  %1180 = vmatpush2.msra.mxu0 0.0
  %1181 = vmatprep.subr.mxu0 0.0
  %1182 = vmatpush2.msra.mxu0 0.0
  %1183 = vmatprep.subr.mxu0 0.0
  %1184 = vmatpush2.msra.mxu0 0.0
  %1185 = vmatprep.subr.mxu0 0.0
  %1186 = vmatpush2.msra.mxu0 0.0
  %1187 = vmatprep.subr.mxu0 0.0
  %1188 = vmatpush2.msra.mxu0 0.0
  %1189 = vmatprep.mubr.f32.mxu0 0.0
  %1190 = vmatmul.mubr.f32.gmra.mxu0 %v1123
  %v1191 = vpop.f32.mrf.mxu0
  %v1192 = vadd.f32 0.0, %v1191
  %v1193 = vpop.f32.mrf.mxu0
  %v1194 = vadd.f32 0.0, %v1193
  %1195 = vdwg.mxu0
  %1196 = vmatprep.subr.mxu0 %v390
  %1197 = vmatpush1.msra.mxu0 %v389
  %1198 = vmatprep.subr.mxu0 %v386
  %1199 = vmatpush1.msra.mxu0 %v385
  %1200 = vmatprep.subr.mxu0 %v382
  %1201 = vmatpush1.msra.mxu0 %v381
  %1202 = vmatprep.subr.mxu0 %v378
  %1203 = vmatpush1.msra.mxu0 %v377
  %1204 = vmatprep.subr.mxu0 %v374
  %1205 = vmatpush1.msra.mxu0 %v373
  %1206 = vmatprep.subr.mxu0 %v370
  %1207 = vmatpush1.msra.mxu0 %v369
  %1208 = vmatprep.subr.mxu0 %v366
  %1209 = vmatpush1.msra.mxu0 %v365
  %1210 = vmatprep.subr.mxu0 %v362
  %1211 = vmatpush1.msra.mxu0 %v361
  %1212 = vmatprep.subr.mxu0 %v358
  %1213 = vmatpush1.msra.mxu0 %v357
  %1214 = vmatprep.subr.mxu0 %v354
  %1215 = vmatpush1.msra.mxu0 %v353
  %1216 = vmatprep.subr.mxu0 %v350
  %1217 = vmatpush1.msra.mxu0 %v349
  %1218 = vmatprep.subr.mxu0 %v346
  %1219 = vmatpush1.msra.mxu0 %v345
  %1220 = vmatprep.subr.mxu0 %v342
  %1221 = vmatpush1.msra.mxu0 %v341
  %1222 = vmatprep.subr.mxu0 %v338
  %1223 = vmatpush1.msra.mxu0 %v337
  %1224 = vmatprep.subr.mxu0 %v334
  %1225 = vmatpush1.msra.mxu0 %v333
  %1226 = vmatprep.subr.mxu0 %v330
  %1227 = vmatpush1.msra.mxu0 %v329
  %1228 = vmatprep.subr.mxu0 0.0
  %1229 = vmatpush2.msra.mxu0 0.0
  %1230 = vmatprep.subr.mxu0 0.0
  %1231 = vmatpush2.msra.mxu0 0.0
  %1232 = vmatprep.subr.mxu0 0.0
  %1233 = vmatpush2.msra.mxu0 0.0
  %1234 = vmatprep.subr.mxu0 0.0
  %1235 = vmatpush2.msra.mxu0 0.0
  %1236 = vmatprep.subr.mxu0 0.0
  %1237 = vmatpush2.msra.mxu0 0.0
  %1238 = vmatprep.subr.mxu0 0.0
  %1239 = vmatpush2.msra.mxu0 0.0
  %1240 = vmatprep.subr.mxu0 0.0
  %1241 = vmatpush2.msra.mxu0 0.0
  %1242 = vmatprep.subr.mxu0 0.0
  %1243 = vmatpush2.msra.mxu0 0.0
  %1244 = vmatprep.subr.mxu0 0.0
  %1245 = vmatpush2.msra.mxu0 0.0
  %1246 = vmatprep.subr.mxu0 0.0
  %1247 = vmatpush2.msra.mxu0 0.0
  %1248 = vmatprep.subr.mxu0 0.0
  %1249 = vmatpush2.msra.mxu0 0.0
  %1250 = vmatprep.subr.mxu0 0.0
  %1251 = vmatpush2.msra.mxu0 0.0
  %1252 = vmatprep.subr.mxu0 0.0
  %1253 = vmatpush2.msra.mxu0 0.0
  %1254 = vmatprep.subr.mxu0 0.0
  %1255 = vmatpush2.msra.mxu0 0.0
  %1256 = vmatprep.subr.mxu0 0.0
  %1257 = vmatpush2.msra.mxu0 0.0
  %1258 = vmatprep.subr.mxu0 0.0
  %1259 = vmatpush2.msra.mxu0 0.0
  %1260 = vmatprep.mubr.f32.mxu0 0.0
  %1261 = vmatmul.mubr.f32.gmra.mxu0 %v1123
  %v1262 = vpop.f32.mrf.mxu0
  %v1263 = vadd.f32 0.0, %v1262
  %v1264 = vpop.f32.mrf.mxu0
  %v1265 = vadd.f32 0.0, %v1264
  %1266 = vdwg.mxu0
  %v1267 = vadd.f32 %v280, %v1192
  %v1268 = vadd.f32 %v282, %v1194
  %v1269 = vadd.f32 %v323, %v1263
  %v1270 = vadd.f32 %v325, %v1265
  %v1271 = vsub.f32 0.0, %v1267
  %v1272 = vmul.f32 %v1271, 1.442695
  %v1273 = vpow.pop %v1272
  %v1274 = vadd.f32 %v1273, 1.0
  %v1275 = vrcp.pop %v1274
  %v1276 = vmul.f32 1.0, %v1275
  %v1277 = vsub.f32 0.0, %v1268
  %v1278 = vmul.f32 %v1277, 1.442695
  %v1279 = vpow.pop %v1278
  %v1280 = vadd.f32 %v1279, 1.0
  %v1281 = vrcp.pop %v1280
  %v1282 = vmul.f32 1.0, %v1281
  %v1283 = vtanh.pop %v1269
  %v1284 = vsub.f32 0.0, %v1270
  %v1285 = vmul.f32 %v1284, 1.442695
  %v1286 = vpow.pop %v1285
  %v1287 = vadd.f32 %v1286, 1.0
  %v1288 = vrcp.pop %v1287
  %v1289 = vmul.f32 1.0, %v1288
  %v1291 = vrot.slane %v1119, 6
  %v1293 = vmul.f32 %v1282, %v1291
  %v1294 = vmul.f32 %v1276, %v1283
  %v1295 = vadd.f32 %v1293, %v1294
  %v1296 = vtanh.pop %v1295
  %v1297 = vmul.f32 %v1289, %v1296
  %1298 = vmatprep.subr.mxu0 %v388
  %1299 = vmatpush1.msra.mxu0 %v387
  %1300 = vmatprep.subr.mxu0 %v384
  %1301 = vmatpush1.msra.mxu0 %v383
  %1302 = vmatprep.subr.mxu0 %v380
  %1303 = vmatpush1.msra.mxu0 %v379
  %1304 = vmatprep.subr.mxu0 %v376
  %1305 = vmatpush1.msra.mxu0 %v375
  %1306 = vmatprep.subr.mxu0 %v372
  %1307 = vmatpush1.msra.mxu0 %v371
  %1308 = vmatprep.subr.mxu0 %v368
  %1309 = vmatpush1.msra.mxu0 %v367
  %1310 = vmatprep.subr.mxu0 %v364
  %1311 = vmatpush1.msra.mxu0 %v363
  %1312 = vmatprep.subr.mxu0 %v360
  %1313 = vmatpush1.msra.mxu0 %v359
  %1314 = vmatprep.subr.mxu0 %v356
  %1315 = vmatpush1.msra.mxu0 %v355
  %1316 = vmatprep.subr.mxu0 %v352
  %1317 = vmatpush1.msra.mxu0 %v351
  %1318 = vmatprep.subr.mxu0 %v348
  %1319 = vmatpush1.msra.mxu0 %v347
  %1320 = vmatprep.subr.mxu0 %v344
  %1321 = vmatpush1.msra.mxu0 %v343
  %1322 = vmatprep.subr.mxu0 %v340
  %1323 = vmatpush1.msra.mxu0 %v339
  %1324 = vmatprep.subr.mxu0 %v336
  %1325 = vmatpush1.msra.mxu0 %v335
  %1326 = vmatprep.subr.mxu0 %v332
  %1327 = vmatpush1.msra.mxu0 %v331
  %1328 = vmatprep.subr.mxu0 %v328
  %1329 = vmatpush1.msra.mxu0 %v327
  %1330 = vmatprep.subr.mxu0 0.0
  %1331 = vmatpush2.msra.mxu0 0.0
  %1332 = vmatprep.subr.mxu0 0.0
  %1333 = vmatpush2.msra.mxu0 0.0
  %1334 = vmatprep.subr.mxu0 0.0
  %1335 = vmatpush2.msra.mxu0 0.0
  %1336 = vmatprep.subr.mxu0 0.0
  %1337 = vmatpush2.msra.mxu0 0.0
  %1338 = vmatprep.subr.mxu0 0.0
  %1339 = vmatpush2.msra.mxu0 0.0
  %1340 = vmatprep.subr.mxu0 0.0
  %1341 = vmatpush2.msra.mxu0 0.0
  %1342 = vmatprep.subr.mxu0 0.0
  %1343 = vmatpush2.msra.mxu0 0.0
  %1344 = vmatprep.subr.mxu0 0.0
  %1345 = vmatpush2.msra.mxu0 0.0
  %1346 = vmatprep.subr.mxu0 0.0
  %1347 = vmatpush2.msra.mxu0 0.0
  %1348 = vmatprep.subr.mxu0 0.0
  %1349 = vmatpush2.msra.mxu0 0.0
  %1350 = vmatprep.subr.mxu0 0.0
  %1351 = vmatpush2.msra.mxu0 0.0
  %1352 = vmatprep.subr.mxu0 0.0
  %1353 = vmatpush2.msra.mxu0 0.0
  %1354 = vmatprep.subr.mxu0 0.0
  %1355 = vmatpush2.msra.mxu0 0.0
  %1356 = vmatprep.subr.mxu0 0.0
  %1357 = vmatpush2.msra.mxu0 0.0
  %1358 = vmatprep.subr.mxu0 0.0
  %1359 = vmatpush2.msra.mxu0 0.0
  %1360 = vmatprep.subr.mxu0 0.0
  %1361 = vmatpush2.msra.mxu0 0.0
  %1362 = vmatprep.mubr.f32.mxu0 0.0
  %1363 = vmatmul.mubr.f32.gmra.mxu0 %v1297
  %v1364 = vpop.f32.mrf.mxu0
  %v1365 = vadd.f32 0.0, %v1364
  %v1366 = vpop.f32.mrf.mxu0
  %v1367 = vadd.f32 0.0, %v1366
  %1368 = vdwg.mxu0
  %1369 = vmatprep.subr.mxu0 %v390
  %1370 = vmatpush1.msra.mxu0 %v389
  %1371 = vmatprep.subr.mxu0 %v386
  %1372 = vmatpush1.msra.mxu0 %v385
  %1373 = vmatprep.subr.mxu0 %v382
  %1374 = vmatpush1.msra.mxu0 %v381
  %1375 = vmatprep.subr.mxu0 %v378
  %1376 = vmatpush1.msra.mxu0 %v377
  %1377 = vmatprep.subr.mxu0 %v374
  %1378 = vmatpush1.msra.mxu0 %v373
  %1379 = vmatprep.subr.mxu0 %v370
  %1380 = vmatpush1.msra.mxu0 %v369
  %1381 = vmatprep.subr.mxu0 %v366
  %1382 = vmatpush1.msra.mxu0 %v365
  %1383 = vmatprep.subr.mxu0 %v362
  %1384 = vmatpush1.msra.mxu0 %v361
  %1385 = vmatprep.subr.mxu0 %v358
  %1386 = vmatpush1.msra.mxu0 %v357
  %1387 = vmatprep.subr.mxu0 %v354
  %1388 = vmatpush1.msra.mxu0 %v353
  %1389 = vmatprep.subr.mxu0 %v350
  %1390 = vmatpush1.msra.mxu0 %v349
  %1391 = vmatprep.subr.mxu0 %v346
  %1392 = vmatpush1.msra.mxu0 %v345
  %1393 = vmatprep.subr.mxu0 %v342
  %1394 = vmatpush1.msra.mxu0 %v341
  %1395 = vmatprep.subr.mxu0 %v338
  %1396 = vmatpush1.msra.mxu0 %v337
  %1397 = vmatprep.subr.mxu0 %v334
  %1398 = vmatpush1.msra.mxu0 %v333
  %1399 = vmatprep.subr.mxu0 %v330
  %1400 = vmatpush1.msra.mxu0 %v329
  %1401 = vmatprep.subr.mxu0 0.0
  %1402 = vmatpush2.msra.mxu0 0.0
  %1403 = vmatprep.subr.mxu0 0.0
  %1404 = vmatpush2.msra.mxu0 0.0
  %1405 = vmatprep.subr.mxu0 0.0
  %1406 = vmatpush2.msra.mxu0 0.0
  %1407 = vmatprep.subr.mxu0 0.0
  %1408 = vmatpush2.msra.mxu0 0.0
  %1409 = vmatprep.subr.mxu0 0.0
  %1410 = vmatpush2.msra.mxu0 0.0
  %1411 = vmatprep.subr.mxu0 0.0
  %1412 = vmatpush2.msra.mxu0 0.0
  %1413 = vmatprep.subr.mxu0 0.0
  %1414 = vmatpush2.msra.mxu0 0.0
  %1415 = vmatprep.subr.mxu0 0.0
  %1416 = vmatpush2.msra.mxu0 0.0
  %1417 = vmatprep.subr.mxu0 0.0
  %1418 = vmatpush2.msra.mxu0 0.0
  %1419 = vmatprep.subr.mxu0 0.0
  %1420 = vmatpush2.msra.mxu0 0.0
  %1421 = vmatprep.subr.mxu0 0.0
  %1422 = vmatpush2.msra.mxu0 0.0
  %1423 = vmatprep.subr.mxu0 0.0
  %1424 = vmatpush2.msra.mxu0 0.0
  %1425 = vmatprep.subr.mxu0 0.0
  %1426 = vmatpush2.msra.mxu0 0.0
  %1427 = vmatprep.subr.mxu0 0.0
  %1428 = vmatpush2.msra.mxu0 0.0
  %1429 = vmatprep.subr.mxu0 0.0
  %1430 = vmatpush2.msra.mxu0 0.0
  %1431 = vmatprep.subr.mxu0 0.0
  %1432 = vmatpush2.msra.mxu0 0.0
  %1433 = vmatprep.mubr.f32.mxu0 0.0
  %1434 = vmatmul.mubr.f32.gmra.mxu0 %v1297
  %v1435 = vpop.f32.mrf.mxu0
  %v1436 = vadd.f32 0.0, %v1435
  %v1437 = vpop.f32.mrf.mxu0
  %v1438 = vadd.f32 0.0, %v1437
  %1439 = vdwg.mxu0
  %v1444 = vrot.slane %v1365, 6
  %v1445 = vrot.slane %v1367, 6
  %v1446 = vrot.slane %v1436, 6
  %v1447 = vrot.slane %v1438, 6
  %v1452 = vadd.f32 %v280, %v1444
  %v1453 = vadd.f32 %v282, %v1445
  %v1454 = vadd.f32 %v323, %v1446
  %v1455 = vadd.f32 %v325, %v1447
  %v1456 = vsub.f32 0.0, %v1452
  %v1457 = vmul.f32 %v1456, 1.442695
  %v1458 = vpow.pop %v1457
  %v1459 = vadd.f32 %v1458, 1.0
  %v1460 = vrcp.pop %v1459
  %v1461 = vmul.f32 1.0, %v1460
  %v1462 = vsub.f32 0.0, %v1453
  %v1463 = vmul.f32 %v1462, 1.442695
  %v1464 = vpow.pop %v1463
  %v1465 = vadd.f32 %v1464, 1.0
  %v1466 = vrcp.pop %v1465
  %v1467 = vmul.f32 1.0, %v1466
  %v1468 = vtanh.pop %v1454
  %v1469 = vsub.f32 0.0, %v1455
  %v1470 = vmul.f32 %v1469, 1.442695
  %v1471 = vpow.pop %v1470
  %v1472 = vadd.f32 %v1471, 1.0
  %v1473 = vrcp.pop %v1472
  %v1474 = vmul.f32 1.0, %v1473
  %v1476 = vrot.slane %v1295, 6
  %v1478 = vmul.f32 %v1467, %v1476
  %v1479 = vmul.f32 %v1461, %v1468
  %v1480 = vadd.f32 %v1478, %v1479
  %v1481 = vtanh.pop %v1480
  %v1482 = vmul.f32 %v1474, %v1481
  %v1484 = vrot.slane %v1482, 2
  %1486 = vmatprep.subr.mxu0 %v388
  %1487 = vmatpush1.msra.mxu0 %v387
  %1488 = vmatprep.subr.mxu0 %v384
  %1489 = vmatpush1.msra.mxu0 %v383
  %1490 = vmatprep.subr.mxu0 %v380
  %1491 = vmatpush1.msra.mxu0 %v379
  %1492 = vmatprep.subr.mxu0 %v376
  %1493 = vmatpush1.msra.mxu0 %v375
  %1494 = vmatprep.subr.mxu0 %v372
  %1495 = vmatpush1.msra.mxu0 %v371
  %1496 = vmatprep.subr.mxu0 %v368
  %1497 = vmatpush1.msra.mxu0 %v367
  %1498 = vmatprep.subr.mxu0 %v364
  %1499 = vmatpush1.msra.mxu0 %v363
  %1500 = vmatprep.subr.mxu0 %v360
  %1501 = vmatpush1.msra.mxu0 %v359
  %1502 = vmatprep.subr.mxu0 %v356
  %1503 = vmatpush1.msra.mxu0 %v355
  %1504 = vmatprep.subr.mxu0 %v352
  %1505 = vmatpush1.msra.mxu0 %v351
  %1506 = vmatprep.subr.mxu0 %v348
  %1507 = vmatpush1.msra.mxu0 %v347
  %1508 = vmatprep.subr.mxu0 %v344
  %1509 = vmatpush1.msra.mxu0 %v343
  %1510 = vmatprep.subr.mxu0 %v340
  %1511 = vmatpush1.msra.mxu0 %v339
  %1512 = vmatprep.subr.mxu0 %v336
  %1513 = vmatpush1.msra.mxu0 %v335
  %1514 = vmatprep.subr.mxu0 %v332
  %1515 = vmatpush1.msra.mxu0 %v331
  %1516 = vmatprep.subr.mxu0 %v328
  %1517 = vmatpush1.msra.mxu0 %v327
  %1518 = vmatprep.subr.mxu0 0.0
  %1519 = vmatpush2.msra.mxu0 0.0
  %1520 = vmatprep.subr.mxu0 0.0
  %1521 = vmatpush2.msra.mxu0 0.0
  %1522 = vmatprep.subr.mxu0 0.0
  %1523 = vmatpush2.msra.mxu0 0.0
  %1524 = vmatprep.subr.mxu0 0.0
  %1525 = vmatpush2.msra.mxu0 0.0
  %1526 = vmatprep.subr.mxu0 0.0
  %1527 = vmatpush2.msra.mxu0 0.0
  %1528 = vmatprep.subr.mxu0 0.0
  %1529 = vmatpush2.msra.mxu0 0.0
  %1530 = vmatprep.subr.mxu0 0.0
  %1531 = vmatpush2.msra.mxu0 0.0
  %1532 = vmatprep.subr.mxu0 0.0
  %1533 = vmatpush2.msra.mxu0 0.0
  %1534 = vmatprep.subr.mxu0 0.0
  %1535 = vmatpush2.msra.mxu0 0.0
  %1536 = vmatprep.subr.mxu0 0.0
  %1537 = vmatpush2.msra.mxu0 0.0
  %1538 = vmatprep.subr.mxu0 0.0
  %1539 = vmatpush2.msra.mxu0 0.0
  %1540 = vmatprep.subr.mxu0 0.0
  %1541 = vmatpush2.msra.mxu0 0.0
  %1542 = vmatprep.subr.mxu0 0.0
  %1543 = vmatpush2.msra.mxu0 0.0
  %1544 = vmatprep.subr.mxu0 0.0
  %1545 = vmatpush2.msra.mxu0 0.0
  %1546 = vmatprep.subr.mxu0 0.0
  %1547 = vmatpush2.msra.mxu0 0.0
  %1548 = vmatprep.subr.mxu0 0.0
  %1549 = vmatpush2.msra.mxu0 0.0
  %1550 = vmatprep.mubr.f32.mxu0 0.0
  %1551 = vmatmul.mubr.f32.gmra.mxu0 %v1484
  %v1552 = vpop.f32.mrf.mxu0
  %v1553 = vadd.f32 0.0, %v1552
  %v1554 = vpop.f32.mrf.mxu0
  %v1555 = vadd.f32 0.0, %v1554
  %1556 = vdwg.mxu0
  %1557 = vmatprep.subr.mxu0 %v390
  %1558 = vmatpush1.msra.mxu0 %v389
  %1559 = vmatprep.subr.mxu0 %v386
  %1560 = vmatpush1.msra.mxu0 %v385
  %1561 = vmatprep.subr.mxu0 %v382
  %1562 = vmatpush1.msra.mxu0 %v381
  %1563 = vmatprep.subr.mxu0 %v378
  %1564 = vmatpush1.msra.mxu0 %v377
  %1565 = vmatprep.subr.mxu0 %v374
  %1566 = vmatpush1.msra.mxu0 %v373
  %1567 = vmatprep.subr.mxu0 %v370
  %1568 = vmatpush1.msra.mxu0 %v369
  %1569 = vmatprep.subr.mxu0 %v366
  %1570 = vmatpush1.msra.mxu0 %v365
  %1571 = vmatprep.subr.mxu0 %v362
  %1572 = vmatpush1.msra.mxu0 %v361
  %1573 = vmatprep.subr.mxu0 %v358
  %1574 = vmatpush1.msra.mxu0 %v357
  %1575 = vmatprep.subr.mxu0 %v354
  %1576 = vmatpush1.msra.mxu0 %v353
  %1577 = vmatprep.subr.mxu0 %v350
  %1578 = vmatpush1.msra.mxu0 %v349
  %1579 = vmatprep.subr.mxu0 %v346
  %1580 = vmatpush1.msra.mxu0 %v345
  %1581 = vmatprep.subr.mxu0 %v342
  %1582 = vmatpush1.msra.mxu0 %v341
  %1583 = vmatprep.subr.mxu0 %v338
  %1584 = vmatpush1.msra.mxu0 %v337
  %1585 = vmatprep.subr.mxu0 %v334
  %1586 = vmatpush1.msra.mxu0 %v333
  %1587 = vmatprep.subr.mxu0 %v330
  %1588 = vmatpush1.msra.mxu0 %v329
  %1589 = vmatprep.subr.mxu0 0.0
  %1590 = vmatpush2.msra.mxu0 0.0
  %1591 = vmatprep.subr.mxu0 0.0
  %1592 = vmatpush2.msra.mxu0 0.0
  %1593 = vmatprep.subr.mxu0 0.0
  %1594 = vmatpush2.msra.mxu0 0.0
  %1595 = vmatprep.subr.mxu0 0.0
  %1596 = vmatpush2.msra.mxu0 0.0
  %1597 = vmatprep.subr.mxu0 0.0
  %1598 = vmatpush2.msra.mxu0 0.0
  %1599 = vmatprep.subr.mxu0 0.0
  %1600 = vmatpush2.msra.mxu0 0.0
  %1601 = vmatprep.subr.mxu0 0.0
  %1602 = vmatpush2.msra.mxu0 0.0
  %1603 = vmatprep.subr.mxu0 0.0
  %1604 = vmatpush2.msra.mxu0 0.0
  %1605 = vmatprep.subr.mxu0 0.0
  %1606 = vmatpush2.msra.mxu0 0.0
  %1607 = vmatprep.subr.mxu0 0.0
  %1608 = vmatpush2.msra.mxu0 0.0
  %1609 = vmatprep.subr.mxu0 0.0
  %1610 = vmatpush2.msra.mxu0 0.0
  %1611 = vmatprep.subr.mxu0 0.0
  %1612 = vmatpush2.msra.mxu0 0.0
  %1613 = vmatprep.subr.mxu0 0.0
  %1614 = vmatpush2.msra.mxu0 0.0
  %1615 = vmatprep.subr.mxu0 0.0
  %1616 = vmatpush2.msra.mxu0 0.0
  %1617 = vmatprep.subr.mxu0 0.0
  %1618 = vmatpush2.msra.mxu0 0.0
  %1619 = vmatprep.subr.mxu0 0.0
  %1620 = vmatpush2.msra.mxu0 0.0
  %1621 = vmatprep.mubr.f32.mxu0 0.0
  %1622 = vmatmul.mubr.f32.gmra.mxu0 %v1484
  %v1623 = vpop.f32.mrf.mxu0
  %v1624 = vadd.f32 0.0, %v1623
  %v1625 = vpop.f32.mrf.mxu0
  %v1626 = vadd.f32 0.0, %v1625
  %1627 = vdwg.mxu0
  %v1632 = vrot.slane %v1553, 4
  %v1633 = vrot.slane %v1555, 4
  %v1634 = vrot.slane %v1624, 4
  %v1635 = vrot.slane %v1626, 4
  %v1640 = vadd.f32 %v280, %v1632
  %v1641 = vadd.f32 %v282, %v1633
  %v1642 = vadd.f32 %v323, %v1634
  %v1643 = vadd.f32 %v325, %v1635
  %v1644 = vsub.f32 0.0, %v1640
  %v1645 = vmul.f32 %v1644, 1.442695
  %v1646 = vpow.pop %v1645
  %v1647 = vadd.f32 %v1646, 1.0
  %v1648 = vrcp.pop %v1647
  %v1649 = vmul.f32 1.0, %v1648
  %v1650 = vsub.f32 0.0, %v1641
  %v1651 = vmul.f32 %v1650, 1.442695
  %v1652 = vpow.pop %v1651
  %v1653 = vadd.f32 %v1652, 1.0
  %v1654 = vrcp.pop %v1653
  %v1655 = vmul.f32 1.0, %v1654
  %v1656 = vtanh.pop %v1642
  %v1657 = vsub.f32 0.0, %v1643
  %v1658 = vmul.f32 %v1657, 1.442695
  %v1659 = vpow.pop %v1658
  %v1660 = vadd.f32 %v1659, 1.0
  %v1661 = vrcp.pop %v1660
  %v1662 = vmul.f32 1.0, %v1661
  %v1664 = vrot.slane %v1480, 6
  %v1666 = vmul.f32 %v1655, %v1664
  %v1667 = vmul.f32 %v1649, %v1656
  %v1668 = vadd.f32 %v1666, %v1667
  %v1669 = vtanh.pop %v1668
  %v1670 = vmul.f32 %v1662, %v1669
  %v1672 = vrot.slane %v1670, 4
  %1674 = vmatprep.subr.mxu0 %v388
  %1675 = vmatpush1.msra.mxu0 %v387
  %1676 = vmatprep.subr.mxu0 %v384
  %1677 = vmatpush1.msra.mxu0 %v383
  %1678 = vmatprep.subr.mxu0 %v380
  %1679 = vmatpush1.msra.mxu0 %v379
  %1680 = vmatprep.subr.mxu0 %v376
  %1681 = vmatpush1.msra.mxu0 %v375
  %1682 = vmatprep.subr.mxu0 %v372
  %1683 = vmatpush1.msra.mxu0 %v371
  %1684 = vmatprep.subr.mxu0 %v368
  %1685 = vmatpush1.msra.mxu0 %v367
  %1686 = vmatprep.subr.mxu0 %v364
  %1687 = vmatpush1.msra.mxu0 %v363
  %1688 = vmatprep.subr.mxu0 %v360
  %1689 = vmatpush1.msra.mxu0 %v359
  %1690 = vmatprep.subr.mxu0 %v356
  %1691 = vmatpush1.msra.mxu0 %v355
  %1692 = vmatprep.subr.mxu0 %v352
  %1693 = vmatpush1.msra.mxu0 %v351
  %1694 = vmatprep.subr.mxu0 %v348
  %1695 = vmatpush1.msra.mxu0 %v347
  %1696 = vmatprep.subr.mxu0 %v344
  %1697 = vmatpush1.msra.mxu0 %v343
  %1698 = vmatprep.subr.mxu0 %v340
  %1699 = vmatpush1.msra.mxu0 %v339
  %1700 = vmatprep.subr.mxu0 %v336
  %1701 = vmatpush1.msra.mxu0 %v335
  %1702 = vmatprep.subr.mxu0 %v332
  %1703 = vmatpush1.msra.mxu0 %v331
  %1704 = vmatprep.subr.mxu0 %v328
  %1705 = vmatpush1.msra.mxu0 %v327
  %1706 = vmatprep.subr.mxu0 0.0
  %1707 = vmatpush2.msra.mxu0 0.0
  %1708 = vmatprep.subr.mxu0 0.0
  %1709 = vmatpush2.msra.mxu0 0.0
  %1710 = vmatprep.subr.mxu0 0.0
  %1711 = vmatpush2.msra.mxu0 0.0
  %1712 = vmatprep.subr.mxu0 0.0
  %1713 = vmatpush2.msra.mxu0 0.0
  %1714 = vmatprep.subr.mxu0 0.0
  %1715 = vmatpush2.msra.mxu0 0.0
  %1716 = vmatprep.subr.mxu0 0.0
  %1717 = vmatpush2.msra.mxu0 0.0
  %1718 = vmatprep.subr.mxu0 0.0
  %1719 = vmatpush2.msra.mxu0 0.0
  %1720 = vmatprep.subr.mxu0 0.0
  %1721 = vmatpush2.msra.mxu0 0.0
  %1722 = vmatprep.subr.mxu0 0.0
  %1723 = vmatpush2.msra.mxu0 0.0
  %1724 = vmatprep.subr.mxu0 0.0
  %1725 = vmatpush2.msra.mxu0 0.0
  %1726 = vmatprep.subr.mxu0 0.0
  %1727 = vmatpush2.msra.mxu0 0.0
  %1728 = vmatprep.subr.mxu0 0.0
  %1729 = vmatpush2.msra.mxu0 0.0
  %1730 = vmatprep.subr.mxu0 0.0
  %1731 = vmatpush2.msra.mxu0 0.0
  %1732 = vmatprep.subr.mxu0 0.0
  %1733 = vmatpush2.msra.mxu0 0.0
  %1734 = vmatprep.subr.mxu0 0.0
  %1735 = vmatpush2.msra.mxu0 0.0
  %1736 = vmatprep.subr.mxu0 0.0
  %1737 = vmatpush2.msra.mxu0 0.0
  %1738 = vmatprep.mubr.f32.mxu0 0.0
  %1739 = vmatmul.mubr.f32.gmra.mxu0 %v1672
  %v1740 = vpop.f32.mrf.mxu0
  %v1741 = vadd.f32 0.0, %v1740
  %v1742 = vpop.f32.mrf.mxu0
  %v1743 = vadd.f32 0.0, %v1742
  %1744 = vdwg.mxu0
  %1745 = vmatprep.subr.mxu0 %v390
  %1746 = vmatpush1.msra.mxu0 %v389
  %1747 = vmatprep.subr.mxu0 %v386
  %1748 = vmatpush1.msra.mxu0 %v385
  %1749 = vmatprep.subr.mxu0 %v382
  %1750 = vmatpush1.msra.mxu0 %v381
  %1751 = vmatprep.subr.mxu0 %v378
  %1752 = vmatpush1.msra.mxu0 %v377
  %1753 = vmatprep.subr.mxu0 %v374
  %1754 = vmatpush1.msra.mxu0 %v373
  %1755 = vmatprep.subr.mxu0 %v370
  %1756 = vmatpush1.msra.mxu0 %v369
  %1757 = vmatprep.subr.mxu0 %v366
  %1758 = vmatpush1.msra.mxu0 %v365
  %1759 = vmatprep.subr.mxu0 %v362
  %1760 = vmatpush1.msra.mxu0 %v361
  %1761 = vmatprep.subr.mxu0 %v358
  %1762 = vmatpush1.msra.mxu0 %v357
  %1763 = vmatprep.subr.mxu0 %v354
  %1764 = vmatpush1.msra.mxu0 %v353
  %1765 = vmatprep.subr.mxu0 %v350
  %1766 = vmatpush1.msra.mxu0 %v349
  %1767 = vmatprep.subr.mxu0 %v346
  %1768 = vmatpush1.msra.mxu0 %v345
  %1769 = vmatprep.subr.mxu0 %v342
  %1770 = vmatpush1.msra.mxu0 %v341
  %1771 = vmatprep.subr.mxu0 %v338
  %1772 = vmatpush1.msra.mxu0 %v337
  %1773 = vmatprep.subr.mxu0 %v334
  %1774 = vmatpush1.msra.mxu0 %v333
  %1775 = vmatprep.subr.mxu0 %v330
  %1776 = vmatpush1.msra.mxu0 %v329
  %1777 = vmatprep.subr.mxu0 0.0
  %1778 = vmatpush2.msra.mxu0 0.0
  %1779 = vmatprep.subr.mxu0 0.0
  %1780 = vmatpush2.msra.mxu0 0.0
  %1781 = vmatprep.subr.mxu0 0.0
  %1782 = vmatpush2.msra.mxu0 0.0
  %1783 = vmatprep.subr.mxu0 0.0
  %1784 = vmatpush2.msra.mxu0 0.0
  %1785 = vmatprep.subr.mxu0 0.0
  %1786 = vmatpush2.msra.mxu0 0.0
  %1787 = vmatprep.subr.mxu0 0.0
  %1788 = vmatpush2.msra.mxu0 0.0
  %1789 = vmatprep.subr.mxu0 0.0
  %1790 = vmatpush2.msra.mxu0 0.0
  %1791 = vmatprep.subr.mxu0 0.0
  %1792 = vmatpush2.msra.mxu0 0.0
  %1793 = vmatprep.subr.mxu0 0.0
  %1794 = vmatpush2.msra.mxu0 0.0
  %1795 = vmatprep.subr.mxu0 0.0
  %1796 = vmatpush2.msra.mxu0 0.0
  %1797 = vmatprep.subr.mxu0 0.0
  %1798 = vmatpush2.msra.mxu0 0.0
  %1799 = vmatprep.subr.mxu0 0.0
  %1800 = vmatpush2.msra.mxu0 0.0
  %1801 = vmatprep.subr.mxu0 0.0
  %1802 = vmatpush2.msra.mxu0 0.0
  %1803 = vmatprep.subr.mxu0 0.0
  %1804 = vmatpush2.msra.mxu0 0.0
  %1805 = vmatprep.subr.mxu0 0.0
  %1806 = vmatpush2.msra.mxu0 0.0
  %1807 = vmatprep.subr.mxu0 0.0
  %1808 = vmatpush2.msra.mxu0 0.0
  %1809 = vmatprep.mubr.f32.mxu0 0.0
  %1810 = vmatmul.mubr.f32.gmra.mxu0 %v1672
  %v1811 = vpop.f32.mrf.mxu0
  %v1812 = vadd.f32 0.0, %v1811
  %v1813 = vpop.f32.mrf.mxu0
  %v1814 = vadd.f32 0.0, %v1813
  %1815 = vdwg.mxu0
  %v1820 = vrot.slane %v1741, 2
  %v1821 = vrot.slane %v1743, 2
  %v1822 = vrot.slane %v1812, 2
  %v1823 = vrot.slane %v1814, 2
  %v1828 = vadd.f32 %v280, %v1820
  %v1829 = vadd.f32 %v282, %v1821
  %v1830 = vadd.f32 %v323, %v1822
  %v1831 = vadd.f32 %v325, %v1823
  %v1832 = vsub.f32 0.0, %v1828
  %v1833 = vmul.f32 %v1832, 1.442695
  %v1834 = vpow.pop %v1833
  %v1835 = vadd.f32 %v1834, 1.0
  %v1836 = vrcp.pop %v1835
  %v1837 = vmul.f32 1.0, %v1836
  %v1838 = vsub.f32 0.0, %v1829
  %v1839 = vmul.f32 %v1838, 1.442695
  %v1840 = vpow.pop %v1839
  %v1841 = vadd.f32 %v1840, 1.0
  %v1842 = vrcp.pop %v1841
  %v1843 = vmul.f32 1.0, %v1842
  %v1844 = vtanh.pop %v1830
  %v1845 = vsub.f32 0.0, %v1831
  %v1846 = vmul.f32 %v1845, 1.442695
  %v1847 = vpow.pop %v1846
  %v1848 = vadd.f32 %v1847, 1.0
  %v1849 = vrcp.pop %v1848
  %v1850 = vmul.f32 1.0, %v1849
  %v1852 = vrot.slane %v1668, 6
  %v1854 = vmul.f32 %v1843, %v1852
  %v1855 = vmul.f32 %v1837, %v1844
  %v1856 = vadd.f32 %v1854, %v1855
  %v1857 = vtanh.pop %v1856
  %v1858 = vmul.f32 %v1850, %v1857
  %vm1859 = vcmask 1041408
  %v1860 = vsel %vm1859, %v560, %v745
  %vm1861 = vcmask 1043456
  %v1862 = vsel %vm1861, %v1860, %v933
  %vm1863 = vcmask 1045504
  %v1864 = vsel %vm1863, %v1862, %v1121
  %v1865 = vsel %vm1859, %v1297, %v1482
  %v1866 = vsel %vm1861, %v1865, %v1670
  %v1867 = vsel %vm1863, %v1866, %v1858
  %v1868 = vld [vmem:[%s4] sm:$0xff]
  %v1869 = vld [vmem:[%s4 + $0x8] sm:$0xff]
  %v1870 = vld [vmem:[%s4 + $0x10] sm:$0xff]
  %v1871 = vld [vmem:[%s4 + $0x18] sm:$0xff]
  %v1872 = vld [vmem:[%s4 + $0x20] sm:$0xff]
  %v1873 = vld [vmem:[%s4 + $0x28] sm:$0xff]
  %v1874 = vld [vmem:[%s4 + $0x30] sm:$0xff]
  %v1875 = vld [vmem:[%s4 + $0x38] sm:$0xff]
  %v1876 = vld [vmem:[%s4 + $0x40] sm:$0xff]
  %v1877 = vld [vmem:[%s4 + $0x48] sm:$0xff]
  %v1878 = vld [vmem:[%s4 + $0x50] sm:$0xff]
  %v1879 = vld [vmem:[%s4 + $0x58] sm:$0xff]
  %v1880 = vld [vmem:[%s4 + $0x60] sm:$0xff]
  %v1881 = vld [vmem:[%s4 + $0x68] sm:$0xff]
  %v1882 = vld [vmem:[%s4 + $0x70] sm:$0xff]
  %v1883 = vld [vmem:[%s4 + $0x78] sm:$0xff]
  %v1884 = vld [vmem:[%s5] sm:$0x1]
  %v1886 = vlaneseq
  %v1887 = vshrl.u32 %v1886, 7
  %v1888 = vsub.s32 0, %v1887
  %v1889 = vrot.slane %v1884, %v1888
  %1891 = vmatprep.subr.mxu0 0.0
  %1892 = vmatpush1.msra.mxu0 %v1883
  %1893 = vmatprep.subr.mxu0 0.0
  %1894 = vmatpush1.msra.mxu0 %v1882
  %1895 = vmatprep.subr.mxu0 0.0
  %1896 = vmatpush1.msra.mxu0 %v1881
  %1897 = vmatprep.subr.mxu0 0.0
  %1898 = vmatpush1.msra.mxu0 %v1880
  %1899 = vmatprep.subr.mxu0 0.0
  %1900 = vmatpush1.msra.mxu0 %v1879
  %1901 = vmatprep.subr.mxu0 0.0
  %1902 = vmatpush1.msra.mxu0 %v1878
  %1903 = vmatprep.subr.mxu0 0.0
  %1904 = vmatpush1.msra.mxu0 %v1877
  %1905 = vmatprep.subr.mxu0 0.0
  %1906 = vmatpush1.msra.mxu0 %v1876
  %1907 = vmatprep.subr.mxu0 0.0
  %1908 = vmatpush1.msra.mxu0 %v1875
  %1909 = vmatprep.subr.mxu0 0.0
  %1910 = vmatpush1.msra.mxu0 %v1874
  %1911 = vmatprep.subr.mxu0 0.0
  %1912 = vmatpush1.msra.mxu0 %v1873
  %1913 = vmatprep.subr.mxu0 0.0
  %1914 = vmatpush1.msra.mxu0 %v1872
  %1915 = vmatprep.subr.mxu0 0.0
  %1916 = vmatpush1.msra.mxu0 %v1871
  %1917 = vmatprep.subr.mxu0 0.0
  %1918 = vmatpush1.msra.mxu0 %v1870
  %1919 = vmatprep.subr.mxu0 0.0
  %1920 = vmatpush1.msra.mxu0 %v1869
  %1921 = vmatprep.subr.mxu0 0.0
  %1922 = vmatpush1.msra.mxu0 %v1868
  %1923 = vmatprep.subr.mxu0 0.0
  %1924 = vmatpush2.msra.mxu0 0.0
  %1925 = vmatprep.subr.mxu0 0.0
  %1926 = vmatpush2.msra.mxu0 0.0
  %1927 = vmatprep.subr.mxu0 0.0
  %1928 = vmatpush2.msra.mxu0 0.0
  %1929 = vmatprep.subr.mxu0 0.0
  %1930 = vmatpush2.msra.mxu0 0.0
  %1931 = vmatprep.subr.mxu0 0.0
  %1932 = vmatpush2.msra.mxu0 0.0
  %1933 = vmatprep.subr.mxu0 0.0
  %1934 = vmatpush2.msra.mxu0 0.0
  %1935 = vmatprep.subr.mxu0 0.0
  %1936 = vmatpush2.msra.mxu0 0.0
  %1937 = vmatprep.subr.mxu0 0.0
  %1938 = vmatpush2.msra.mxu0 0.0
  %1939 = vmatprep.subr.mxu0 0.0
  %1940 = vmatpush2.msra.mxu0 0.0
  %1941 = vmatprep.subr.mxu0 0.0
  %1942 = vmatpush2.msra.mxu0 0.0
  %1943 = vmatprep.subr.mxu0 0.0
  %1944 = vmatpush2.msra.mxu0 0.0
  %1945 = vmatprep.subr.mxu0 0.0
  %1946 = vmatpush2.msra.mxu0 0.0
  %1947 = vmatprep.subr.mxu0 0.0
  %1948 = vmatpush2.msra.mxu0 0.0
  %1949 = vmatprep.subr.mxu0 0.0
  %1950 = vmatpush2.msra.mxu0 0.0
  %1951 = vmatprep.subr.mxu0 0.0
  %1952 = vmatpush2.msra.mxu0 0.0
  %1953 = vmatprep.subr.mxu0 0.0
  %1954 = vmatpush2.msra.mxu0 0.0
  %1955 = vmatprep.mubr.f32.mxu0 0.0
  %1956 = vmatmul.mubr.f32.gmra.mxu0 %v1864
  %v1957 = vpop.f32.mrf.mxu0
  %v1958 = vadd.f32 %v1889, %v1957
  %v1959 = vpop.f32.mrf.mxu0
  %1960 = vmatprep.mubr.f32.mxu0 0.0
  %1961 = vmatmul.mubr.f32.gmra.mxu0 %v1867
  %v1962 = vpop.f32.mrf.mxu0
  %v1963 = vadd.f32 %v1889, %v1962
  %v1964 = vpop.f32.mrf.mxu0
  %1965 = vdwg.mxu0
  %1966 = vst [vmem:[%s6] sm:$0xff] %v1958
  %1967 = vst [vmem:[%s6 + $0x8] sm:$0xff] %v1963
  // Predicated region
  $region26: #{forward.3} parent=0 // pred_check
    _
  $region27: #{forward.3} parent=0 // pred_check_branch
    %1969 = sbr.rel (0) target = $region29
  $region28: #{forward.3} parent=0 // pred_region
    _
  $region29: #{forward.3} parent=0 // pred_fallthru
    _
  // Predicated region
  $region30: #{forward.3} parent=0 // pred_check
    _
  $region31: #{forward.3} parent=0 // pred_check_branch
    %1971 = sbr.rel (0) target = $region33
  $region32: #{forward.3} parent=0 // pred_region
    _
  $region33: #{forward.3} parent=0 // pred_fallthru
    _

// kernel: forward.2
$region0: #{forward.2}
  #allocation0 [shape = 'u32[]', space=smem, size = 0x4, offset = 0x4, fixed_abs, tag = 'smem constant byte address 0x4 - core index']
  #allocation1 [shape = 'u32[144,128]{1,0:T(1,128)}', space=vmem, size = 0x12000, scoped, tag = 'internal scratch']
  %s0 = inlined_call_operand.vmem [shape: bf16[784,128], index: 0, kind: input, shape index: {}]
  %s1 = inlined_call_operand.vmem [shape: bf16[128,256], index: 1, kind: input, shape index: {}]
  %s2 = inlined_call_operand.vmem [shape: f32[1,256], index: 2, kind: input, shape index: {}]
  %s3 = inlined_call_operand.vmem [shape: bf16[2304,128], index: 3, kind: input, shape index: {}]
  %s4 = inlined_call_operand.vmem [shape: f32[1,128], index: 4, kind: input, shape index: {}]
  %s5 = inlined_call_operand.vmem [shape: bf16[1152,128], index: 5, kind: input, shape index: {}]
  %s6 = inlined_call_operand.vmem [shape: f32[1,128], index: 6, kind: input, shape index: {}]
  %s7 = inlined_call_operand.vmem [shape: f32[16,128], index: 7, kind: output, shape index: {}]
  %s8 = sld [smem:[#allocation0]]
  $region61: #{forward.2} parent=0
    _
  %s10 = ssub.s32 1, %s8
  %s11 = scalar_select 0, %s10, %s8
  loop: start=0, step=1, limit=4
  $region2: #{forward.2} parent=0 // loop_pre_header
    _
  $region3: #{forward.2} parent=0 // loop_header
    %s13 = sphi 0, %s17
    %p14 = scmp.ge.s32.totalorder %s13, 4
    %s23 = sphi 0, %s25
    %s26 = sphi 0, %s23
    %s27 = sphi 0, %s26
    %s43 = sphi 0, %s27
    %s47 = sphi 0, %s47
    %s49 = sphi 0, %s47
    %s50 = sphi 0, %s49
    %s64 = sphi 0, %s50
    %s68 = sphi 0, %s68
    %s70 = sphi 0, %s68
    %s71 = sphi 0, %s70
    %s85 = sphi 0, %s71
    %s89 = sphi 0, %s89
    %s91 = sphi 0, %s89
    %s92 = sphi 0, %s91
    %s106 = sphi 0, %s92
    %s110 = sphi 0, %s110
    %s112 = sphi 0, %s110
    %s113 = sphi 0, %s112
    %s127 = sphi 0, %s113
    %s131 = sphi 0, %s131
    %s133 = sphi 0, %s131
    %s134 = sphi 0, %s133
    %s148 = sphi 0, %s134
    %s152 = sphi 0, %s152
    %s154 = sphi 0, %s152
    %s155 = sphi 0, %s154
    %s169 = sphi 0, %s155
    %s175 = sphi 0, %s177
    %s178 = sphi 0, %s175
    %s179 = sphi 0, %s178
    %s195 = sphi 0, %s179
  $region4: #{forward.2} parent=0 // loop_header_branch
    %16 = sbr.rel (%p14) target = $region8
  $region5: #{forward.2} parent=0 // loop_body
    %s18 = ssub.s32 %s13, 1
    %s19 = ssub.s32 %s13, 2
    %s20 = sadd.s32 %s13, 1
    %s21 = ssub.s32 %s13, %s20
    %p22 = scmp.eq.s32.totalorder %s21, 0
    %s24 = sadd.s32 %s23, 1
    %s25 = scalar_select %p22, %s23, %s24
    %p28 = pneg %p22
    %p29 = scmp.eq.s32.totalorder %s13, 1
    %p30 = por %p28, %p29
    %p31 = scmp.ne.s32.totalorder %s23, %s26
    %p32 = scmp.eq.s32.totalorder %s13, 0
    %p33 = por %p31, %p32
    %p34 = scmp.ne.s32.totalorder %s23, %s26
    %p35 = scmp.eq.s32.totalorder %s18, 1
    %p36 = por %p34, %p35
    %p37 = scmp.ne.s32.totalorder %s26, %s27
    %p38 = scmp.eq.s32.totalorder %s18, 0
    %p39 = por %p37, %p38
    %p40 = scmp.ne.s32.totalorder %s26, %s27
    %p41 = scmp.eq.s32.totalorder %s19, 1
    %p42 = por %p40, %p41
    %p44 = scmp.ne.s32.totalorder %s27, %s43
    %p45 = scmp.eq.s32.totalorder %s19, 0
    %p46 = por %p44, %p45
    %s48 = sadd.s32 %s47, 1
    %p51 = scmp.eq.s32.totalorder %s13, 1
    %p52 = scmp.ne.s32.totalorder %s47, %s49
    %p53 = scmp.eq.s32.totalorder %s13, 0
    %p54 = por %p52, %p53
    %p55 = scmp.ne.s32.totalorder %s47, %s49
    %p56 = scmp.eq.s32.totalorder %s18, 1
    %p57 = por %p55, %p56
    %p58 = scmp.ne.s32.totalorder %s49, %s50
    %p59 = scmp.eq.s32.totalorder %s18, 0
    %p60 = por %p58, %p59
    %p61 = scmp.ne.s32.totalorder %s49, %s50
    %p62 = scmp.eq.s32.totalorder %s19, 1
    %p63 = por %p61, %p62
    %p65 = scmp.ne.s32.totalorder %s50, %s64
    %p66 = scmp.eq.s32.totalorder %s19, 0
    %p67 = por %p65, %p66
    %s69 = sadd.s32 %s68, 1
    %p72 = scmp.eq.s32.totalorder %s13, 1
    %p73 = scmp.ne.s32.totalorder %s68, %s70
    %p74 = scmp.eq.s32.totalorder %s13, 0
    %p75 = por %p73, %p74
    %p76 = scmp.ne.s32.totalorder %s68, %s70
    %p77 = scmp.eq.s32.totalorder %s18, 1
    %p78 = por %p76, %p77
    %p79 = scmp.ne.s32.totalorder %s70, %s71
    %p80 = scmp.eq.s32.totalorder %s18, 0
    %p81 = por %p79, %p80
    %p82 = scmp.ne.s32.totalorder %s70, %s71
    %p83 = scmp.eq.s32.totalorder %s19, 1
    %p84 = por %p82, %p83
    %p86 = scmp.ne.s32.totalorder %s71, %s85
    %p87 = scmp.eq.s32.totalorder %s19, 0
    %p88 = por %p86, %p87
    %s90 = sadd.s32 %s89, 1
    %p93 = scmp.eq.s32.totalorder %s13, 1
    %p94 = scmp.ne.s32.totalorder %s89, %s91
    %p95 = scmp.eq.s32.totalorder %s13, 0
    %p96 = por %p94, %p95
    %p97 = scmp.ne.s32.totalorder %s89, %s91
    %p98 = scmp.eq.s32.totalorder %s18, 1
    %p99 = por %p97, %p98
    %p100 = scmp.ne.s32.totalorder %s91, %s92
    %p101 = scmp.eq.s32.totalorder %s18, 0
    %p102 = por %p100, %p101
    %p103 = scmp.ne.s32.totalorder %s91, %s92
    %p104 = scmp.eq.s32.totalorder %s19, 1
    %p105 = por %p103, %p104
    %p107 = scmp.ne.s32.totalorder %s92, %s106
    %p108 = scmp.eq.s32.totalorder %s19, 0
    %p109 = por %p107, %p108
    %s111 = sadd.s32 %s110, 1
    %p114 = scmp.eq.s32.totalorder %s13, 1
    %p115 = scmp.ne.s32.totalorder %s110, %s112
    %p116 = scmp.eq.s32.totalorder %s13, 0
    %p117 = por %p115, %p116
    %p118 = scmp.ne.s32.totalorder %s110, %s112
    %p119 = scmp.eq.s32.totalorder %s18, 1
    %p120 = por %p118, %p119
    %p121 = scmp.ne.s32.totalorder %s112, %s113
    %p122 = scmp.eq.s32.totalorder %s18, 0
    %p123 = por %p121, %p122
    %p124 = scmp.ne.s32.totalorder %s112, %s113
    %p125 = scmp.eq.s32.totalorder %s19, 1
    %p126 = por %p124, %p125
    %p128 = scmp.ne.s32.totalorder %s113, %s127
    %p129 = scmp.eq.s32.totalorder %s19, 0
    %p130 = por %p128, %p129
    %s132 = sadd.s32 %s131, 1
    %p135 = scmp.eq.s32.totalorder %s13, 1
    %p136 = scmp.ne.s32.totalorder %s131, %s133
    %p137 = scmp.eq.s32.totalorder %s13, 0
    %p138 = por %p136, %p137
    %p139 = scmp.ne.s32.totalorder %s131, %s133
    %p140 = scmp.eq.s32.totalorder %s18, 1
    %p141 = por %p139, %p140
    %p142 = scmp.ne.s32.totalorder %s133, %s134
    %p143 = scmp.eq.s32.totalorder %s18, 0
    %p144 = por %p142, %p143
    %p145 = scmp.ne.s32.totalorder %s133, %s134
    %p146 = scmp.eq.s32.totalorder %s19, 1
    %p147 = por %p145, %p146
    %p149 = scmp.ne.s32.totalorder %s134, %s148
    %p150 = scmp.eq.s32.totalorder %s19, 0
    %p151 = por %p149, %p150
    %s153 = sadd.s32 %s152, 1
    %p156 = scmp.eq.s32.totalorder %s13, 1
    %p157 = scmp.ne.s32.totalorder %s152, %s154
    %p158 = scmp.eq.s32.totalorder %s13, 0
    %p159 = por %p157, %p158
    %p160 = scmp.ne.s32.totalorder %s152, %s154
    %p161 = scmp.eq.s32.totalorder %s18, 1
    %p162 = por %p160, %p161
    %p163 = scmp.ne.s32.totalorder %s154, %s155
    %p164 = scmp.eq.s32.totalorder %s18, 0
    %p165 = por %p163, %p164
    %p166 = scmp.ne.s32.totalorder %s154, %s155
    %p167 = scmp.eq.s32.totalorder %s19, 1
    %p168 = por %p166, %p167
    %p170 = scmp.ne.s32.totalorder %s155, %s169
    %p171 = scmp.eq.s32.totalorder %s19, 0
    %p172 = por %p170, %p171
    %s173 = ssub.s32 %s13, %s20
    %p174 = scmp.eq.s32.totalorder %s173, 0
    %s176 = sadd.s32 %s175, 1
    %s177 = scalar_select %p174, %s175, %s176
    %p180 = pneg %p174
    %p181 = scmp.eq.s32.totalorder %s13, 1
    %p182 = por %p180, %p181
    %p183 = scmp.ne.s32.totalorder %s175, %s178
    %p184 = scmp.eq.s32.totalorder %s13, 0
    %p185 = por %p183, %p184
    %p186 = scmp.ne.s32.totalorder %s175, %s178
    %p187 = scmp.eq.s32.totalorder %s18, 1
    %p188 = por %p186, %p187
    %p189 = scmp.ne.s32.totalorder %s178, %s179
    %p190 = scmp.eq.s32.totalorder %s18, 0
    %p191 = por %p189, %p190
    %p192 = scmp.ne.s32.totalorder %s178, %s179
    %p193 = scmp.eq.s32.totalorder %s19, 1
    %p194 = por %p192, %p193
    %p196 = scmp.ne.s32.totalorder %s179, %s195
    %p197 = scmp.eq.s32.totalorder %s19, 0
    %p198 = por %p196, %p197
    %p199 = scmp.le.s32.totalorder 1, %s13
    %p200 = scmp.lt.s32.totalorder %s13, 3
    %p201 = pnand %p199, %p200
    %p202 = pneg %p201
    // Predicated region
    $region9: #{forward.2} parent=5 // pred_check
      _
    $region10: #{forward.2} parent=5 // pred_check_branch
      %204 = sbr.rel (%p201) target = $region12
    $region11: #{forward.2} parent=5 // pred_region
      %s205 = ssub.s32 %s13, 1
      // Predicated region
      $region13: #{forward.2} parent=11 // pred_check
        %p206 = pneg %p60
      $region14: #{forward.2} parent=11 // pred_check_branch
        %208 = sbr.rel (%p206) target = $region16
      $region15: #{forward.2} parent=11 // pred_region
        _
      $region16: #{forward.2} parent=11 // pred_fallthru
        _
      // Predicated region
      $region17: #{forward.2} parent=11 // pred_check
        %p209 = pneg %p81
      $region18: #{forward.2} parent=11 // pred_check_branch
        %211 = sbr.rel (%p209) target = $region20
      $region19: #{forward.2} parent=11 // pred_region
        _
      $region20: #{forward.2} parent=11 // pred_fallthru
        _
      // Predicated region
      $region21: #{forward.2} parent=11 // pred_check
        %p212 = pneg %p102
      $region22: #{forward.2} parent=11 // pred_check_branch
        %214 = sbr.rel (%p212) target = $region24
      $region23: #{forward.2} parent=11 // pred_region
        _
      $region24: #{forward.2} parent=11 // pred_fallthru
        _
      // Predicated region
      $region25: #{forward.2} parent=11 // pred_check
        %p215 = pneg %p123
      $region26: #{forward.2} parent=11 // pred_check_branch
        %217 = sbr.rel (%p215) target = $region28
      $region27: #{forward.2} parent=11 // pred_region
        _
      $region28: #{forward.2} parent=11 // pred_fallthru
        _
      // Predicated region
      $region29: #{forward.2} parent=11 // pred_check
        %p218 = pneg %p144
      $region30: #{forward.2} parent=11 // pred_check_branch
        %220 = sbr.rel (%p218) target = $region32
      $region31: #{forward.2} parent=11 // pred_region
        _
      $region32: #{forward.2} parent=11 // pred_fallthru
        _
      // Predicated region
      $region33: #{forward.2} parent=11 // pred_check
        %p221 = pneg %p165
      $region34: #{forward.2} parent=11 // pred_check_branch
        %223 = sbr.rel (%p221) target = $region36
      $region35: #{forward.2} parent=11 // pred_region
        _
      $region36: #{forward.2} parent=11 // pred_fallthru
        _
    $region12: #{forward.2} parent=5 // pred_fallthru
      _
    %p224 = scmp.lt.s32.totalorder %s13, 2
    // Predicated region
    $region37: #{forward.2} parent=5 // pred_check
      %p225 = pneg %p224
    $region38: #{forward.2} parent=5 // pred_check_branch
      %227 = sbr.rel (%p225) target = $region40
    $region39: #{forward.2} parent=5 // pred_region
      // Predicated region
      $region41: #{forward.2} parent=39 // pred_check
        %p228 = pneg %p33
      $region42: #{forward.2} parent=39 // pred_check_branch
        %230 = sbr.rel (%p228) target = $region44
      $region43: #{forward.2} parent=39 // pred_region
        %s231 = smul.u32 49, %s13
        %p232 = scmp.lt.s32.totalorder %s231, 97
        %s233 = scalar_select %p232, %s231, 97
        %s234 = smul.addr %s233, 4
        %s235 = scalar_lea.vmem %s0, %s234
        %s236 = smul.u32 49, %s13
      $region44: #{forward.2} parent=39 // pred_fallthru
        _
    $region40: #{forward.2} parent=5 // pred_fallthru
      _
    %p237 = scmp.le.s32.totalorder 1, %s13
    %p238 = scmp.lt.s32.totalorder %s13, 3
    %p239 = pnand %p237, %p238
    %p240 = pneg %p239
    // Predicated region
    $region45: #{forward.2} parent=5 // pred_check
      _
    $region46: #{forward.2} parent=5 // pred_check_branch
      %242 = sbr.rel (%p239) target = $region48
    $region47: #{forward.2} parent=5 // pred_region
      %s243 = ssub.s32 %s13, 1
      %s244 = smul.u32 49, %s18
      %p245 = scmp.lt.s32.totalorder %s244, 97
      %s246 = scalar_select %p245, %s244, 97
      %s247 = smul.addr %s246, 4
      %s248 = scalar_lea.vmem %s0, %s247
      %p249 = pneg %p39
      %p250 = pneg %p36
      %p251 = pneg %p60
      %p252 = pneg %p57
      %p253 = pneg %p81
      %p254 = pneg %p78
      %p255 = pneg %p102
      %p256 = pneg %p99
      %p257 = pneg %p123
      %p258 = pneg %p120
      %p259 = pneg %p144
      %p260 = pneg %p141
      %p261 = pneg %p165
      %p262 = pneg %p162
      %p263 = pneg %p191
      %p264 = pneg %p188
      %p265 = scmp.lt.s32.totalorder %s18, 1
      %s266 = scalar_select %p265, %s18, 1
      %s267 = smul.addr %s266, 8
      %s268 = scalar_lea.vmem %s7, %s267
      %s269 = smul.u32 49, %s18
      %p270 = scmp.lt.s32.totalorder %s269, 97
      %s271 = scalar_select %p270, %s269, 97
      %s272 = smul.addr %s271, 4
      %s273 = scalar_lea.vmem %s0, %s272
      %s274 = smul.u32 49, %s18
      %p275 = scmp.lt.s32.totalorder %s18, 1
      %s276 = scalar_select %p275, %s18, 1
      %s277 = smul.addr %s276, 8
      %s278 = scalar_lea.vmem %s7, %s277
      %v280 = vld [vmem:[%s273] sm:$0xf]
      %v281 = vld [vmem:[%s273 + $0x4] sm:$0xf]
      %v282 = vld [vmem:[%s273 + $0x8] sm:$0xf]
      %v283 = vld [vmem:[%s273 + $0xc] sm:$0xf]
      %v284 = vld [vmem:[%s273 + $0x10] sm:$0xf]
      %v285 = vld [vmem:[%s273 + $0x14] sm:$0xf]
      %v286 = vld [vmem:[%s273 + $0x18] sm:$0xf]
      %v287 = vld [vmem:[%s273 + $0x1c] sm:$0xf]
      %v288 = vld [vmem:[%s273 + $0x20] sm:$0xf]
      %v289 = vld [vmem:[%s273 + $0x24] sm:$0xf]
      %v290 = vld [vmem:[%s273 + $0x28] sm:$0xf]
      %v291 = vld [vmem:[%s273 + $0x2c] sm:$0xf]
      %v292 = vld [vmem:[%s273 + $0x30] sm:$0xf]
      %v293 = vld [vmem:[%s273 + $0x34] sm:$0xf]
      %v294 = vld [vmem:[%s273 + $0x38] sm:$0xf]
      %v295 = vld [vmem:[%s273 + $0x3c] sm:$0xf]
      %v296 = vld [vmem:[%s273 + $0x40] sm:$0xf]
      %v297 = vld [vmem:[%s273 + $0x44] sm:$0xf]
      %v298 = vld [vmem:[%s273 + $0x48] sm:$0xf]
      %v299 = vld [vmem:[%s273 + $0x4c] sm:$0xf]
      %v300 = vld [vmem:[%s273 + $0x50] sm:$0xf]
      %v301 = vld [vmem:[%s273 + $0x54] sm:$0xf]
      %v302 = vld [vmem:[%s273 + $0x58] sm:$0xf]
      %v303 = vld [vmem:[%s273 + $0x5c] sm:$0xf]
      %v304 = vld [vmem:[%s273 + $0x60] sm:$0xf]
      %v305 = vld [vmem:[%s273 + $0x64] sm:$0xf]
      %v306 = vld [vmem:[%s273 + $0x68] sm:$0xf]
      %v307 = vld [vmem:[%s273 + $0x6c] sm:$0xf]
      %v308 = vld [vmem:[%s273 + $0x70] sm:$0xf]
      %v309 = vld [vmem:[%s273 + $0x74] sm:$0xf]
      %v310 = vld [vmem:[%s273 + $0x78] sm:$0xf]
      %v311 = vld [vmem:[%s273 + $0x7c] sm:$0xf]
      %v312 = vld [vmem:[%s273 + $0x80] sm:$0xf]
      %v313 = vld [vmem:[%s273 + $0x84] sm:$0xf]
      %v314 = vld [vmem:[%s273 + $0x88] sm:$0xf]
      %v315 = vld [vmem:[%s273 + $0x8c] sm:$0xf]
      %v316 = vld [vmem:[%s273 + $0x90] sm:$0xf]
      %v317 = vld [vmem:[%s273 + $0x94] sm:$0xf]
      %v318 = vld [vmem:[%s273 + $0x98] sm:$0xf]
      %v319 = vld [vmem:[%s273 + $0x9c] sm:$0xf]
      %v320 = vld [vmem:[%s273 + $0xa0] sm:$0xf]
      %v321 = vld [vmem:[%s273 + $0xa4] sm:$0xf]
      %v322 = vld [vmem:[%s273 + $0xa8] sm:$0xf]
      %v323 = vld [vmem:[%s273 + $0xac] sm:$0xf]
      %v324 = vld [vmem:[%s273 + $0xb0] sm:$0xf]
      %v325 = vld [vmem:[%s273 + $0xb4] sm:$0xf]
      %v326 = vld [vmem:[%s273 + $0xb8] sm:$0xf]
      %v327 = vld [vmem:[%s273 + $0xbc] sm:$0xf]
      %v328 = vld [vmem:[%s273 + $0xc0] sm:$0xf]
      %v329 = vld [vmem:[%s1] sm:$0xff]
      %v330 = vld [vmem:[%s1 + $0x8] sm:$0xff]
      %v331 = vld [vmem:[%s1 + $0x10] sm:$0xff]
      %v332 = vld [vmem:[%s1 + $0x18] sm:$0xff]
      %v333 = vld [vmem:[%s1 + $0x20] sm:$0xff]
      %v334 = vld [vmem:[%s1 + $0x28] sm:$0xff]
      %v335 = vld [vmem:[%s1 + $0x30] sm:$0xff]
      %v336 = vld [vmem:[%s1 + $0x38] sm:$0xff]
      %v337 = vld [vmem:[%s1 + $0x40] sm:$0xff]
      %v338 = vld [vmem:[%s1 + $0x48] sm:$0xff]
      %v339 = vld [vmem:[%s1 + $0x50] sm:$0xff]
      %v340 = vld [vmem:[%s1 + $0x58] sm:$0xff]
      %v341 = vld [vmem:[%s1 + $0x60] sm:$0xff]
      %v342 = vld [vmem:[%s1 + $0x68] sm:$0xff]
      %v343 = vld [vmem:[%s1 + $0x70] sm:$0xff]
      %v344 = vld [vmem:[%s1 + $0x78] sm:$0xff]
      %v345 = vld [vmem:[%s2] sm:$0x3]
      %v347 = vlaneseq
      %v348 = vshrl.u32 %v347, 7
      %v349 = vsub.s32 0, %v348
      %v350 = vrot.slane %v345, %v349
      %v351 = vlaneseq
      %v352 = vshrl.u32 %v351, 7
      %v353 = vsub.s32 1, %v352
      %v354 = vrot.slane %v345, %v353
      %v406 = vunpack.c.l.b16 %v280
      %v407 = vunpack.c.l.b16 %v281
      %v408 = vunpack.c.l.b16 %v282
      %v409 = vunpack.c.l.b16 %v283
      %v410 = vunpack.c.l.b16 %v284
      %v411 = vunpack.c.l.b16 %v285
      %v412 = vunpack.c.l.b16 %v286
      %v413 = vunpack.c.l.b16 %v287
      %v414 = vunpack.c.l.b16 %v288
      %v415 = vunpack.c.l.b16 %v289
      %v416 = vunpack.c.l.b16 %v290
      %v417 = vunpack.c.l.b16 %v291
      %v418 = vunpack.c.l.b16 %v292
      %v419 = vunpack.c.l.b16 %v293
      %v420 = vunpack.c.l.b16 %v294
      %v421 = vunpack.c.l.b16 %v295
      %v422 = vunpack.c.l.b16 %v296
      %v423 = vunpack.c.l.b16 %v297
      %v424 = vunpack.c.l.b16 %v298
      %v425 = vunpack.c.l.b16 %v299
      %v426 = vunpack.c.l.b16 %v300
      %v427 = vunpack.c.l.b16 %v301
      %v428 = vunpack.c.l.b16 %v302
      %v429 = vunpack.c.l.b16 %v303
      %v430 = vunpack.c.l.b16 %v304
      %v431 = vunpack.c.l.b16 %v305
      %v432 = vunpack.c.l.b16 %v306
      %v433 = vunpack.c.l.b16 %v307
      %v434 = vunpack.c.l.b16 %v308
      %v435 = vunpack.c.l.b16 %v309
      %v436 = vunpack.c.l.b16 %v310
      %v437 = vunpack.c.l.b16 %v311
      %v438 = vunpack.c.l.b16 %v312
      %v439 = vunpack.c.l.b16 %v313
      %v440 = vunpack.c.l.b16 %v314
      %v441 = vunpack.c.l.b16 %v315
      %v442 = vunpack.c.l.b16 %v316
      %v443 = vunpack.c.l.b16 %v317
      %v444 = vunpack.c.l.b16 %v318
      %v445 = vunpack.c.l.b16 %v319
      %v446 = vunpack.c.l.b16 %v320
      %v447 = vunpack.c.l.b16 %v321
      %v448 = vunpack.c.l.b16 %v322
      %v449 = vunpack.c.l.b16 %v323
      %v450 = vunpack.c.l.b16 %v324
      %v451 = vunpack.c.l.b16 %v325
      %v452 = vunpack.c.l.b16 %v326
      %v453 = vunpack.c.l.b16 %v327
      %v454 = vunpack.c.l.b16 %v328
      %v455 = vpack.c.b16 %v407, %v406
      %v456 = vpack.c.b16 %v409, %v408
      %v457 = vpack.c.b16 %v411, %v410
      %v458 = vpack.c.b16 %v413, %v412
      %v459 = vpack.c.b16 %v415, %v414
      %v460 = vpack.c.b16 %v417, %v416
      %v461 = vpack.c.b16 %v419, %v418
      %v462 = vpack.c.b16 %v421, %v420
      %v463 = vpack.c.b16 %v423, %v422
      %v464 = vpack.c.b16 %v425, %v424
      %v465 = vpack.c.b16 %v427, %v426
      %v466 = vpack.c.b16 %v429, %v428
      %v467 = vpack.c.b16 %v431, %v430
      %v468 = vpack.c.b16 %v433, %v432
      %v469 = vpack.c.b16 %v435, %v434
      %v470 = vpack.c.b16 %v437, %v436
      %v471 = vpack.c.b16 %v439, %v438
      %v472 = vpack.c.b16 %v441, %v440
      %v473 = vpack.c.b16 %v443, %v442
      %v474 = vpack.c.b16 %v445, %v444
      %v475 = vpack.c.b16 %v447, %v446
      %v476 = vpack.c.b16 %v449, %v448
      %v477 = vpack.c.b16 %v451, %v450
      %v478 = vpack.c.b16 %v453, %v452
      %v479 = vpack.c.b16 %v454, %v454
      %v521 = vunpack.c.l.b16 %v329
      %v522 = vunpack.c.h.b16 %v329
      %v523 = vunpack.c.l.b16 %v330
      %v524 = vunpack.c.h.b16 %v330
      %v525 = vunpack.c.l.b16 %v331
      %v526 = vunpack.c.h.b16 %v331
      %v527 = vunpack.c.l.b16 %v332
      %v528 = vunpack.c.h.b16 %v332
      %v529 = vunpack.c.l.b16 %v333
      %v530 = vunpack.c.h.b16 %v333
      %v531 = vunpack.c.l.b16 %v334
      %v532 = vunpack.c.h.b16 %v334
      %v533 = vunpack.c.l.b16 %v335
      %v534 = vunpack.c.h.b16 %v335
      %v535 = vunpack.c.l.b16 %v336
      %v536 = vunpack.c.h.b16 %v336
      %v537 = vunpack.c.l.b16 %v337
      %v538 = vunpack.c.h.b16 %v337
      %v539 = vunpack.c.l.b16 %v338
      %v540 = vunpack.c.h.b16 %v338
      %v541 = vunpack.c.l.b16 %v339
      %v542 = vunpack.c.h.b16 %v339
      %v543 = vunpack.c.l.b16 %v340
      %v544 = vunpack.c.h.b16 %v340
      %v545 = vunpack.c.l.b16 %v341
      %v546 = vunpack.c.h.b16 %v341
      %v547 = vunpack.c.l.b16 %v342
      %v548 = vunpack.c.h.b16 %v342
      %v549 = vunpack.c.l.b16 %v343
      %v550 = vunpack.c.h.b16 %v343
      %v551 = vunpack.c.l.b16 %v344
      %v552 = vunpack.c.h.b16 %v344
      %v553 = vpack.c.b16 %v523, %v521
      %v554 = vpack.c.b16 %v524, %v522
      %v555 = vpack.c.b16 %v527, %v525
      %v556 = vpack.c.b16 %v528, %v526
      %v557 = vpack.c.b16 %v531, %v529
      %v558 = vpack.c.b16 %v532, %v530
      %v559 = vpack.c.b16 %v535, %v533
      %v560 = vpack.c.b16 %v536, %v534
      %v561 = vpack.c.b16 %v539, %v537
      %v562 = vpack.c.b16 %v540, %v538
      %v563 = vpack.c.b16 %v543, %v541
      %v564 = vpack.c.b16 %v544, %v542
      %v565 = vpack.c.b16 %v547, %v545
      %v566 = vpack.c.b16 %v548, %v546
      %v567 = vpack.c.b16 %v551, %v549
      %v568 = vpack.c.b16 %v552, %v550
      %585 = vmatprep.subr.bf16.mxu0 %v568
      %586 = vmatpush1.bf16.msra.mxu0 %v567
      %587 = vmatprep.subr.bf16.mxu0 %v566
      %588 = vmatpush1.bf16.msra.mxu0 %v565
      %589 = vmatprep.subr.bf16.mxu0 %v564
      %590 = vmatpush1.bf16.msra.mxu0 %v563
      %591 = vmatprep.subr.bf16.mxu0 %v562
      %592 = vmatpush1.bf16.msra.mxu0 %v561
      %593 = vmatprep.subr.bf16.mxu0 %v560
      %594 = vmatpush1.bf16.msra.mxu0 %v559
      %595 = vmatprep.subr.bf16.mxu0 %v558
      %596 = vmatpush1.bf16.msra.mxu0 %v557
      %597 = vmatprep.subr.bf16.mxu0 %v556
      %598 = vmatpush1.bf16.msra.mxu0 %v555
      %599 = vmatprep.subr.bf16.mxu0 %v554
      %600 = vmatpush1.bf16.msra.mxu0 %v553
      %601 = vmatprep.subr.bf16.mxu0 0
      %602 = vmatpush2.bf16.msra.mxu0 0
      %603 = vmatprep.subr.bf16.mxu0 0
      %604 = vmatpush2.bf16.msra.mxu0 0
      %605 = vmatprep.subr.bf16.mxu0 0
      %606 = vmatpush2.bf16.msra.mxu0 0
      %607 = vmatprep.subr.bf16.mxu0 0
      %608 = vmatpush2.bf16.msra.mxu0 0
      %609 = vmatprep.subr.bf16.mxu0 0
      %610 = vmatpush2.bf16.msra.mxu0 0
      %611 = vmatprep.subr.bf16.mxu0 0
      %612 = vmatpush2.bf16.msra.mxu0 0
      %613 = vmatprep.subr.bf16.mxu0 0
      %614 = vmatpush2.bf16.msra.mxu0 0
      %615 = vmatprep.subr.bf16.mxu0 0
      %616 = vmatpush2.bf16.msra.mxu0 0
      %617 = vmatprep.mubr.bf16.mxu0 0
      %618 = vmatmul.mubr.bf16.gmra.mxu0 %v455
      %v619 = vpop.f32.mrf.mxu0
      %v620 = vadd.f32 %v350, %v619
      %v621 = vpop.f32.mrf.mxu0
      %v622 = vadd.f32 %v354, %v621
      %v623 = vpop.f32.mrf.mxu0
      %v624 = vadd.f32 %v350, %v623
      %v625 = vpop.f32.mrf.mxu0
      %v626 = vadd.f32 %v354, %v625
      %627 = vmatprep.mubr.bf16.mxu0 0
      %628 = vmatmul.mubr.bf16.gmra.mxu0 %v456
      %v629 = vpop.f32.mrf.mxu0
      %v630 = vadd.f32 %v350, %v629
      %v631 = vpop.f32.mrf.mxu0
      %v632 = vadd.f32 %v354, %v631
      %v633 = vpop.f32.mrf.mxu0
      %v634 = vadd.f32 %v350, %v633
      %v635 = vpop.f32.mrf.mxu0
      %v636 = vadd.f32 %v354, %v635
      %637 = vmatprep.mubr.bf16.mxu0 0
      %638 = vmatmul.mubr.bf16.gmra.mxu0 %v457
      %v639 = vpop.f32.mrf.mxu0
      %v640 = vadd.f32 %v350, %v639
      %v641 = vpop.f32.mrf.mxu0
      %v642 = vadd.f32 %v354, %v641
      %v643 = vpop.f32.mrf.mxu0
      %v644 = vadd.f32 %v350, %v643
      %v645 = vpop.f32.mrf.mxu0
      %v646 = vadd.f32 %v354, %v645
      %647 = vmatprep.mubr.bf16.mxu0 0
      %648 = vmatmul.mubr.bf16.gmra.mxu0 %v458
      %v649 = vpop.f32.mrf.mxu0
      %v650 = vadd.f32 %v350, %v649
      %v651 = vpop.f32.mrf.mxu0
      %v652 = vadd.f32 %v354, %v651
      %v653 = vpop.f32.mrf.mxu0
      %v654 = vadd.f32 %v350, %v653
      %v655 = vpop.f32.mrf.mxu0
      %v656 = vadd.f32 %v354, %v655
      %657 = vmatprep.mubr.bf16.mxu0 0
      %658 = vmatmul.mubr.bf16.gmra.mxu0 %v459
      %v659 = vpop.f32.mrf.mxu0
      %v660 = vadd.f32 %v350, %v659
      %v661 = vpop.f32.mrf.mxu0
      %v662 = vadd.f32 %v354, %v661
      %v663 = vpop.f32.mrf.mxu0
      %v664 = vadd.f32 %v350, %v663
      %v665 = vpop.f32.mrf.mxu0
      %v666 = vadd.f32 %v354, %v665
      %667 = vmatprep.mubr.bf16.mxu0 0
      %668 = vmatmul.mubr.bf16.gmra.mxu0 %v460
      %v669 = vpop.f32.mrf.mxu0
      %v670 = vadd.f32 %v350, %v669
      %v671 = vpop.f32.mrf.mxu0
      %v672 = vadd.f32 %v354, %v671
      %v673 = vpop.f32.mrf.mxu0
      %v674 = vadd.f32 %v350, %v673
      %v675 = vpop.f32.mrf.mxu0
      %v676 = vadd.f32 %v354, %v675
      %677 = vmatprep.mubr.bf16.mxu0 0
      %678 = vmatmul.mubr.bf16.gmra.mxu0 %v461
      %v679 = vpop.f32.mrf.mxu0
      %v680 = vadd.f32 %v350, %v679
      %v681 = vpop.f32.mrf.mxu0
      %v682 = vadd.f32 %v354, %v681
      %v683 = vpop.f32.mrf.mxu0
      %v684 = vadd.f32 %v350, %v683
      %v685 = vpop.f32.mrf.mxu0
      %v686 = vadd.f32 %v354, %v685
      %687 = vmatprep.mubr.bf16.mxu0 0
      %688 = vmatmul.mubr.bf16.gmra.mxu0 %v462
      %v689 = vpop.f32.mrf.mxu0
      %v690 = vadd.f32 %v350, %v689
      %v691 = vpop.f32.mrf.mxu0
      %v692 = vadd.f32 %v354, %v691
      %v693 = vpop.f32.mrf.mxu0
      %v694 = vadd.f32 %v350, %v693
      %v695 = vpop.f32.mrf.mxu0
      %v696 = vadd.f32 %v354, %v695
      %697 = vmatprep.mubr.bf16.mxu0 0
      %698 = vmatmul.mubr.bf16.gmra.mxu0 %v463
      %v699 = vpop.f32.mrf.mxu0
      %v700 = vadd.f32 %v350, %v699
      %v701 = vpop.f32.mrf.mxu0
      %v702 = vadd.f32 %v354, %v701
      %v703 = vpop.f32.mrf.mxu0
      %v704 = vadd.f32 %v350, %v703
      %v705 = vpop.f32.mrf.mxu0
      %v706 = vadd.f32 %v354, %v705
      %707 = vmatprep.mubr.bf16.mxu0 0
      %708 = vmatmul.mubr.bf16.gmra.mxu0 %v464
      %v709 = vpop.f32.mrf.mxu0
      %v710 = vadd.f32 %v350, %v709
      %v711 = vpop.f32.mrf.mxu0
      %v712 = vadd.f32 %v354, %v711
      %v713 = vpop.f32.mrf.mxu0
      %v714 = vadd.f32 %v350, %v713
      %v715 = vpop.f32.mrf.mxu0
      %v716 = vadd.f32 %v354, %v715
      %717 = vmatprep.mubr.bf16.mxu0 0
      %718 = vmatmul.mubr.bf16.gmra.mxu0 %v465
      %v719 = vpop.f32.mrf.mxu0
      %v720 = vadd.f32 %v350, %v719
      %v721 = vpop.f32.mrf.mxu0
      %v722 = vadd.f32 %v354, %v721
      %v723 = vpop.f32.mrf.mxu0
      %v724 = vadd.f32 %v350, %v723
      %v725 = vpop.f32.mrf.mxu0
      %v726 = vadd.f32 %v354, %v725
      %727 = vmatprep.mubr.bf16.mxu0 0
      %728 = vmatmul.mubr.bf16.gmra.mxu0 %v466
      %v729 = vpop.f32.mrf.mxu0
      %v730 = vadd.f32 %v350, %v729
      %v731 = vpop.f32.mrf.mxu0
      %v732 = vadd.f32 %v354, %v731
      %v733 = vpop.f32.mrf.mxu0
      %v734 = vadd.f32 %v350, %v733
      %v735 = vpop.f32.mrf.mxu0
      %v736 = vadd.f32 %v354, %v735
      %737 = vmatprep.mubr.bf16.mxu0 0
      %738 = vmatmul.mubr.bf16.gmra.mxu0 %v467
      %v739 = vpop.f32.mrf.mxu0
      %v740 = vadd.f32 %v350, %v739
      %v741 = vpop.f32.mrf.mxu0
      %v742 = vadd.f32 %v354, %v741
      %v743 = vpop.f32.mrf.mxu0
      %v744 = vadd.f32 %v350, %v743
      %v745 = vpop.f32.mrf.mxu0
      %v746 = vadd.f32 %v354, %v745
      %747 = vmatprep.mubr.bf16.mxu0 0
      %748 = vmatmul.mubr.bf16.gmra.mxu0 %v468
      %v749 = vpop.f32.mrf.mxu0
      %v750 = vadd.f32 %v350, %v749
      %v751 = vpop.f32.mrf.mxu0
      %v752 = vadd.f32 %v354, %v751
      %v753 = vpop.f32.mrf.mxu0
      %v754 = vadd.f32 %v350, %v753
      %v755 = vpop.f32.mrf.mxu0
      %v756 = vadd.f32 %v354, %v755
      %757 = vmatprep.mubr.bf16.mxu0 0
      %758 = vmatmul.mubr.bf16.gmra.mxu0 %v469
      %v759 = vpop.f32.mrf.mxu0
      %v760 = vadd.f32 %v350, %v759
      %v761 = vpop.f32.mrf.mxu0
      %v762 = vadd.f32 %v354, %v761
      %v763 = vpop.f32.mrf.mxu0
      %v764 = vadd.f32 %v350, %v763
      %v765 = vpop.f32.mrf.mxu0
      %v766 = vadd.f32 %v354, %v765
      %767 = vmatprep.mubr.bf16.mxu0 0
      %768 = vmatmul.mubr.bf16.gmra.mxu0 %v470
      %v769 = vpop.f32.mrf.mxu0
      %v770 = vadd.f32 %v350, %v769
      %v771 = vpop.f32.mrf.mxu0
      %v772 = vadd.f32 %v354, %v771
      %v773 = vpop.f32.mrf.mxu0
      %v774 = vadd.f32 %v350, %v773
      %v775 = vpop.f32.mrf.mxu0
      %v776 = vadd.f32 %v354, %v775
      %777 = vmatprep.mubr.bf16.mxu0 0
      %778 = vmatmul.mubr.bf16.gmra.mxu0 %v471
      %v779 = vpop.f32.mrf.mxu0
      %v780 = vadd.f32 %v350, %v779
      %v781 = vpop.f32.mrf.mxu0
      %v782 = vadd.f32 %v354, %v781
      %v783 = vpop.f32.mrf.mxu0
      %v784 = vadd.f32 %v350, %v783
      %v785 = vpop.f32.mrf.mxu0
      %v786 = vadd.f32 %v354, %v785
      %787 = vmatprep.mubr.bf16.mxu0 0
      %788 = vmatmul.mubr.bf16.gmra.mxu0 %v472
      %v789 = vpop.f32.mrf.mxu0
      %v790 = vadd.f32 %v350, %v789
      %v791 = vpop.f32.mrf.mxu0
      %v792 = vadd.f32 %v354, %v791
      %v793 = vpop.f32.mrf.mxu0
      %v794 = vadd.f32 %v350, %v793
      %v795 = vpop.f32.mrf.mxu0
      %v796 = vadd.f32 %v354, %v795
      %797 = vmatprep.mubr.bf16.mxu0 0
      %798 = vmatmul.mubr.bf16.gmra.mxu0 %v473
      %v799 = vpop.f32.mrf.mxu0
      %v800 = vadd.f32 %v350, %v799
      %v801 = vpop.f32.mrf.mxu0
      %v802 = vadd.f32 %v354, %v801
      %v803 = vpop.f32.mrf.mxu0
      %v804 = vadd.f32 %v350, %v803
      %v805 = vpop.f32.mrf.mxu0
      %v806 = vadd.f32 %v354, %v805
      %807 = vmatprep.mubr.bf16.mxu0 0
      %808 = vmatmul.mubr.bf16.gmra.mxu0 %v474
      %v809 = vpop.f32.mrf.mxu0
      %v810 = vadd.f32 %v350, %v809
      %v811 = vpop.f32.mrf.mxu0
      %v812 = vadd.f32 %v354, %v811
      %v813 = vpop.f32.mrf.mxu0
      %v814 = vadd.f32 %v350, %v813
      %v815 = vpop.f32.mrf.mxu0
      %v816 = vadd.f32 %v354, %v815
      %817 = vmatprep.mubr.bf16.mxu0 0
      %818 = vmatmul.mubr.bf16.gmra.mxu0 %v475
      %v819 = vpop.f32.mrf.mxu0
      %v820 = vadd.f32 %v350, %v819
      %v821 = vpop.f32.mrf.mxu0
      %v822 = vadd.f32 %v354, %v821
      %v823 = vpop.f32.mrf.mxu0
      %v824 = vadd.f32 %v350, %v823
      %v825 = vpop.f32.mrf.mxu0
      %v826 = vadd.f32 %v354, %v825
      %827 = vmatprep.mubr.bf16.mxu0 0
      %828 = vmatmul.mubr.bf16.gmra.mxu0 %v476
      %v829 = vpop.f32.mrf.mxu0
      %v830 = vadd.f32 %v350, %v829
      %v831 = vpop.f32.mrf.mxu0
      %v832 = vadd.f32 %v354, %v831
      %v833 = vpop.f32.mrf.mxu0
      %v834 = vadd.f32 %v350, %v833
      %v835 = vpop.f32.mrf.mxu0
      %v836 = vadd.f32 %v354, %v835
      %837 = vmatprep.mubr.bf16.mxu0 0
      %838 = vmatmul.mubr.bf16.gmra.mxu0 %v477
      %v839 = vpop.f32.mrf.mxu0
      %v840 = vadd.f32 %v350, %v839
      %v841 = vpop.f32.mrf.mxu0
      %v842 = vadd.f32 %v354, %v841
      %v843 = vpop.f32.mrf.mxu0
      %v844 = vadd.f32 %v350, %v843
      %v845 = vpop.f32.mrf.mxu0
      %v846 = vadd.f32 %v354, %v845
      %847 = vmatprep.mubr.bf16.mxu0 0
      %848 = vmatmul.mubr.bf16.gmra.mxu0 %v478
      %v849 = vpop.f32.mrf.mxu0
      %v850 = vadd.f32 %v350, %v849
      %v851 = vpop.f32.mrf.mxu0
      %v852 = vadd.f32 %v354, %v851
      %v853 = vpop.f32.mrf.mxu0
      %v854 = vadd.f32 %v350, %v853
      %v855 = vpop.f32.mrf.mxu0
      %v856 = vadd.f32 %v354, %v855
      %857 = vmatprep.mubr.bf16.mxu0 0
      %858 = vmatmul.mubr.bf16.gmra.mxu0 %v479
      %v859 = vpop.f32.mrf.mxu0
      %v860 = vadd.f32 %v350, %v859
      %v861 = vpop.f32.mrf.mxu0
      %v862 = vadd.f32 %v354, %v861
      %v863 = vpop.f32.mrf.mxu0
      %v864 = vpop.f32.mrf.mxu0
      %865 = vdwg.mxu0
      %v866 = vmax.f32 %v620, 0.0
      %v867 = vmax.f32 %v622, 0.0
      %v868 = vmax.f32 %v624, 0.0
      %v869 = vmax.f32 %v626, 0.0
      %v870 = vmax.f32 %v630, 0.0
      %v871 = vmax.f32 %v632, 0.0
      %v872 = vmax.f32 %v634, 0.0
      %v873 = vmax.f32 %v636, 0.0
      %v874 = vmax.f32 %v640, 0.0
      %v875 = vmax.f32 %v642, 0.0
      %v876 = vmax.f32 %v644, 0.0
      %v877 = vmax.f32 %v646, 0.0
      %v878 = vmax.f32 %v650, 0.0
      %v879 = vmax.f32 %v652, 0.0
      %v880 = vmax.f32 %v654, 0.0
      %v881 = vmax.f32 %v656, 0.0
      %v882 = vmax.f32 %v660, 0.0
      %v883 = vmax.f32 %v662, 0.0
      %v884 = vmax.f32 %v664, 0.0
      %v885 = vmax.f32 %v666, 0.0
      %v886 = vmax.f32 %v670, 0.0
      %v887 = vmax.f32 %v672, 0.0
      %v888 = vmax.f32 %v674, 0.0
      %v889 = vmax.f32 %v676, 0.0
      %v890 = vmax.f32 %v680, 0.0
      %v891 = vmax.f32 %v682, 0.0
      %v892 = vmax.f32 %v684, 0.0
      %v893 = vmax.f32 %v686, 0.0
      %v894 = vmax.f32 %v690, 0.0
      %v895 = vmax.f32 %v692, 0.0
      %v896 = vmax.f32 %v694, 0.0
      %v897 = vmax.f32 %v696, 0.0
      %v898 = vmax.f32 %v700, 0.0
      %v899 = vmax.f32 %v702, 0.0
      %v900 = vmax.f32 %v704, 0.0
      %v901 = vmax.f32 %v706, 0.0
      %v902 = vmax.f32 %v710, 0.0
      %v903 = vmax.f32 %v712, 0.0
      %v904 = vmax.f32 %v714, 0.0
      %v905 = vmax.f32 %v716, 0.0
      %v906 = vmax.f32 %v720, 0.0
      %v907 = vmax.f32 %v722, 0.0
      %v908 = vmax.f32 %v724, 0.0
      %v909 = vmax.f32 %v726, 0.0
      %v910 = vmax.f32 %v730, 0.0
      %v911 = vmax.f32 %v732, 0.0
      %v912 = vmax.f32 %v734, 0.0
      %v913 = vmax.f32 %v736, 0.0
      %v914 = vmax.f32 %v740, 0.0
      %v915 = vmax.f32 %v742, 0.0
      %v916 = vmax.f32 %v744, 0.0
      %v917 = vmax.f32 %v746, 0.0
      %v918 = vmax.f32 %v750, 0.0
      %v919 = vmax.f32 %v752, 0.0
      %v920 = vmax.f32 %v754, 0.0
      %v921 = vmax.f32 %v756, 0.0
      %v922 = vmax.f32 %v760, 0.0
      %v923 = vmax.f32 %v762, 0.0
      %v924 = vmax.f32 %v764, 0.0
      %v925 = vmax.f32 %v766, 0.0
      %v926 = vmax.f32 %v770, 0.0
      %v927 = vmax.f32 %v772, 0.0
      %v928 = vmax.f32 %v774, 0.0
      %v929 = vmax.f32 %v776, 0.0
      %v930 = vmax.f32 %v780, 0.0
      %v931 = vmax.f32 %v782, 0.0
      %v932 = vmax.f32 %v784, 0.0
      %v933 = vmax.f32 %v786, 0.0
      %v934 = vmax.f32 %v790, 0.0
      %v935 = vmax.f32 %v792, 0.0
      %v936 = vmax.f32 %v794, 0.0
      %v937 = vmax.f32 %v796, 0.0
      %v938 = vmax.f32 %v800, 0.0
      %v939 = vmax.f32 %v802, 0.0
      %v940 = vmax.f32 %v804, 0.0
      %v941 = vmax.f32 %v806, 0.0
      %v942 = vmax.f32 %v810, 0.0
      %v943 = vmax.f32 %v812, 0.0
      %v944 = vmax.f32 %v814, 0.0
      %v945 = vmax.f32 %v816, 0.0
      %v946 = vmax.f32 %v820, 0.0
      %v947 = vmax.f32 %v822, 0.0
      %v948 = vmax.f32 %v824, 0.0
      %v949 = vmax.f32 %v826, 0.0
      %v950 = vmax.f32 %v830, 0.0
      %v951 = vmax.f32 %v832, 0.0
      %v952 = vmax.f32 %v834, 0.0
      %v953 = vmax.f32 %v836, 0.0
      %v954 = vmax.f32 %v840, 0.0
      %v955 = vmax.f32 %v842, 0.0
      %v956 = vmax.f32 %v844, 0.0
      %v957 = vmax.f32 %v846, 0.0
      %v958 = vmax.f32 %v850, 0.0
      %v959 = vmax.f32 %v852, 0.0
      %v960 = vmax.f32 %v854, 0.0
      %v961 = vmax.f32 %v856, 0.0
      %v962 = vmax.f32 %v860, 0.0
      %v963 = vmax.f32 %v862, 0.0
      %v964 = vpack.c.bf16 %v868, %v866
      %v965 = vpack.c.bf16 %v869, %v867
      %v966 = vpack.c.bf16 %v872, %v870
      %v967 = vpack.c.bf16 %v873, %v871
      %v968 = vpack.c.bf16 %v876, %v874
      %v969 = vpack.c.bf16 %v877, %v875
      %v970 = vpack.c.bf16 %v880, %v878
      %v971 = vpack.c.bf16 %v881, %v879
      %v972 = vpack.c.bf16 %v884, %v882
      %v973 = vpack.c.bf16 %v885, %v883
      %v974 = vpack.c.bf16 %v888, %v886
      %v975 = vpack.c.bf16 %v889, %v887
      %v976 = vpack.c.bf16 %v892, %v890
      %v977 = vpack.c.bf16 %v893, %v891
      %v978 = vpack.c.bf16 %v896, %v894
      %v979 = vpack.c.bf16 %v897, %v895
      %v980 = vpack.c.bf16 %v900, %v898
      %v981 = vpack.c.bf16 %v901, %v899
      %v982 = vpack.c.bf16 %v904, %v902
      %v983 = vpack.c.bf16 %v905, %v903
      %v984 = vpack.c.bf16 %v908, %v906
      %v985 = vpack.c.bf16 %v909, %v907
      %v986 = vpack.c.bf16 %v912, %v910
      %v987 = vpack.c.bf16 %v913, %v911
      %v988 = vpack.c.bf16 %v916, %v914
      %v989 = vpack.c.bf16 %v917, %v915
      %v990 = vpack.c.bf16 %v920, %v918
      %v991 = vpack.c.bf16 %v921, %v919
      %v992 = vpack.c.bf16 %v924, %v922
      %v993 = vpack.c.bf16 %v925, %v923
      %v994 = vpack.c.bf16 %v928, %v926
      %v995 = vpack.c.bf16 %v929, %v927
      %v996 = vpack.c.bf16 %v932, %v930
      %v997 = vpack.c.bf16 %v933, %v931
      %v998 = vpack.c.bf16 %v936, %v934
      %v999 = vpack.c.bf16 %v937, %v935
      %v1000 = vpack.c.bf16 %v940, %v938
      %v1001 = vpack.c.bf16 %v941, %v939
      %v1002 = vpack.c.bf16 %v944, %v942
      %v1003 = vpack.c.bf16 %v945, %v943
      %v1004 = vpack.c.bf16 %v948, %v946
      %v1005 = vpack.c.bf16 %v949, %v947
      %v1006 = vpack.c.bf16 %v952, %v950
      %v1007 = vpack.c.bf16 %v953, %v951
      %v1008 = vpack.c.bf16 %v956, %v954
      %v1009 = vpack.c.bf16 %v957, %v955
      %v1010 = vpack.c.bf16 %v960, %v958
      %v1011 = vpack.c.bf16 %v961, %v959
      %v1012 = vpack.c.bf16 %v962, %v962
      %v1013 = vpack.c.bf16 %v963, %v963
      %v1016 = vrot.slane %v964, 4
      %v1017 = vrot.slane %v965, 4
      %v1020 = vrot.slane %v970, 4
      %v1021 = vrot.slane %v971, 4
      %v1024 = vrot.slane %v972, 4
      %v1025 = vrot.slane %v973, 4
      %v1028 = vrot.slane %v978, 4
      %v1029 = vrot.slane %v979, 4
      %v1032 = vrot.slane %v966, 4
      %v1033 = vrot.slane %v967, 4
      %v1036 = vrot.slane %v974, 4
      %v1037 = vrot.slane %v975, 4
      %v1040 = vrot.slane %v980, 4
      %v1041 = vrot.slane %v981, 4
      %v1044 = vrot.slane %v968, 4
      %v1045 = vrot.slane %v969, 4
      %v1048 = vrot.slane %v976, 4
      %v1049 = vrot.slane %v977, 4
      %v1052 = vrot.slane %v982, 4
      %v1053 = vrot.slane %v983, 4
      %v1056 = vrot.slane %v984, 4
      %v1057 = vrot.slane %v985, 4
      %v1060 = vrot.slane %v986, 4
      %v1061 = vrot.slane %v987, 4
      %v1064 = vrot.slane %v992, 4
      %v1065 = vrot.slane %v993, 4
      %v1068 = vrot.slane %v988, 4
      %v1069 = vrot.slane %v989, 4
      %v1072 = vrot.slane %v994, 4
      %v1073 = vrot.slane %v995, 4
      %v1076 = vrot.slane %v990, 4
      %v1077 = vrot.slane %v991, 4
      %v1080 = vrot.slane %v996, 4
      %v1081 = vrot.slane %v997, 4
      %v1084 = vrot.slane %v998, 4
      %v1085 = vrot.slane %v999, 4
      %v1088 = vrot.slane %v1000, 4
      %v1089 = vrot.slane %v1001, 4
      %v1092 = vrot.slane %v1006, 4
      %v1093 = vrot.slane %v1007, 4
      %v1096 = vrot.slane %v1002, 4
      %v1097 = vrot.slane %v1003, 4
      %v1100 = vrot.slane %v1008, 4
      %v1101 = vrot.slane %v1009, 4
      %v1108 = vrot.slane %v1004, 4
      %v1109 = vrot.slane %v1005, 4
      %v1114 = vrot.slane %v1010, 4
      %v1115 = vrot.slane %v1011, 4
      %v1118 = vrot.slane %v1032, 4
      %v1119 = vrot.slane %v1033, 4
      %v1120 = vrot.slane %v1024, 4
      %v1121 = vrot.slane %v1025, 4
      %v1122 = vrot.slane %v1036, 4
      %v1123 = vrot.slane %v1037, 4
      %v1124 = vrot.slane %v1040, 4
      %v1125 = vrot.slane %v1041, 4
      %v1126 = vrot.slane %v1028, 4
      %v1127 = vrot.slane %v1029, 4
      %v1128 = vrot.slane %v1056, 4
      %v1129 = vrot.slane %v1057, 4
      %v1130 = vrot.slane %v1060, 4
      %v1131 = vrot.slane %v1061, 4
      %v1132 = vrot.slane %v1064, 4
      %v1133 = vrot.slane %v1065, 4
      %v1134 = vrot.slane %v1052, 4
      %v1135 = vrot.slane %v1053, 4
      %v1136 = vrot.slane %v1068, 4
      %v1137 = vrot.slane %v1069, 4
      %v1138 = vrot.slane %v1076, 4
      %v1139 = vrot.slane %v1077, 4
      %v1140 = vrot.slane %v1080, 4
      %v1141 = vrot.slane %v1081, 4
      %v1142 = vrot.slane %v1072, 4
      %v1143 = vrot.slane %v1073, 4
      %v1144 = vrot.slane %v1088, 4
      %v1145 = vrot.slane %v1089, 4
      %v1146 = vrot.slane %v1096, 4
      %v1147 = vrot.slane %v1097, 4
      %v1148 = vrot.slane %v1100, 4
      %v1149 = vrot.slane %v1101, 4
      %vm1150 = vcmask 1043456
      %v1153 = vsel %vm1150, %v964, %v1032
      %v1157 = vsel %vm1150, %v965, %v1033
      %v1161 = vsel %vm1150, %v1016, %v1118
      %v1165 = vsel %vm1150, %v1017, %v1119
      %v1169 = vsel %vm1150, %v966, %v1044
      %v1173 = vsel %vm1150, %v967, %v1045
      %v1177 = vsel %vm1150, %v1020, %v1120
      %v1181 = vsel %vm1150, %v1021, %v1121
      %v1185 = vsel %vm1150, %v972, %v1036
      %v1189 = vsel %vm1150, %v973, %v1037
      %v1193 = vsel %vm1150, %v1024, %v1122
      %v1197 = vsel %vm1150, %v1025, %v1123
      %v1201 = vsel %vm1150, %v978, %v1040
      %v1205 = vsel %vm1150, %v979, %v1041
      %v1209 = vsel %vm1150, %v1028, %v1124
      %v1213 = vsel %vm1150, %v1029, %v1125
      %v1217 = vsel %vm1150, %v980, %v1052
      %v1221 = vsel %vm1150, %v981, %v1053
      %v1224 = vsel %vm1150, %v968, %v1028
      %v1227 = vsel %vm1150, %v969, %v1029
      %v1230 = vsel %vm1150, %v1044, %v1126
      %v1233 = vsel %vm1150, %v1045, %v1127
      %v1236 = vsel %vm1150, %v970, %v1040
      %v1239 = vsel %vm1150, %v971, %v1041
      %v1242 = vsel %vm1150, %v1036, %v1128
      %v1245 = vsel %vm1150, %v1037, %v1129
      %v1249 = vsel %vm1150, %v976, %v1060
      %v1253 = vsel %vm1150, %v977, %v1061
      %v1257 = vsel %vm1150, %v1048, %v1130
      %v1261 = vsel %vm1150, %v1049, %v1131
      %v1265 = vsel %vm1150, %v982, %v1064
      %v1269 = vsel %vm1150, %v983, %v1065
      %v1272 = vsel %vm1150, %v1052, %v1132
      %v1275 = vsel %vm1150, %v1053, %v1133
      %v1279 = vsel %vm1150, %v984, %v1072
      %v1283 = vsel %vm1150, %v985, %v1073
      %v1286 = vsel %vm1150, %v1040, %v1134
      %v1289 = vsel %vm1150, %v1041, %v1135
      %v1292 = vsel %vm1150, %v982, %v1056
      %v1295 = vsel %vm1150, %v983, %v1057
      %v1298 = vsel %vm1150, %v1060, %v1136
      %v1301 = vsel %vm1150, %v1061, %v1137
      %v1305 = vsel %vm1150, %v988, %v1076
      %v1309 = vsel %vm1150, %v989, %v1077
      %v1313 = vsel %vm1150, %v1068, %v1138
      %v1317 = vsel %vm1150, %v1069, %v1139
      %v1321 = vsel %vm1150, %v994, %v1080
      %v1325 = vsel %vm1150, %v995, %v1081
      %v1328 = vsel %vm1150, %v1072, %v1140
      %v1331 = vsel %vm1150, %v1073, %v1141
      %v1335 = vsel %vm1150, %v996, %v1084
      %v1339 = vsel %vm1150, %v997, %v1085
      %v1342 = vsel %vm1150, %v992, %v1072
      %v1345 = vsel %vm1150, %v993, %v1073
      %v1348 = vsel %vm1150, %v1064, %v1142
      %v1351 = vsel %vm1150, %v1065, %v1143
      %v1354 = vsel %vm1150, %v1084, %v1144
      %v1357 = vsel %vm1150, %v1085, %v1145
      %v1361 = vsel %vm1150, %v1000, %v1096
      %v1365 = vsel %vm1150, %v1001, %v1097
      %v1369 = vsel %vm1150, %v1088, %v1146
      %v1373 = vsel %vm1150, %v1089, %v1147
      %v1377 = vsel %vm1150, %v1006, %v1100
      %v1381 = vsel %vm1150, %v1007, %v1101
      %v1385 = vsel %vm1150, %v1092, %v1148
      %v1389 = vsel %vm1150, %v1093, %v1149
      %v1393 = vsel %vm1150, %v1008, %v1114
      %v1397 = vsel %vm1150, %v1009, %v1115
      %v1399 = vld [vmem:[%s3] sm:$0xf]
      %v1400 = vld [vmem:[%s3 + $0x4] sm:$0xf]
      %v1401 = vld [vmem:[%s3 + $0x8] sm:$0xf]
      %v1402 = vld [vmem:[%s3 + $0xc] sm:$0xf]
      %v1403 = vld [vmem:[%s3 + $0x10] sm:$0xf]
      %v1404 = vld [vmem:[%s3 + $0x14] sm:$0xf]
      %v1405 = vld [vmem:[%s3 + $0x18] sm:$0xf]
      %v1406 = vld [vmem:[%s3 + $0x1c] sm:$0xf]
      %v1407 = vld [vmem:[%s3 + $0x20] sm:$0xf]
      %v1408 = vld [vmem:[%s3 + $0x24] sm:$0xf]
      %v1409 = vld [vmem:[%s3 + $0x28] sm:$0xf]
      %v1410 = vld [vmem:[%s3 + $0x2c] sm:$0xf]
      %v1411 = vld [vmem:[%s3 + $0x30] sm:$0xf]
      %v1412 = vld [vmem:[%s3 + $0x34] sm:$0xf]
      %v1413 = vld [vmem:[%s3 + $0x38] sm:$0xf]
      %v1414 = vld [vmem:[%s3 + $0x3c] sm:$0xf]
      %v1415 = vld [vmem:[%s3 + $0x40] sm:$0xf]
      %v1416 = vld [vmem:[%s3 + $0x44] sm:$0xf]
      %v1417 = vld [vmem:[%s3 + $0x48] sm:$0xf]
      %v1418 = vld [vmem:[%s3 + $0x4c] sm:$0xf]
      %v1419 = vld [vmem:[%s3 + $0x50] sm:$0xf]
      %v1420 = vld [vmem:[%s3 + $0x54] sm:$0xf]
      %v1421 = vld [vmem:[%s3 + $0x58] sm:$0xf]
      %v1422 = vld [vmem:[%s3 + $0x5c] sm:$0xf]
      %v1423 = vld [vmem:[%s3 + $0x60] sm:$0xf]
      %v1424 = vld [vmem:[%s3 + $0x64] sm:$0xf]
      %v1425 = vld [vmem:[%s3 + $0x68] sm:$0xf]
      %v1426 = vld [vmem:[%s3 + $0x6c] sm:$0xf]
      %v1427 = vld [vmem:[%s3 + $0x70] sm:$0xf]
      %v1428 = vld [vmem:[%s3 + $0x74] sm:$0xf]
      %v1429 = vld [vmem:[%s3 + $0x78] sm:$0xf]
      %v1430 = vld [vmem:[%s3 + $0x7c] sm:$0xf]
      %v1431 = vld [vmem:[%s3 + $0x80] sm:$0xf]
      %v1432 = vld [vmem:[%s3 + $0x84] sm:$0xf]
      %v1433 = vld [vmem:[%s3 + $0x88] sm:$0xf]
      %v1434 = vld [vmem:[%s3 + $0x8c] sm:$0xf]
      %v1435 = vld [vmem:[%s3 + $0x90] sm:$0xf]
      %v1436 = vld [vmem:[%s3 + $0x94] sm:$0xf]
      %v1437 = vld [vmem:[%s3 + $0x98] sm:$0xf]
      %v1438 = vld [vmem:[%s3 + $0x9c] sm:$0xf]
      %v1439 = vld [vmem:[%s3 + $0xa0] sm:$0xf]
      %v1440 = vld [vmem:[%s3 + $0xa4] sm:$0xf]
      %v1441 = vld [vmem:[%s3 + $0xa8] sm:$0xf]
      %v1442 = vld [vmem:[%s3 + $0xac] sm:$0xf]
      %v1443 = vld [vmem:[%s3 + $0xb0] sm:$0xf]
      %v1444 = vld [vmem:[%s3 + $0xb4] sm:$0xf]
      %v1445 = vld [vmem:[%s3 + $0xb8] sm:$0xf]
      %v1446 = vld [vmem:[%s3 + $0xbc] sm:$0xf]
      %v1447 = vld [vmem:[%s3 + $0xc0] sm:$0xf]
      %v1448 = vld [vmem:[%s3 + $0xc4] sm:$0xf]
      %v1449 = vld [vmem:[%s3 + $0xc8] sm:$0xf]
      %v1450 = vld [vmem:[%s3 + $0xcc] sm:$0xf]
      %v1451 = vld [vmem:[%s3 + $0xd0] sm:$0xf]
      %v1452 = vld [vmem:[%s3 + $0xd4] sm:$0xf]
      %v1453 = vld [vmem:[%s3 + $0xd8] sm:$0xf]
      %v1454 = vld [vmem:[%s3 + $0xdc] sm:$0xf]
      %v1455 = vld [vmem:[%s3 + $0xe0] sm:$0xf]
      %v1456 = vld [vmem:[%s3 + $0xe4] sm:$0xf]
      %v1457 = vld [vmem:[%s3 + $0xe8] sm:$0xf]
      %v1458 = vld [vmem:[%s3 + $0xec] sm:$0xf]
      %v1459 = vld [vmem:[%s3 + $0xf0] sm:$0xf]
      %v1460 = vld [vmem:[%s3 + $0xf4] sm:$0xf]
      %v1461 = vld [vmem:[%s3 + $0xf8] sm:$0xf]
      %v1462 = vld [vmem:[%s3 + $0xfc] sm:$0xf]
      %v1463 = vld [vmem:[%s3 + $0x100] sm:$0xf]
      %v1464 = vld [vmem:[%s3 + $0x104] sm:$0xf]
      %v1465 = vld [vmem:[%s3 + $0x108] sm:$0xf]
      %v1466 = vld [vmem:[%s3 + $0x10c] sm:$0xf]
      %v1467 = vld [vmem:[%s3 + $0x110] sm:$0xf]
      %v1468 = vld [vmem:[%s3 + $0x114] sm:$0xf]
      %v1469 = vld [vmem:[%s3 + $0x118] sm:$0xf]
      %v1470 = vld [vmem:[%s3 + $0x11c] sm:$0xf]
      %v1471 = vld [vmem:[%s3 + $0x120] sm:$0xf]
      %v1472 = vld [vmem:[%s3 + $0x124] sm:$0xf]
      %v1473 = vld [vmem:[%s3 + $0x128] sm:$0xf]
      %v1474 = vld [vmem:[%s3 + $0x12c] sm:$0xf]
      %v1475 = vld [vmem:[%s3 + $0x130] sm:$0xf]
      %v1476 = vld [vmem:[%s3 + $0x134] sm:$0xf]
      %v1477 = vld [vmem:[%s3 + $0x138] sm:$0xf]
      %v1478 = vld [vmem:[%s3 + $0x13c] sm:$0xf]
      %v1479 = vld [vmem:[%s3 + $0x140] sm:$0xf]
      %v1480 = vld [vmem:[%s3 + $0x144] sm:$0xf]
      %v1481 = vld [vmem:[%s3 + $0x148] sm:$0xf]
      %v1482 = vld [vmem:[%s3 + $0x14c] sm:$0xf]
      %v1483 = vld [vmem:[%s3 + $0x150] sm:$0xf]
      %v1484 = vld [vmem:[%s3 + $0x154] sm:$0xf]
      %v1485 = vld [vmem:[%s3 + $0x158] sm:$0xf]
      %v1486 = vld [vmem:[%s3 + $0x15c] sm:$0xf]
      %v1487 = vld [vmem:[%s3 + $0x160] sm:$0xf]
      %v1488 = vld [vmem:[%s3 + $0x164] sm:$0xf]
      %v1489 = vld [vmem:[%s3 + $0x168] sm:$0xf]
      %v1490 = vld [vmem:[%s3 + $0x16c] sm:$0xf]
      %v1491 = vld [vmem:[%s3 + $0x170] sm:$0xf]
      %v1492 = vld [vmem:[%s3 + $0x174] sm:$0xf]
      %v1493 = vld [vmem:[%s3 + $0x178] sm:$0xf]
      %v1494 = vld [vmem:[%s3 + $0x17c] sm:$0xf]
      %v1495 = vld [vmem:[%s3 + $0x180] sm:$0xf]
      %v1496 = vld [vmem:[%s3 + $0x184] sm:$0xf]
      %v1497 = vld [vmem:[%s3 + $0x188] sm:$0xf]
      %v1498 = vld [vmem:[%s3 + $0x18c] sm:$0xf]
      %v1499 = vld [vmem:[%s3 + $0x190] sm:$0xf]
      %v1500 = vld [vmem:[%s3 + $0x194] sm:$0xf]
      %v1501 = vld [vmem:[%s3 + $0x198] sm:$0xf]
      %v1502 = vld [vmem:[%s3 + $0x19c] sm:$0xf]
      %v1503 = vld [vmem:[%s3 + $0x1a0] sm:$0xf]
      %v1504 = vld [vmem:[%s3 + $0x1a4] sm:$0xf]
      %v1505 = vld [vmem:[%s3 + $0x1a8] sm:$0xf]
      %v1506 = vld [vmem:[%s3 + $0x1ac] sm:$0xf]
      %v1507 = vld [vmem:[%s3 + $0x1b0] sm:$0xf]
      %v1508 = vld [vmem:[%s3 + $0x1b4] sm:$0xf]
      %v1509 = vld [vmem:[%s3 + $0x1b8] sm:$0xf]
      %v1510 = vld [vmem:[%s3 + $0x1bc] sm:$0xf]
      %v1511 = vld [vmem:[%s3 + $0x1c0] sm:$0xf]
      %v1512 = vld [vmem:[%s3 + $0x1c4] sm:$0xf]
      %v1513 = vld [vmem:[%s3 + $0x1c8] sm:$0xf]
      %v1514 = vld [vmem:[%s3 + $0x1cc] sm:$0xf]
      %v1515 = vld [vmem:[%s3 + $0x1d0] sm:$0xf]
      %v1516 = vld [vmem:[%s3 + $0x1d4] sm:$0xf]
      %v1517 = vld [vmem:[%s3 + $0x1d8] sm:$0xf]
      %v1518 = vld [vmem:[%s3 + $0x1dc] sm:$0xf]
      %v1519 = vld [vmem:[%s3 + $0x1e0] sm:$0xf]
      %v1520 = vld [vmem:[%s3 + $0x1e4] sm:$0xf]
      %v1521 = vld [vmem:[%s3 + $0x1e8] sm:$0xf]
      %v1522 = vld [vmem:[%s3 + $0x1ec] sm:$0xf]
      %v1523 = vld [vmem:[%s3 + $0x1f0] sm:$0xf]
      %v1524 = vld [vmem:[%s3 + $0x1f4] sm:$0xf]
      %v1525 = vld [vmem:[%s3 + $0x1f8] sm:$0xf]
      %v1526 = vld [vmem:[%s3 + $0x1fc] sm:$0xf]
      %v1527 = vld [vmem:[%s3 + $0x200] sm:$0xf]
      %v1528 = vld [vmem:[%s3 + $0x204] sm:$0xf]
      %v1529 = vld [vmem:[%s3 + $0x208] sm:$0xf]
      %v1530 = vld [vmem:[%s3 + $0x20c] sm:$0xf]
      %v1531 = vld [vmem:[%s3 + $0x210] sm:$0xf]
      %v1532 = vld [vmem:[%s3 + $0x214] sm:$0xf]
      %v1533 = vld [vmem:[%s3 + $0x218] sm:$0xf]
      %v1534 = vld [vmem:[%s3 + $0x21c] sm:$0xf]
      %v1535 = vld [vmem:[%s3 + $0x220] sm:$0xf]
      %v1536 = vld [vmem:[%s3 + $0x224] sm:$0xf]
      %v1537 = vld [vmem:[%s3 + $0x228] sm:$0xf]
      %v1538 = vld [vmem:[%s3 + $0x22c] sm:$0xf]
      %v1539 = vld [vmem:[%s3 + $0x230] sm:$0xf]
      %v1540 = vld [vmem:[%s3 + $0x234] sm:$0xf]
      %v1541 = vld [vmem:[%s3 + $0x238] sm:$0xf]
      %v1542 = vld [vmem:[%s3 + $0x23c] sm:$0xf]
      %v1543 = vld [vmem:[%s3 + $0x240] sm:$0xf]
      %v1544 = vld [vmem:[%s3 + $0x244] sm:$0xf]
      %v1545 = vld [vmem:[%s3 + $0x248] sm:$0xf]
      %v1546 = vld [vmem:[%s3 + $0x24c] sm:$0xf]
      %v1547 = vld [vmem:[%s3 + $0x250] sm:$0xf]
      %v1548 = vld [vmem:[%s3 + $0x254] sm:$0xf]
      %v1549 = vld [vmem:[%s3 + $0x258] sm:$0xf]
      %v1550 = vld [vmem:[%s3 + $0x25c] sm:$0xf]
      %v1551 = vld [vmem:[%s3 + $0x260] sm:$0xf]
      %v1552 = vld [vmem:[%s3 + $0x264] sm:$0xf]
      %v1553 = vld [vmem:[%s3 + $0x268] sm:$0xf]
      %v1554 = vld [vmem:[%s3 + $0x26c] sm:$0xf]
      %v1555 = vld [vmem:[%s3 + $0x270] sm:$0xf]
      %v1556 = vld [vmem:[%s3 + $0x274] sm:$0xf]
      %v1557 = vld [vmem:[%s3 + $0x278] sm:$0xf]
      %v1558 = vld [vmem:[%s3 + $0x27c] sm:$0xf]
      %v1559 = vld [vmem:[%s3 + $0x280] sm:$0xf]
      %v1560 = vld [vmem:[%s3 + $0x284] sm:$0xf]
      %v1561 = vld [vmem:[%s3 + $0x288] sm:$0xf]
      %v1562 = vld [vmem:[%s3 + $0x28c] sm:$0xf]
      %v1563 = vld [vmem:[%s3 + $0x290] sm:$0xf]
      %v1564 = vld [vmem:[%s3 + $0x294] sm:$0xf]
      %v1565 = vld [vmem:[%s3 + $0x298] sm:$0xf]
      %v1566 = vld [vmem:[%s3 + $0x29c] sm:$0xf]
      %v1567 = vld [vmem:[%s3 + $0x2a0] sm:$0xf]
      %v1568 = vld [vmem:[%s3 + $0x2a4] sm:$0xf]
      %v1569 = vld [vmem:[%s3 + $0x2a8] sm:$0xf]
      %v1570 = vld [vmem:[%s3 + $0x2ac] sm:$0xf]
      %v1571 = vld [vmem:[%s3 + $0x2b0] sm:$0xf]
      %v1572 = vld [vmem:[%s3 + $0x2b4] sm:$0xf]
      %v1573 = vld [vmem:[%s3 + $0x2b8] sm:$0xf]
      %v1574 = vld [vmem:[%s3 + $0x2bc] sm:$0xf]
      %v1575 = vld [vmem:[%s3 + $0x2c0] sm:$0xf]
      %v1576 = vld [vmem:[%s3 + $0x2c4] sm:$0xf]
      %v1577 = vld [vmem:[%s3 + $0x2c8] sm:$0xf]
      %v1578 = vld [vmem:[%s3 + $0x2cc] sm:$0xf]
      %v1579 = vld [vmem:[%s3 + $0x2d0] sm:$0xf]
      %v1580 = vld [vmem:[%s3 + $0x2d4] sm:$0xf]
      %v1581 = vld [vmem:[%s3 + $0x2d8] sm:$0xf]
      %v1582 = vld [vmem:[%s3 + $0x2dc] sm:$0xf]
      %v1583 = vld [vmem:[%s3 + $0x2e0] sm:$0xf]
      %v1584 = vld [vmem:[%s3 + $0x2e4] sm:$0xf]
      %v1585 = vld [vmem:[%s3 + $0x2e8] sm:$0xf]
      %v1586 = vld [vmem:[%s3 + $0x2ec] sm:$0xf]
      %v1587 = vld [vmem:[%s3 + $0x2f0] sm:$0xf]
      %v1588 = vld [vmem:[%s3 + $0x2f4] sm:$0xf]
      %v1589 = vld [vmem:[%s3 + $0x2f8] sm:$0xf]
      %v1590 = vld [vmem:[%s3 + $0x2fc] sm:$0xf]
      %v1591 = vld [vmem:[%s3 + $0x300] sm:$0xf]
      %v1592 = vld [vmem:[%s3 + $0x304] sm:$0xf]
      %v1593 = vld [vmem:[%s3 + $0x308] sm:$0xf]
      %v1594 = vld [vmem:[%s3 + $0x30c] sm:$0xf]
      %v1595 = vld [vmem:[%s3 + $0x310] sm:$0xf]
      %v1596 = vld [vmem:[%s3 + $0x314] sm:$0xf]
      %v1597 = vld [vmem:[%s3 + $0x318] sm:$0xf]
      %v1598 = vld [vmem:[%s3 + $0x31c] sm:$0xf]
      %v1599 = vld [vmem:[%s3 + $0x320] sm:$0xf]
      %v1600 = vld [vmem:[%s3 + $0x324] sm:$0xf]
      %v1601 = vld [vmem:[%s3 + $0x328] sm:$0xf]
      %v1602 = vld [vmem:[%s3 + $0x32c] sm:$0xf]
      %v1603 = vld [vmem:[%s3 + $0x330] sm:$0xf]
      %v1604 = vld [vmem:[%s3 + $0x334] sm:$0xf]
      %v1605 = vld [vmem:[%s3 + $0x338] sm:$0xf]
      %v1606 = vld [vmem:[%s3 + $0x33c] sm:$0xf]
      %v1607 = vld [vmem:[%s3 + $0x340] sm:$0xf]
      %v1608 = vld [vmem:[%s3 + $0x344] sm:$0xf]
      %v1609 = vld [vmem:[%s3 + $0x348] sm:$0xf]
      %v1610 = vld [vmem:[%s3 + $0x34c] sm:$0xf]
      %v1611 = vld [vmem:[%s3 + $0x350] sm:$0xf]
      %v1612 = vld [vmem:[%s3 + $0x354] sm:$0xf]
      %v1613 = vld [vmem:[%s3 + $0x358] sm:$0xf]
      %v1614 = vld [vmem:[%s3 + $0x35c] sm:$0xf]
      %v1615 = vld [vmem:[%s3 + $0x360] sm:$0xf]
      %v1616 = vld [vmem:[%s3 + $0x364] sm:$0xf]
      %v1617 = vld [vmem:[%s3 + $0x368] sm:$0xf]
      %v1618 = vld [vmem:[%s3 + $0x36c] sm:$0xf]
      %v1619 = vld [vmem:[%s3 + $0x370] sm:$0xf]
      %v1620 = vld [vmem:[%s3 + $0x374] sm:$0xf]
      %v1621 = vld [vmem:[%s3 + $0x378] sm:$0xf]
      %v1622 = vld [vmem:[%s3 + $0x37c] sm:$0xf]
      %v1623 = vld [vmem:[%s3 + $0x380] sm:$0xf]
      %v1624 = vld [vmem:[%s3 + $0x384] sm:$0xf]
      %v1625 = vld [vmem:[%s3 + $0x388] sm:$0xf]
      %v1626 = vld [vmem:[%s3 + $0x38c] sm:$0xf]
      %v1627 = vld [vmem:[%s3 + $0x390] sm:$0xf]
      %v1628 = vld [vmem:[%s3 + $0x394] sm:$0xf]
      %v1629 = vld [vmem:[%s3 + $0x398] sm:$0xf]
      %v1630 = vld [vmem:[%s3 + $0x39c] sm:$0xf]
      %v1631 = vld [vmem:[%s3 + $0x3a0] sm:$0xf]
      %v1632 = vld [vmem:[%s3 + $0x3a4] sm:$0xf]
      %v1633 = vld [vmem:[%s3 + $0x3a8] sm:$0xf]
      %v1634 = vld [vmem:[%s3 + $0x3ac] sm:$0xf]
      %v1635 = vld [vmem:[%s3 + $0x3b0] sm:$0xf]
      %v1636 = vld [vmem:[%s3 + $0x3b4] sm:$0xf]
      %v1637 = vld [vmem:[%s3 + $0x3b8] sm:$0xf]
      %v1638 = vld [vmem:[%s3 + $0x3bc] sm:$0xf]
      %v1639 = vld [vmem:[%s3 + $0x3c0] sm:$0xf]
      %v1640 = vld [vmem:[%s3 + $0x3c4] sm:$0xf]
      %v1641 = vld [vmem:[%s3 + $0x3c8] sm:$0xf]
      %v1642 = vld [vmem:[%s3 + $0x3cc] sm:$0xf]
      %v1643 = vld [vmem:[%s3 + $0x3d0] sm:$0xf]
      %v1644 = vld [vmem:[%s3 + $0x3d4] sm:$0xf]
      %v1645 = vld [vmem:[%s3 + $0x3d8] sm:$0xf]
      %v1646 = vld [vmem:[%s3 + $0x3dc] sm:$0xf]
      %v1647 = vld [vmem:[%s3 + $0x3e0] sm:$0xf]
      %v1648 = vld [vmem:[%s3 + $0x3e4] sm:$0xf]
      %v1649 = vld [vmem:[%s3 + $0x3e8] sm:$0xf]
      %v1650 = vld [vmem:[%s3 + $0x3ec] sm:$0xf]
      %v1651 = vld [vmem:[%s3 + $0x3f0] sm:$0xf]
      %v1652 = vld [vmem:[%s3 + $0x3f4] sm:$0xf]
      %v1653 = vld [vmem:[%s3 + $0x3f8] sm:$0xf]
      %v1654 = vld [vmem:[%s3 + $0x3fc] sm:$0xf]
      %v1655 = vld [vmem:[%s3 + $0x400] sm:$0xf]
      %v1656 = vld [vmem:[%s3 + $0x404] sm:$0xf]
      %v1657 = vld [vmem:[%s3 + $0x408] sm:$0xf]
      %v1658 = vld [vmem:[%s3 + $0x40c] sm:$0xf]
      %v1659 = vld [vmem:[%s3 + $0x410] sm:$0xf]
      %v1660 = vld [vmem:[%s3 + $0x414] sm:$0xf]
      %v1661 = vld [vmem:[%s3 + $0x418] sm:$0xf]
      %v1662 = vld [vmem:[%s3 + $0x41c] sm:$0xf]
      %v1663 = vld [vmem:[%s3 + $0x420] sm:$0xf]
      %v1664 = vld [vmem:[%s3 + $0x424] sm:$0xf]
      %v1665 = vld [vmem:[%s3 + $0x428] sm:$0xf]
      %v1666 = vld [vmem:[%s3 + $0x42c] sm:$0xf]
      %v1667 = vld [vmem:[%s3 + $0x430] sm:$0xf]
      %v1668 = vld [vmem:[%s3 + $0x434] sm:$0xf]
      %v1669 = vld [vmem:[%s3 + $0x438] sm:$0xf]
      %v1670 = vld [vmem:[%s3 + $0x43c] sm:$0xf]
      %v1671 = vld [vmem:[%s3 + $0x440] sm:$0xf]
      %v1672 = vld [vmem:[%s3 + $0x444] sm:$0xf]
      %v1673 = vld [vmem:[%s3 + $0x448] sm:$0xf]
      %v1674 = vld [vmem:[%s3 + $0x44c] sm:$0xf]
      %v1675 = vld [vmem:[%s3 + $0x450] sm:$0xf]
      %v1676 = vld [vmem:[%s3 + $0x454] sm:$0xf]
      %v1677 = vld [vmem:[%s3 + $0x458] sm:$0xf]
      %v1678 = vld [vmem:[%s3 + $0x45c] sm:$0xf]
      %v1679 = vld [vmem:[%s3 + $0x460] sm:$0xf]
      %v1680 = vld [vmem:[%s3 + $0x464] sm:$0xf]
      %v1681 = vld [vmem:[%s3 + $0x468] sm:$0xf]
      %v1682 = vld [vmem:[%s3 + $0x46c] sm:$0xf]
      %v1683 = vld [vmem:[%s3 + $0x470] sm:$0xf]
      %v1684 = vld [vmem:[%s3 + $0x474] sm:$0xf]
      %v1685 = vld [vmem:[%s3 + $0x478] sm:$0xf]
      %v1686 = vld [vmem:[%s3 + $0x47c] sm:$0xf]
      %v1687 = vld [vmem:[%s4] sm:$0x1]
      %v1689 = vlaneseq
      %v1690 = vshrl.u32 %v1689, 7
      %v1691 = vsub.s32 0, %v1690
      %v1692 = vrot.slane %v1687, %v1691
      %v1982 = vunpack.c.l.b16 %v1399
      %v1983 = vunpack.c.l.b16 %v1400
      %v1984 = vunpack.c.l.b16 %v1401
      %v1985 = vunpack.c.l.b16 %v1402
      %v1986 = vunpack.c.l.b16 %v1403
      %v1987 = vunpack.c.l.b16 %v1404
      %v1988 = vunpack.c.l.b16 %v1405
      %v1989 = vunpack.c.l.b16 %v1406
      %v1990 = vunpack.c.l.b16 %v1407
      %v1991 = vunpack.c.l.b16 %v1408
      %v1992 = vunpack.c.l.b16 %v1409
      %v1993 = vunpack.c.l.b16 %v1410
      %v1994 = vunpack.c.l.b16 %v1411
      %v1995 = vunpack.c.l.b16 %v1412
      %v1996 = vunpack.c.l.b16 %v1413
      %v1997 = vunpack.c.l.b16 %v1414
      %v1998 = vunpack.c.l.b16 %v1415
      %v1999 = vunpack.c.l.b16 %v1416
      %v2000 = vunpack.c.l.b16 %v1417
      %v2001 = vunpack.c.l.b16 %v1418
      %v2002 = vunpack.c.l.b16 %v1419
      %v2003 = vunpack.c.l.b16 %v1420
      %v2004 = vunpack.c.l.b16 %v1421
      %v2005 = vunpack.c.l.b16 %v1422
      %v2006 = vunpack.c.l.b16 %v1423
      %v2007 = vunpack.c.l.b16 %v1424
      %v2008 = vunpack.c.l.b16 %v1425
      %v2009 = vunpack.c.l.b16 %v1426
      %v2010 = vunpack.c.l.b16 %v1427
      %v2011 = vunpack.c.l.b16 %v1428
      %v2012 = vunpack.c.l.b16 %v1429
      %v2013 = vunpack.c.l.b16 %v1430
      %v2014 = vunpack.c.l.b16 %v1431
      %v2015 = vunpack.c.l.b16 %v1432
      %v2016 = vunpack.c.l.b16 %v1433
      %v2017 = vunpack.c.l.b16 %v1434
      %v2018 = vunpack.c.l.b16 %v1435
      %v2019 = vunpack.c.l.b16 %v1436
      %v2020 = vunpack.c.l.b16 %v1437
      %v2021 = vunpack.c.l.b16 %v1438
      %v2022 = vunpack.c.l.b16 %v1439
      %v2023 = vunpack.c.l.b16 %v1440
      %v2024 = vunpack.c.l.b16 %v1441
      %v2025 = vunpack.c.l.b16 %v1442
      %v2026 = vunpack.c.l.b16 %v1443
      %v2027 = vunpack.c.l.b16 %v1444
      %v2028 = vunpack.c.l.b16 %v1445
      %v2029 = vunpack.c.l.b16 %v1446
      %v2030 = vunpack.c.l.b16 %v1447
      %v2031 = vunpack.c.l.b16 %v1448
      %v2032 = vunpack.c.l.b16 %v1449
      %v2033 = vunpack.c.l.b16 %v1450
      %v2034 = vunpack.c.l.b16 %v1451
      %v2035 = vunpack.c.l.b16 %v1452
      %v2036 = vunpack.c.l.b16 %v1453
      %v2037 = vunpack.c.l.b16 %v1454
      %v2038 = vunpack.c.l.b16 %v1455
      %v2039 = vunpack.c.l.b16 %v1456
      %v2040 = vunpack.c.l.b16 %v1457
      %v2041 = vunpack.c.l.b16 %v1458
      %v2042 = vunpack.c.l.b16 %v1459
      %v2043 = vunpack.c.l.b16 %v1460
      %v2044 = vunpack.c.l.b16 %v1461
      %v2045 = vunpack.c.l.b16 %v1462
      %v2046 = vunpack.c.l.b16 %v1463
      %v2047 = vunpack.c.l.b16 %v1464
      %v2048 = vunpack.c.l.b16 %v1465
      %v2049 = vunpack.c.l.b16 %v1466
      %v2050 = vunpack.c.l.b16 %v1467
      %v2051 = vunpack.c.l.b16 %v1468
      %v2052 = vunpack.c.l.b16 %v1469
      %v2053 = vunpack.c.l.b16 %v1470
      %v2054 = vunpack.c.l.b16 %v1471
      %v2055 = vunpack.c.l.b16 %v1472
      %v2056 = vunpack.c.l.b16 %v1473
      %v2057 = vunpack.c.l.b16 %v1474
      %v2058 = vunpack.c.l.b16 %v1475
      %v2059 = vunpack.c.l.b16 %v1476
      %v2060 = vunpack.c.l.b16 %v1477
      %v2061 = vunpack.c.l.b16 %v1478
      %v2062 = vunpack.c.l.b16 %v1479
      %v2063 = vunpack.c.l.b16 %v1480
      %v2064 = vunpack.c.l.b16 %v1481
      %v2065 = vunpack.c.l.b16 %v1482
      %v2066 = vunpack.c.l.b16 %v1483
      %v2067 = vunpack.c.l.b16 %v1484
      %v2068 = vunpack.c.l.b16 %v1485
      %v2069 = vunpack.c.l.b16 %v1486
      %v2070 = vunpack.c.l.b16 %v1487
      %v2071 = vunpack.c.l.b16 %v1488
      %v2072 = vunpack.c.l.b16 %v1489
      %v2073 = vunpack.c.l.b16 %v1490
      %v2074 = vunpack.c.l.b16 %v1491
      %v2075 = vunpack.c.l.b16 %v1492
      %v2076 = vunpack.c.l.b16 %v1493
      %v2077 = vunpack.c.l.b16 %v1494
      %v2078 = vunpack.c.l.b16 %v1495
      %v2079 = vunpack.c.l.b16 %v1496
      %v2080 = vunpack.c.l.b16 %v1497
      %v2081 = vunpack.c.l.b16 %v1498
      %v2082 = vunpack.c.l.b16 %v1499
      %v2083 = vunpack.c.l.b16 %v1500
      %v2084 = vunpack.c.l.b16 %v1501
      %v2085 = vunpack.c.l.b16 %v1502
      %v2086 = vunpack.c.l.b16 %v1503
      %v2087 = vunpack.c.l.b16 %v1504
      %v2088 = vunpack.c.l.b16 %v1505
      %v2089 = vunpack.c.l.b16 %v1506
      %v2090 = vunpack.c.l.b16 %v1507
      %v2091 = vunpack.c.l.b16 %v1508
      %v2092 = vunpack.c.l.b16 %v1509
      %v2093 = vunpack.c.l.b16 %v1510
      %v2094 = vunpack.c.l.b16 %v1511
      %v2095 = vunpack.c.l.b16 %v1512
      %v2096 = vunpack.c.l.b16 %v1513
      %v2097 = vunpack.c.l.b16 %v1514
      %v2098 = vunpack.c.l.b16 %v1515
      %v2099 = vunpack.c.l.b16 %v1516
      %v2100 = vunpack.c.l.b16 %v1517
      %v2101 = vunpack.c.l.b16 %v1518
      %v2102 = vunpack.c.l.b16 %v1519
      %v2103 = vunpack.c.l.b16 %v1520
      %v2104 = vunpack.c.l.b16 %v1521
      %v2105 = vunpack.c.l.b16 %v1522
      %v2106 = vunpack.c.l.b16 %v1523
      %v2107 = vunpack.c.l.b16 %v1524
      %v2108 = vunpack.c.l.b16 %v1525
      %v2109 = vunpack.c.l.b16 %v1526
      %v2110 = vunpack.c.l.b16 %v1527
      %v2111 = vunpack.c.l.b16 %v1528
      %v2112 = vunpack.c.l.b16 %v1529
      %v2113 = vunpack.c.l.b16 %v1530
      %v2114 = vunpack.c.l.b16 %v1531
      %v2115 = vunpack.c.l.b16 %v1532
      %v2116 = vunpack.c.l.b16 %v1533
      %v2117 = vunpack.c.l.b16 %v1534
      %v2118 = vunpack.c.l.b16 %v1535
      %v2119 = vunpack.c.l.b16 %v1536
      %v2120 = vunpack.c.l.b16 %v1537
      %v2121 = vunpack.c.l.b16 %v1538
      %v2122 = vunpack.c.l.b16 %v1539
      %v2123 = vunpack.c.l.b16 %v1540
      %v2124 = vunpack.c.l.b16 %v1541
      %v2125 = vunpack.c.l.b16 %v1542
      %v2126 = vunpack.c.l.b16 %v1543
      %v2127 = vunpack.c.l.b16 %v1544
      %v2128 = vunpack.c.l.b16 %v1545
      %v2129 = vunpack.c.l.b16 %v1546
      %v2130 = vunpack.c.l.b16 %v1547
      %v2131 = vunpack.c.l.b16 %v1548
      %v2132 = vunpack.c.l.b16 %v1549
      %v2133 = vunpack.c.l.b16 %v1550
      %v2134 = vunpack.c.l.b16 %v1551
      %v2135 = vunpack.c.l.b16 %v1552
      %v2136 = vunpack.c.l.b16 %v1553
      %v2137 = vunpack.c.l.b16 %v1554
      %v2138 = vunpack.c.l.b16 %v1555
      %v2139 = vunpack.c.l.b16 %v1556
      %v2140 = vunpack.c.l.b16 %v1557
      %v2141 = vunpack.c.l.b16 %v1558
      %v2142 = vunpack.c.l.b16 %v1559
      %v2143 = vunpack.c.l.b16 %v1560
      %v2144 = vunpack.c.l.b16 %v1561
      %v2145 = vunpack.c.l.b16 %v1562
      %v2146 = vunpack.c.l.b16 %v1563
      %v2147 = vunpack.c.l.b16 %v1564
      %v2148 = vunpack.c.l.b16 %v1565
      %v2149 = vunpack.c.l.b16 %v1566
      %v2150 = vunpack.c.l.b16 %v1567
      %v2151 = vunpack.c.l.b16 %v1568
      %v2152 = vunpack.c.l.b16 %v1569
      %v2153 = vunpack.c.l.b16 %v1570
      %v2154 = vunpack.c.l.b16 %v1571
      %v2155 = vunpack.c.l.b16 %v1572
      %v2156 = vunpack.c.l.b16 %v1573
      %v2157 = vunpack.c.l.b16 %v1574
      %v2158 = vunpack.c.l.b16 %v1575
      %v2159 = vunpack.c.l.b16 %v1576
      %v2160 = vunpack.c.l.b16 %v1577
      %v2161 = vunpack.c.l.b16 %v1578
      %v2162 = vunpack.c.l.b16 %v1579
      %v2163 = vunpack.c.l.b16 %v1580
      %v2164 = vunpack.c.l.b16 %v1581
      %v2165 = vunpack.c.l.b16 %v1582
      %v2166 = vunpack.c.l.b16 %v1583
      %v2167 = vunpack.c.l.b16 %v1584
      %v2168 = vunpack.c.l.b16 %v1585
      %v2169 = vunpack.c.l.b16 %v1586
      %v2170 = vunpack.c.l.b16 %v1587
      %v2171 = vunpack.c.l.b16 %v1588
      %v2172 = vunpack.c.l.b16 %v1589
      %v2173 = vunpack.c.l.b16 %v1590
      %v2174 = vunpack.c.l.b16 %v1591
      %v2175 = vunpack.c.l.b16 %v1592
      %v2176 = vunpack.c.l.b16 %v1593
      %v2177 = vunpack.c.l.b16 %v1594
      %v2178 = vunpack.c.l.b16 %v1595
      %v2179 = vunpack.c.l.b16 %v1596
      %v2180 = vunpack.c.l.b16 %v1597
      %v2181 = vunpack.c.l.b16 %v1598
      %v2182 = vunpack.c.l.b16 %v1599
      %v2183 = vunpack.c.l.b16 %v1600
      %v2184 = vunpack.c.l.b16 %v1601
      %v2185 = vunpack.c.l.b16 %v1602
      %v2186 = vunpack.c.l.b16 %v1603
      %v2187 = vunpack.c.l.b16 %v1604
      %v2188 = vunpack.c.l.b16 %v1605
      %v2189 = vunpack.c.l.b16 %v1606
      %v2190 = vunpack.c.l.b16 %v1607
      %v2191 = vunpack.c.l.b16 %v1608
      %v2192 = vunpack.c.l.b16 %v1609
      %v2193 = vunpack.c.l.b16 %v1610
      %v2194 = vunpack.c.l.b16 %v1611
      %v2195 = vunpack.c.l.b16 %v1612
      %v2196 = vunpack.c.l.b16 %v1613
      %v2197 = vunpack.c.l.b16 %v1614
      %v2198 = vunpack.c.l.b16 %v1615
      %v2199 = vunpack.c.l.b16 %v1616
      %v2200 = vunpack.c.l.b16 %v1617
      %v2201 = vunpack.c.l.b16 %v1618
      %v2202 = vunpack.c.l.b16 %v1619
      %v2203 = vunpack.c.l.b16 %v1620
      %v2204 = vunpack.c.l.b16 %v1621
      %v2205 = vunpack.c.l.b16 %v1622
      %v2206 = vunpack.c.l.b16 %v1623
      %v2207 = vunpack.c.l.b16 %v1624
      %v2208 = vunpack.c.l.b16 %v1625
      %v2209 = vunpack.c.l.b16 %v1626
      %v2210 = vunpack.c.l.b16 %v1627
      %v2211 = vunpack.c.l.b16 %v1628
      %v2212 = vunpack.c.l.b16 %v1629
      %v2213 = vunpack.c.l.b16 %v1630
      %v2214 = vunpack.c.l.b16 %v1631
      %v2215 = vunpack.c.l.b16 %v1632
      %v2216 = vunpack.c.l.b16 %v1633
      %v2217 = vunpack.c.l.b16 %v1634
      %v2218 = vunpack.c.l.b16 %v1635
      %v2219 = vunpack.c.l.b16 %v1636
      %v2220 = vunpack.c.l.b16 %v1637
      %v2221 = vunpack.c.l.b16 %v1638
      %v2222 = vunpack.c.l.b16 %v1639
      %v2223 = vunpack.c.l.b16 %v1640
      %v2224 = vunpack.c.l.b16 %v1641
      %v2225 = vunpack.c.l.b16 %v1642
      %v2226 = vunpack.c.l.b16 %v1643
      %v2227 = vunpack.c.l.b16 %v1644
      %v2228 = vunpack.c.l.b16 %v1645
      %v2229 = vunpack.c.l.b16 %v1646
      %v2230 = vunpack.c.l.b16 %v1647
      %v2231 = vunpack.c.l.b16 %v1648
      %v2232 = vunpack.c.l.b16 %v1649
      %v2233 = vunpack.c.l.b16 %v1650
      %v2234 = vunpack.c.l.b16 %v1651
      %v2235 = vunpack.c.l.b16 %v1652
      %v2236 = vunpack.c.l.b16 %v1653
      %v2237 = vunpack.c.l.b16 %v1654
      %v2238 = vunpack.c.l.b16 %v1655
      %v2239 = vunpack.c.l.b16 %v1656
      %v2240 = vunpack.c.l.b16 %v1657
      %v2241 = vunpack.c.l.b16 %v1658
      %v2242 = vunpack.c.l.b16 %v1659
      %v2243 = vunpack.c.l.b16 %v1660
      %v2244 = vunpack.c.l.b16 %v1661
      %v2245 = vunpack.c.l.b16 %v1662
      %v2246 = vunpack.c.l.b16 %v1663
      %v2247 = vunpack.c.l.b16 %v1664
      %v2248 = vunpack.c.l.b16 %v1665
      %v2249 = vunpack.c.l.b16 %v1666
      %v2250 = vunpack.c.l.b16 %v1667
      %v2251 = vunpack.c.l.b16 %v1668
      %v2252 = vunpack.c.l.b16 %v1669
      %v2253 = vunpack.c.l.b16 %v1670
      %v2254 = vunpack.c.l.b16 %v1671
      %v2255 = vunpack.c.l.b16 %v1672
      %v2256 = vunpack.c.l.b16 %v1673
      %v2257 = vunpack.c.l.b16 %v1674
      %v2258 = vunpack.c.l.b16 %v1675
      %v2259 = vunpack.c.l.b16 %v1676
      %v2260 = vunpack.c.l.b16 %v1677
      %v2261 = vunpack.c.l.b16 %v1678
      %v2262 = vunpack.c.l.b16 %v1679
      %v2263 = vunpack.c.l.b16 %v1680
      %v2264 = vunpack.c.l.b16 %v1681
      %v2265 = vunpack.c.l.b16 %v1682
      %v2266 = vunpack.c.l.b16 %v1683
      %v2267 = vunpack.c.l.b16 %v1684
      %v2268 = vunpack.c.l.b16 %v1685
      %v2269 = vunpack.c.l.b16 %v1686
      %v2270 = vpack.c.b16 %v1983, %v1982
      %v2271 = vpack.c.b16 %v1985, %v1984
      %v2272 = vpack.c.b16 %v1987, %v1986
      %v2273 = vpack.c.b16 %v1989, %v1988
      %v2274 = vpack.c.b16 %v1991, %v1990
      %v2275 = vpack.c.b16 %v1993, %v1992
      %v2276 = vpack.c.b16 %v1995, %v1994
      %v2277 = vpack.c.b16 %v1997, %v1996
      %v2278 = vpack.c.b16 %v1999, %v1998
      %v2279 = vpack.c.b16 %v2001, %v2000
      %v2280 = vpack.c.b16 %v2003, %v2002
      %v2281 = vpack.c.b16 %v2005, %v2004
      %v2282 = vpack.c.b16 %v2007, %v2006
      %v2283 = vpack.c.b16 %v2009, %v2008
      %v2284 = vpack.c.b16 %v2011, %v2010
      %v2285 = vpack.c.b16 %v2013, %v2012
      %v2286 = vpack.c.b16 %v2015, %v2014
      %v2287 = vpack.c.b16 %v2017, %v2016
      %v2288 = vpack.c.b16 %v2019, %v2018
      %v2289 = vpack.c.b16 %v2021, %v2020
      %v2290 = vpack.c.b16 %v2023, %v2022
      %v2291 = vpack.c.b16 %v2025, %v2024
      %v2292 = vpack.c.b16 %v2027, %v2026
      %v2293 = vpack.c.b16 %v2029, %v2028
      %v2294 = vpack.c.b16 %v2031, %v2030
      %v2295 = vpack.c.b16 %v2033, %v2032
      %v2296 = vpack.c.b16 %v2035, %v2034
      %v2297 = vpack.c.b16 %v2037, %v2036
      %v2298 = vpack.c.b16 %v2039, %v2038
      %v2299 = vpack.c.b16 %v2041, %v2040
      %v2300 = vpack.c.b16 %v2043, %v2042
      %v2301 = vpack.c.b16 %v2045, %v2044
      %v2302 = vpack.c.b16 %v2047, %v2046
      %v2303 = vpack.c.b16 %v2049, %v2048
      %v2304 = vpack.c.b16 %v2051, %v2050
      %v2305 = vpack.c.b16 %v2053, %v2052
      %v2306 = vpack.c.b16 %v2055, %v2054
      %v2307 = vpack.c.b16 %v2057, %v2056
      %v2308 = vpack.c.b16 %v2059, %v2058
      %v2309 = vpack.c.b16 %v2061, %v2060
      %v2310 = vpack.c.b16 %v2063, %v2062
      %v2311 = vpack.c.b16 %v2065, %v2064
      %v2312 = vpack.c.b16 %v2067, %v2066
      %v2313 = vpack.c.b16 %v2069, %v2068
      %v2314 = vpack.c.b16 %v2071, %v2070
      %v2315 = vpack.c.b16 %v2073, %v2072
      %v2316 = vpack.c.b16 %v2075, %v2074
      %v2317 = vpack.c.b16 %v2077, %v2076
      %v2318 = vpack.c.b16 %v2079, %v2078
      %v2319 = vpack.c.b16 %v2081, %v2080
      %v2320 = vpack.c.b16 %v2083, %v2082
      %v2321 = vpack.c.b16 %v2085, %v2084
      %v2322 = vpack.c.b16 %v2087, %v2086
      %v2323 = vpack.c.b16 %v2089, %v2088
      %v2324 = vpack.c.b16 %v2091, %v2090
      %v2325 = vpack.c.b16 %v2093, %v2092
      %v2326 = vpack.c.b16 %v2095, %v2094
      %v2327 = vpack.c.b16 %v2097, %v2096
      %v2328 = vpack.c.b16 %v2099, %v2098
      %v2329 = vpack.c.b16 %v2101, %v2100
      %v2330 = vpack.c.b16 %v2103, %v2102
      %v2331 = vpack.c.b16 %v2105, %v2104
      %v2332 = vpack.c.b16 %v2107, %v2106
      %v2333 = vpack.c.b16 %v2109, %v2108
      %v2334 = vpack.c.b16 %v2111, %v2110
      %v2335 = vpack.c.b16 %v2113, %v2112
      %v2336 = vpack.c.b16 %v2115, %v2114
      %v2337 = vpack.c.b16 %v2117, %v2116
      %v2338 = vpack.c.b16 %v2119, %v2118
      %v2339 = vpack.c.b16 %v2121, %v2120
      %v2340 = vpack.c.b16 %v2123, %v2122
      %v2341 = vpack.c.b16 %v2125, %v2124
      %v2342 = vpack.c.b16 %v2127, %v2126
      %v2343 = vpack.c.b16 %v2129, %v2128
      %v2344 = vpack.c.b16 %v2131, %v2130
      %v2345 = vpack.c.b16 %v2133, %v2132
      %v2346 = vpack.c.b16 %v2135, %v2134
      %v2347 = vpack.c.b16 %v2137, %v2136
      %v2348 = vpack.c.b16 %v2139, %v2138
      %v2349 = vpack.c.b16 %v2141, %v2140
      %v2350 = vpack.c.b16 %v2143, %v2142
      %v2351 = vpack.c.b16 %v2145, %v2144
      %v2352 = vpack.c.b16 %v2147, %v2146
      %v2353 = vpack.c.b16 %v2149, %v2148
      %v2354 = vpack.c.b16 %v2151, %v2150
      %v2355 = vpack.c.b16 %v2153, %v2152
      %v2356 = vpack.c.b16 %v2155, %v2154
      %v2357 = vpack.c.b16 %v2157, %v2156
      %v2358 = vpack.c.b16 %v2159, %v2158
      %v2359 = vpack.c.b16 %v2161, %v2160
      %v2360 = vpack.c.b16 %v2163, %v2162
      %v2361 = vpack.c.b16 %v2165, %v2164
      %v2362 = vpack.c.b16 %v2167, %v2166
      %v2363 = vpack.c.b16 %v2169, %v2168
      %v2364 = vpack.c.b16 %v2171, %v2170
      %v2365 = vpack.c.b16 %v2173, %v2172
      %v2366 = vpack.c.b16 %v2175, %v2174
      %v2367 = vpack.c.b16 %v2177, %v2176
      %v2368 = vpack.c.b16 %v2179, %v2178
      %v2369 = vpack.c.b16 %v2181, %v2180
      %v2370 = vpack.c.b16 %v2183, %v2182
      %v2371 = vpack.c.b16 %v2185, %v2184
      %v2372 = vpack.c.b16 %v2187, %v2186
      %v2373 = vpack.c.b16 %v2189, %v2188
      %v2374 = vpack.c.b16 %v2191, %v2190
      %v2375 = vpack.c.b16 %v2193, %v2192
      %v2376 = vpack.c.b16 %v2195, %v2194
      %v2377 = vpack.c.b16 %v2197, %v2196
      %v2378 = vpack.c.b16 %v2199, %v2198
      %v2379 = vpack.c.b16 %v2201, %v2200
      %v2380 = vpack.c.b16 %v2203, %v2202
      %v2381 = vpack.c.b16 %v2205, %v2204
      %v2382 = vpack.c.b16 %v2207, %v2206
      %v2383 = vpack.c.b16 %v2209, %v2208
      %v2384 = vpack.c.b16 %v2211, %v2210
      %v2385 = vpack.c.b16 %v2213, %v2212
      %v2386 = vpack.c.b16 %v2215, %v2214
      %v2387 = vpack.c.b16 %v2217, %v2216
      %v2388 = vpack.c.b16 %v2219, %v2218
      %v2389 = vpack.c.b16 %v2221, %v2220
      %v2390 = vpack.c.b16 %v2223, %v2222
      %v2391 = vpack.c.b16 %v2225, %v2224
      %v2392 = vpack.c.b16 %v2227, %v2226
      %v2393 = vpack.c.b16 %v2229, %v2228
      %v2394 = vpack.c.b16 %v2231, %v2230
      %v2395 = vpack.c.b16 %v2233, %v2232
      %v2396 = vpack.c.b16 %v2235, %v2234
      %v2397 = vpack.c.b16 %v2237, %v2236
      %v2398 = vpack.c.b16 %v2239, %v2238
      %v2399 = vpack.c.b16 %v2241, %v2240
      %v2400 = vpack.c.b16 %v2243, %v2242
      %v2401 = vpack.c.b16 %v2245, %v2244
      %v2402 = vpack.c.b16 %v2247, %v2246
      %v2403 = vpack.c.b16 %v2249, %v2248
      %v2404 = vpack.c.b16 %v2251, %v2250
      %v2405 = vpack.c.b16 %v2253, %v2252
      %v2406 = vpack.c.b16 %v2255, %v2254
      %v2407 = vpack.c.b16 %v2257, %v2256
      %v2408 = vpack.c.b16 %v2259, %v2258
      %v2409 = vpack.c.b16 %v2261, %v2260
      %v2410 = vpack.c.b16 %v2263, %v2262
      %v2411 = vpack.c.b16 %v2265, %v2264
      %v2412 = vpack.c.b16 %v2267, %v2266
      %v2413 = vpack.c.b16 %v2269, %v2268
      %2558 = vmatprep.subr.bf16.mxu0 0
      %2559 = vmatpush1.bf16.msra.mxu0 %v2277
      %2560 = vmatprep.subr.bf16.mxu0 0
      %2561 = vmatpush1.bf16.msra.mxu0 %v2276
      %2562 = vmatprep.subr.bf16.mxu0 0
      %2563 = vmatpush1.bf16.msra.mxu0 %v2275
      %2564 = vmatprep.subr.bf16.mxu0 0
      %2565 = vmatpush1.bf16.msra.mxu0 %v2274
      %2566 = vmatprep.subr.bf16.mxu0 0
      %2567 = vmatpush1.bf16.msra.mxu0 %v2273
      %2568 = vmatprep.subr.bf16.mxu0 0
      %2569 = vmatpush1.bf16.msra.mxu0 %v2272
      %2570 = vmatprep.subr.bf16.mxu0 0
      %2571 = vmatpush1.bf16.msra.mxu0 %v2271
      %2572 = vmatprep.subr.bf16.mxu0 0
      %2573 = vmatpush1.bf16.msra.mxu0 %v2270
      %2574 = vmatprep.subr.bf16.mxu0 0
      %2575 = vmatpush2.bf16.msra.mxu0 %v2285
      %2576 = vmatprep.subr.bf16.mxu0 0
      %2577 = vmatpush2.bf16.msra.mxu0 %v2284
      %2578 = vmatprep.subr.bf16.mxu0 0
      %2579 = vmatpush2.bf16.msra.mxu0 %v2283
      %2580 = vmatprep.subr.bf16.mxu0 0
      %2581 = vmatpush2.bf16.msra.mxu0 %v2282
      %2582 = vmatprep.subr.bf16.mxu0 0
      %2583 = vmatpush2.bf16.msra.mxu0 %v2281
      %2584 = vmatprep.subr.bf16.mxu0 0
      %2585 = vmatpush2.bf16.msra.mxu0 %v2280
      %2586 = vmatprep.subr.bf16.mxu0 0
      %2587 = vmatpush2.bf16.msra.mxu0 %v2279
      %2588 = vmatprep.subr.bf16.mxu0 0
      %2589 = vmatpush2.bf16.msra.mxu0 %v2278
      %2590 = vmatprep.mubr.bf16.mxu0 %v1157
      %2591 = vmatmul.mubr.bf16.gmra.mxu0 %v1153
      %v2592 = vpop.f32.mrf.mxu0
      %v2593 = vadd.f32 %v1692, %v2592
      %v2594 = vpop.f32.mrf.mxu0
      %v2595 = vpop.f32.mrf.mxu0
      %v2596 = vadd.f32 %v1692, %v2595
      %v2597 = vpop.f32.mrf.mxu0
      %2598 = vmatprep.mubr.bf16.mxu0 %v1227
      %2599 = vmatmul.mubr.bf16.gmra.mxu0 %v1224
      %v2600 = vpop.f32.mrf.mxu0
      %v2601 = vadd.f32 %v1692, %v2600
      %v2602 = vpop.f32.mrf.mxu0
      %v2603 = vpop.f32.mrf.mxu0
      %v2604 = vadd.f32 %v1692, %v2603
      %v2605 = vpop.f32.mrf.mxu0
      %2606 = vmatprep.mubr.bf16.mxu0 %v1221
      %2607 = vmatmul.mubr.bf16.gmra.mxu0 %v1217
      %v2608 = vpop.f32.mrf.mxu0
      %v2609 = vadd.f32 %v1692, %v2608
      %v2610 = vpop.f32.mrf.mxu0
      %v2611 = vpop.f32.mrf.mxu0
      %v2612 = vadd.f32 %v1692, %v2611
      %v2613 = vpop.f32.mrf.mxu0
      %2614 = vmatprep.mubr.bf16.mxu0 %v1345
      %2615 = vmatmul.mubr.bf16.gmra.mxu0 %v1342
      %v2616 = vpop.f32.mrf.mxu0
      %v2617 = vadd.f32 %v1692, %v2616
      %v2618 = vpop.f32.mrf.mxu0
      %v2619 = vpop.f32.mrf.mxu0
      %v2620 = vadd.f32 %v1692, %v2619
      %v2621 = vpop.f32.mrf.mxu0
      %2622 = vmatprep.mubr.bf16.mxu0 %v997
      %2623 = vmatmul.mubr.bf16.gmra.mxu0 %v996
      %v2624 = vpop.f32.mrf.mxu0
      %v2625 = vadd.f32 %v1692, %v2624
      %v2626 = vpop.f32.mrf.mxu0
      %v2627 = vpop.f32.mrf.mxu0
      %v2628 = vpop.f32.mrf.mxu0
      %2629 = vdwg.mxu0
      %2630 = vmatprep.subr.bf16.mxu0 0
      %2631 = vmatpush1.bf16.msra.mxu0 %v2293
      %2632 = vmatprep.subr.bf16.mxu0 0
      %2633 = vmatpush1.bf16.msra.mxu0 %v2292
      %2634 = vmatprep.subr.bf16.mxu0 0
      %2635 = vmatpush1.bf16.msra.mxu0 %v2291
      %2636 = vmatprep.subr.bf16.mxu0 0
      %2637 = vmatpush1.bf16.msra.mxu0 %v2290
      %2638 = vmatprep.subr.bf16.mxu0 0
      %2639 = vmatpush1.bf16.msra.mxu0 %v2289
      %2640 = vmatprep.subr.bf16.mxu0 0
      %2641 = vmatpush1.bf16.msra.mxu0 %v2288
      %2642 = vmatprep.subr.bf16.mxu0 0
      %2643 = vmatpush1.bf16.msra.mxu0 %v2287
      %2644 = vmatprep.subr.bf16.mxu0 0
      %2645 = vmatpush1.bf16.msra.mxu0 %v2286
      %2646 = vmatprep.subr.bf16.mxu0 0
      %2647 = vmatpush2.bf16.msra.mxu0 %v2301
      %2648 = vmatprep.subr.bf16.mxu0 0
      %2649 = vmatpush2.bf16.msra.mxu0 %v2300
      %2650 = vmatprep.subr.bf16.mxu0 0
      %2651 = vmatpush2.bf16.msra.mxu0 %v2299
      %2652 = vmatprep.subr.bf16.mxu0 0
      %2653 = vmatpush2.bf16.msra.mxu0 %v2298
      %2654 = vmatprep.subr.bf16.mxu0 0
      %2655 = vmatpush2.bf16.msra.mxu0 %v2297
      %2656 = vmatprep.subr.bf16.mxu0 0
      %2657 = vmatpush2.bf16.msra.mxu0 %v2296
      %2658 = vmatprep.subr.bf16.mxu0 0
      %2659 = vmatpush2.bf16.msra.mxu0 %v2295
      %2660 = vmatprep.subr.bf16.mxu0 0
      %2661 = vmatpush2.bf16.msra.mxu0 %v2294
      %2662 = vmatprep.mubr.bf16.mxu0 %v1165
      %2663 = vmatmul.mubr.bf16.gmra.mxu0 %v1161
      %v2664 = vpop.f32.mrf.mxu0
      %v2665 = vadd.f32 %v2593, %v2664
      %v2666 = vpop.f32.mrf.mxu0
      %v2667 = vpop.f32.mrf.mxu0
      %v2668 = vadd.f32 %v2596, %v2667
      %v2669 = vpop.f32.mrf.mxu0
      %2670 = vmatprep.mubr.bf16.mxu0 %v1233
      %2671 = vmatmul.mubr.bf16.gmra.mxu0 %v1230
      %v2672 = vpop.f32.mrf.mxu0
      %v2673 = vadd.f32 %v2601, %v2672
      %v2674 = vpop.f32.mrf.mxu0
      %v2675 = vpop.f32.mrf.mxu0
      %v2676 = vadd.f32 %v2604, %v2675
      %v2677 = vpop.f32.mrf.mxu0
      %2678 = vmatprep.mubr.bf16.mxu0 %v1289
      %2679 = vmatmul.mubr.bf16.gmra.mxu0 %v1286
      %v2680 = vpop.f32.mrf.mxu0
      %v2681 = vadd.f32 %v2609, %v2680
      %v2682 = vpop.f32.mrf.mxu0
      %v2683 = vpop.f32.mrf.mxu0
      %v2684 = vadd.f32 %v2612, %v2683
      %v2685 = vpop.f32.mrf.mxu0
      %2686 = vmatprep.mubr.bf16.mxu0 %v1351
      %2687 = vmatmul.mubr.bf16.gmra.mxu0 %v1348
      %v2688 = vpop.f32.mrf.mxu0
      %v2689 = vadd.f32 %v2617, %v2688
      %v2690 = vpop.f32.mrf.mxu0
      %v2691 = vpop.f32.mrf.mxu0
      %v2692 = vadd.f32 %v2620, %v2691
      %v2693 = vpop.f32.mrf.mxu0
      %2694 = vmatprep.mubr.bf16.mxu0 %v1081
      %2695 = vmatmul.mubr.bf16.gmra.mxu0 %v1080
      %v2696 = vpop.f32.mrf.mxu0
      %v2697 = vadd.f32 %v2625, %v2696
      %v2698 = vpop.f32.mrf.mxu0
      %v2699 = vpop.f32.mrf.mxu0
      %v2700 = vpop.f32.mrf.mxu0
      %2701 = vdwg.mxu0
      %2702 = vmatprep.subr.bf16.mxu0 0
      %2703 = vmatpush1.bf16.msra.mxu0 %v2309
      %2704 = vmatprep.subr.bf16.mxu0 0
      %2705 = vmatpush1.bf16.msra.mxu0 %v2308
      %2706 = vmatprep.subr.bf16.mxu0 0
      %2707 = vmatpush1.bf16.msra.mxu0 %v2307
      %2708 = vmatprep.subr.bf16.mxu0 0
      %2709 = vmatpush1.bf16.msra.mxu0 %v2306
      %2710 = vmatprep.subr.bf16.mxu0 0
      %2711 = vmatpush1.bf16.msra.mxu0 %v2305
      %2712 = vmatprep.subr.bf16.mxu0 0
      %2713 = vmatpush1.bf16.msra.mxu0 %v2304
      %2714 = vmatprep.subr.bf16.mxu0 0
      %2715 = vmatpush1.bf16.msra.mxu0 %v2303
      %2716 = vmatprep.subr.bf16.mxu0 0
      %2717 = vmatpush1.bf16.msra.mxu0 %v2302
      %2718 = vmatprep.subr.bf16.mxu0 0
      %2719 = vmatpush2.bf16.msra.mxu0 %v2317
      %2720 = vmatprep.subr.bf16.mxu0 0
      %2721 = vmatpush2.bf16.msra.mxu0 %v2316
      %2722 = vmatprep.subr.bf16.mxu0 0
      %2723 = vmatpush2.bf16.msra.mxu0 %v2315
      %2724 = vmatprep.subr.bf16.mxu0 0
      %2725 = vmatpush2.bf16.msra.mxu0 %v2314
      %2726 = vmatprep.subr.bf16.mxu0 0
      %2727 = vmatpush2.bf16.msra.mxu0 %v2313
      %2728 = vmatprep.subr.bf16.mxu0 0
      %2729 = vmatpush2.bf16.msra.mxu0 %v2312
      %2730 = vmatprep.subr.bf16.mxu0 0
      %2731 = vmatpush2.bf16.msra.mxu0 %v2311
      %2732 = vmatprep.subr.bf16.mxu0 0
      %2733 = vmatpush2.bf16.msra.mxu0 %v2310
      %2734 = vmatprep.mubr.bf16.mxu0 %v1173
      %2735 = vmatmul.mubr.bf16.gmra.mxu0 %v1169
      %v2736 = vpop.f32.mrf.mxu0
      %v2737 = vadd.f32 %v2665, %v2736
      %v2738 = vpop.f32.mrf.mxu0
      %v2739 = vpop.f32.mrf.mxu0
      %v2740 = vadd.f32 %v2668, %v2739
      %v2741 = vpop.f32.mrf.mxu0
      %2742 = vmatprep.mubr.bf16.mxu0 %v1239
      %2743 = vmatmul.mubr.bf16.gmra.mxu0 %v1236
      %v2744 = vpop.f32.mrf.mxu0
      %v2745 = vadd.f32 %v2673, %v2744
      %v2746 = vpop.f32.mrf.mxu0
      %v2747 = vpop.f32.mrf.mxu0
      %v2748 = vadd.f32 %v2676, %v2747
      %v2749 = vpop.f32.mrf.mxu0
      %2750 = vmatprep.mubr.bf16.mxu0 %v1295
      %2751 = vmatmul.mubr.bf16.gmra.mxu0 %v1292
      %v2752 = vpop.f32.mrf.mxu0
      %v2753 = vadd.f32 %v2681, %v2752
      %v2754 = vpop.f32.mrf.mxu0
      %v2755 = vpop.f32.mrf.mxu0
      %v2756 = vadd.f32 %v2684, %v2755
      %v2757 = vpop.f32.mrf.mxu0
      %2758 = vmatprep.mubr.bf16.mxu0 %v1325
      %2759 = vmatmul.mubr.bf16.gmra.mxu0 %v1321
      %v2760 = vpop.f32.mrf.mxu0
      %v2761 = vadd.f32 %v2689, %v2760
      %v2762 = vpop.f32.mrf.mxu0
      %v2763 = vpop.f32.mrf.mxu0
      %v2764 = vadd.f32 %v2692, %v2763
      %v2765 = vpop.f32.mrf.mxu0
      %2766 = vmatprep.mubr.bf16.mxu0 %v999
      %2767 = vmatmul.mubr.bf16.gmra.mxu0 %v998
      %v2768 = vpop.f32.mrf.mxu0
      %v2769 = vadd.f32 %v2697, %v2768
      %v2770 = vpop.f32.mrf.mxu0
      %v2771 = vpop.f32.mrf.mxu0
      %v2772 = vpop.f32.mrf.mxu0
      %2773 = vdwg.mxu0
      %2774 = vmatprep.subr.bf16.mxu0 0
      %2775 = vmatpush1.bf16.msra.mxu0 %v2325
      %2776 = vmatprep.subr.bf16.mxu0 0
      %2777 = vmatpush1.bf16.msra.mxu0 %v2324
      %2778 = vmatprep.subr.bf16.mxu0 0
      %2779 = vmatpush1.bf16.msra.mxu0 %v2323
      %2780 = vmatprep.subr.bf16.mxu0 0
      %2781 = vmatpush1.bf16.msra.mxu0 %v2322
      %2782 = vmatprep.subr.bf16.mxu0 0
      %2783 = vmatpush1.bf16.msra.mxu0 %v2321
      %2784 = vmatprep.subr.bf16.mxu0 0
      %2785 = vmatpush1.bf16.msra.mxu0 %v2320
      %2786 = vmatprep.subr.bf16.mxu0 0
      %2787 = vmatpush1.bf16.msra.mxu0 %v2319
      %2788 = vmatprep.subr.bf16.mxu0 0
      %2789 = vmatpush1.bf16.msra.mxu0 %v2318
      %2790 = vmatprep.subr.bf16.mxu0 0
      %2791 = vmatpush2.bf16.msra.mxu0 %v2333
      %2792 = vmatprep.subr.bf16.mxu0 0
      %2793 = vmatpush2.bf16.msra.mxu0 %v2332
      %2794 = vmatprep.subr.bf16.mxu0 0
      %2795 = vmatpush2.bf16.msra.mxu0 %v2331
      %2796 = vmatprep.subr.bf16.mxu0 0
      %2797 = vmatpush2.bf16.msra.mxu0 %v2330
      %2798 = vmatprep.subr.bf16.mxu0 0
      %2799 = vmatpush2.bf16.msra.mxu0 %v2329
      %2800 = vmatprep.subr.bf16.mxu0 0
      %2801 = vmatpush2.bf16.msra.mxu0 %v2328
      %2802 = vmatprep.subr.bf16.mxu0 0
      %2803 = vmatpush2.bf16.msra.mxu0 %v2327
      %2804 = vmatprep.subr.bf16.mxu0 0
      %2805 = vmatpush2.bf16.msra.mxu0 %v2326
      %2806 = vmatprep.mubr.bf16.mxu0 %v1181
      %2807 = vmatmul.mubr.bf16.gmra.mxu0 %v1177
      %v2808 = vpop.f32.mrf.mxu0
      %v2809 = vadd.f32 %v2737, %v2808
      %v2810 = vpop.f32.mrf.mxu0
      %v2811 = vpop.f32.mrf.mxu0
      %v2812 = vadd.f32 %v2740, %v2811
      %v2813 = vpop.f32.mrf.mxu0
      %2814 = vmatprep.mubr.bf16.mxu0 %v1245
      %2815 = vmatmul.mubr.bf16.gmra.mxu0 %v1242
      %v2816 = vpop.f32.mrf.mxu0
      %v2817 = vadd.f32 %v2745, %v2816
      %v2818 = vpop.f32.mrf.mxu0
      %v2819 = vpop.f32.mrf.mxu0
      %v2820 = vadd.f32 %v2748, %v2819
      %v2821 = vpop.f32.mrf.mxu0
      %2822 = vmatprep.mubr.bf16.mxu0 %v1301
      %2823 = vmatmul.mubr.bf16.gmra.mxu0 %v1298
      %v2824 = vpop.f32.mrf.mxu0
      %v2825 = vadd.f32 %v2753, %v2824
      %v2826 = vpop.f32.mrf.mxu0
      %v2827 = vpop.f32.mrf.mxu0
      %v2828 = vadd.f32 %v2756, %v2827
      %v2829 = vpop.f32.mrf.mxu0
      %2830 = vmatprep.mubr.bf16.mxu0 %v1357
      %2831 = vmatmul.mubr.bf16.gmra.mxu0 %v1354
      %v2832 = vpop.f32.mrf.mxu0
      %v2833 = vadd.f32 %v2761, %v2832
      %v2834 = vpop.f32.mrf.mxu0
      %v2835 = vpop.f32.mrf.mxu0
      %v2836 = vadd.f32 %v2764, %v2835
      %v2837 = vpop.f32.mrf.mxu0
      %2838 = vmatprep.mubr.bf16.mxu0 %v1097
      %2839 = vmatmul.mubr.bf16.gmra.mxu0 %v1096
      %v2840 = vpop.f32.mrf.mxu0
      %v2841 = vadd.f32 %v2769, %v2840
      %v2842 = vpop.f32.mrf.mxu0
      %v2843 = vpop.f32.mrf.mxu0
      %v2844 = vpop.f32.mrf.mxu0
      %2845 = vdwg.mxu0
      %2846 = vmatprep.subr.bf16.mxu0 0
      %2847 = vmatpush1.bf16.msra.mxu0 %v2341
      %2848 = vmatprep.subr.bf16.mxu0 0
      %2849 = vmatpush1.bf16.msra.mxu0 %v2340
      %2850 = vmatprep.subr.bf16.mxu0 0
      %2851 = vmatpush1.bf16.msra.mxu0 %v2339
      %2852 = vmatprep.subr.bf16.mxu0 0
      %2853 = vmatpush1.bf16.msra.mxu0 %v2338
      %2854 = vmatprep.subr.bf16.mxu0 0
      %2855 = vmatpush1.bf16.msra.mxu0 %v2337
      %2856 = vmatprep.subr.bf16.mxu0 0
      %2857 = vmatpush1.bf16.msra.mxu0 %v2336
      %2858 = vmatprep.subr.bf16.mxu0 0
      %2859 = vmatpush1.bf16.msra.mxu0 %v2335
      %2860 = vmatprep.subr.bf16.mxu0 0
      %2861 = vmatpush1.bf16.msra.mxu0 %v2334
      %2862 = vmatprep.subr.bf16.mxu0 0
      %2863 = vmatpush2.bf16.msra.mxu0 %v2349
      %2864 = vmatprep.subr.bf16.mxu0 0
      %2865 = vmatpush2.bf16.msra.mxu0 %v2348
      %2866 = vmatprep.subr.bf16.mxu0 0
      %2867 = vmatpush2.bf16.msra.mxu0 %v2347
      %2868 = vmatprep.subr.bf16.mxu0 0
      %2869 = vmatpush2.bf16.msra.mxu0 %v2346
      %2870 = vmatprep.subr.bf16.mxu0 0
      %2871 = vmatpush2.bf16.msra.mxu0 %v2345
      %2872 = vmatprep.subr.bf16.mxu0 0
      %2873 = vmatpush2.bf16.msra.mxu0 %v2344
      %2874 = vmatprep.subr.bf16.mxu0 0
      %2875 = vmatpush2.bf16.msra.mxu0 %v2343
      %2876 = vmatprep.subr.bf16.mxu0 0
      %2877 = vmatpush2.bf16.msra.mxu0 %v2342
      %2878 = vmatprep.mubr.bf16.mxu0 %v1189
      %2879 = vmatmul.mubr.bf16.gmra.mxu0 %v1185
      %v2880 = vpop.f32.mrf.mxu0
      %v2881 = vadd.f32 %v2809, %v2880
      %v2882 = vpop.f32.mrf.mxu0
      %v2883 = vpop.f32.mrf.mxu0
      %v2884 = vadd.f32 %v2812, %v2883
      %v2885 = vpop.f32.mrf.mxu0
      %2886 = vmatprep.mubr.bf16.mxu0 %v1253
      %2887 = vmatmul.mubr.bf16.gmra.mxu0 %v1249
      %v2888 = vpop.f32.mrf.mxu0
      %v2889 = vadd.f32 %v2817, %v2888
      %v2890 = vpop.f32.mrf.mxu0
      %v2891 = vpop.f32.mrf.mxu0
      %v2892 = vadd.f32 %v2820, %v2891
      %v2893 = vpop.f32.mrf.mxu0
      %2894 = vmatprep.mubr.bf16.mxu0 %v1309
      %2895 = vmatmul.mubr.bf16.gmra.mxu0 %v1305
      %v2896 = vpop.f32.mrf.mxu0
      %v2897 = vadd.f32 %v2825, %v2896
      %v2898 = vpop.f32.mrf.mxu0
      %v2899 = vpop.f32.mrf.mxu0
      %v2900 = vadd.f32 %v2828, %v2899
      %v2901 = vpop.f32.mrf.mxu0
      %2902 = vmatprep.mubr.bf16.mxu0 %v1365
      %2903 = vmatmul.mubr.bf16.gmra.mxu0 %v1361
      %v2904 = vpop.f32.mrf.mxu0
      %v2905 = vadd.f32 %v2833, %v2904
      %v2906 = vpop.f32.mrf.mxu0
      %v2907 = vpop.f32.mrf.mxu0
      %v2908 = vadd.f32 %v2836, %v2907
      %v2909 = vpop.f32.mrf.mxu0
      %2910 = vmatprep.mubr.bf16.mxu0 %v1005
      %2911 = vmatmul.mubr.bf16.gmra.mxu0 %v1004
      %v2912 = vpop.f32.mrf.mxu0
      %v2913 = vadd.f32 %v2841, %v2912
      %v2914 = vpop.f32.mrf.mxu0
      %v2915 = vpop.f32.mrf.mxu0
      %v2916 = vpop.f32.mrf.mxu0
      %2917 = vdwg.mxu0
      %2918 = vmatprep.subr.bf16.mxu0 0
      %2919 = vmatpush1.bf16.msra.mxu0 %v2357
      %2920 = vmatprep.subr.bf16.mxu0 0
      %2921 = vmatpush1.bf16.msra.mxu0 %v2356
      %2922 = vmatprep.subr.bf16.mxu0 0
      %2923 = vmatpush1.bf16.msra.mxu0 %v2355
      %2924 = vmatprep.subr.bf16.mxu0 0
      %2925 = vmatpush1.bf16.msra.mxu0 %v2354
      %2926 = vmatprep.subr.bf16.mxu0 0
      %2927 = vmatpush1.bf16.msra.mxu0 %v2353
      %2928 = vmatprep.subr.bf16.mxu0 0
      %2929 = vmatpush1.bf16.msra.mxu0 %v2352
      %2930 = vmatprep.subr.bf16.mxu0 0
      %2931 = vmatpush1.bf16.msra.mxu0 %v2351
      %2932 = vmatprep.subr.bf16.mxu0 0
      %2933 = vmatpush1.bf16.msra.mxu0 %v2350
      %2934 = vmatprep.subr.bf16.mxu0 0
      %2935 = vmatpush2.bf16.msra.mxu0 %v2365
      %2936 = vmatprep.subr.bf16.mxu0 0
      %2937 = vmatpush2.bf16.msra.mxu0 %v2364
      %2938 = vmatprep.subr.bf16.mxu0 0
      %2939 = vmatpush2.bf16.msra.mxu0 %v2363
      %2940 = vmatprep.subr.bf16.mxu0 0
      %2941 = vmatpush2.bf16.msra.mxu0 %v2362
      %2942 = vmatprep.subr.bf16.mxu0 0
      %2943 = vmatpush2.bf16.msra.mxu0 %v2361
      %2944 = vmatprep.subr.bf16.mxu0 0
      %2945 = vmatpush2.bf16.msra.mxu0 %v2360
      %2946 = vmatprep.subr.bf16.mxu0 0
      %2947 = vmatpush2.bf16.msra.mxu0 %v2359
      %2948 = vmatprep.subr.bf16.mxu0 0
      %2949 = vmatpush2.bf16.msra.mxu0 %v2358
      %2950 = vmatprep.mubr.bf16.mxu0 %v1197
      %2951 = vmatmul.mubr.bf16.gmra.mxu0 %v1193
      %v2952 = vpop.f32.mrf.mxu0
      %v2953 = vadd.f32 %v2881, %v2952
      %v2954 = vpop.f32.mrf.mxu0
      %v2955 = vpop.f32.mrf.mxu0
      %v2956 = vadd.f32 %v2884, %v2955
      %v2957 = vpop.f32.mrf.mxu0
      %2958 = vmatprep.mubr.bf16.mxu0 %v1261
      %2959 = vmatmul.mubr.bf16.gmra.mxu0 %v1257
      %v2960 = vpop.f32.mrf.mxu0
      %v2961 = vadd.f32 %v2889, %v2960
      %v2962 = vpop.f32.mrf.mxu0
      %v2963 = vpop.f32.mrf.mxu0
      %v2964 = vadd.f32 %v2892, %v2963
      %v2965 = vpop.f32.mrf.mxu0
      %2966 = vmatprep.mubr.bf16.mxu0 %v1317
      %2967 = vmatmul.mubr.bf16.gmra.mxu0 %v1313
      %v2968 = vpop.f32.mrf.mxu0
      %v2969 = vadd.f32 %v2897, %v2968
      %v2970 = vpop.f32.mrf.mxu0
      %v2971 = vpop.f32.mrf.mxu0
      %v2972 = vadd.f32 %v2900, %v2971
      %v2973 = vpop.f32.mrf.mxu0
      %2974 = vmatprep.mubr.bf16.mxu0 %v1373
      %2975 = vmatmul.mubr.bf16.gmra.mxu0 %v1369
      %v2976 = vpop.f32.mrf.mxu0
      %v2977 = vadd.f32 %v2905, %v2976
      %v2978 = vpop.f32.mrf.mxu0
      %v2979 = vpop.f32.mrf.mxu0
      %v2980 = vadd.f32 %v2908, %v2979
      %v2981 = vpop.f32.mrf.mxu0
      %2982 = vmatprep.mubr.bf16.mxu0 %v1109
      %2983 = vmatmul.mubr.bf16.gmra.mxu0 %v1108
      %v2984 = vpop.f32.mrf.mxu0
      %v2985 = vadd.f32 %v2913, %v2984
      %v2986 = vpop.f32.mrf.mxu0
      %v2987 = vpop.f32.mrf.mxu0
      %v2988 = vpop.f32.mrf.mxu0
      %2989 = vdwg.mxu0
      %2990 = vmatprep.subr.bf16.mxu0 0
      %2991 = vmatpush1.bf16.msra.mxu0 %v2373
      %2992 = vmatprep.subr.bf16.mxu0 0
      %2993 = vmatpush1.bf16.msra.mxu0 %v2372
      %2994 = vmatprep.subr.bf16.mxu0 0
      %2995 = vmatpush1.bf16.msra.mxu0 %v2371
      %2996 = vmatprep.subr.bf16.mxu0 0
      %2997 = vmatpush1.bf16.msra.mxu0 %v2370
      %2998 = vmatprep.subr.bf16.mxu0 0
      %2999 = vmatpush1.bf16.msra.mxu0 %v2369
      %3000 = vmatprep.subr.bf16.mxu0 0
      %3001 = vmatpush1.bf16.msra.mxu0 %v2368
      %3002 = vmatprep.subr.bf16.mxu0 0
      %3003 = vmatpush1.bf16.msra.mxu0 %v2367
      %3004 = vmatprep.subr.bf16.mxu0 0
      %3005 = vmatpush1.bf16.msra.mxu0 %v2366
      %3006 = vmatprep.subr.bf16.mxu0 0
      %3007 = vmatpush2.bf16.msra.mxu0 %v2381
      %3008 = vmatprep.subr.bf16.mxu0 0
      %3009 = vmatpush2.bf16.msra.mxu0 %v2380
      %3010 = vmatprep.subr.bf16.mxu0 0
      %3011 = vmatpush2.bf16.msra.mxu0 %v2379
      %3012 = vmatprep.subr.bf16.mxu0 0
      %3013 = vmatpush2.bf16.msra.mxu0 %v2378
      %3014 = vmatprep.subr.bf16.mxu0 0
      %3015 = vmatpush2.bf16.msra.mxu0 %v2377
      %3016 = vmatprep.subr.bf16.mxu0 0
      %3017 = vmatpush2.bf16.msra.mxu0 %v2376
      %3018 = vmatprep.subr.bf16.mxu0 0
      %3019 = vmatpush2.bf16.msra.mxu0 %v2375
      %3020 = vmatprep.subr.bf16.mxu0 0
      %3021 = vmatpush2.bf16.msra.mxu0 %v2374
      %3022 = vmatprep.mubr.bf16.mxu0 %v1205
      %3023 = vmatmul.mubr.bf16.gmra.mxu0 %v1201
      %v3024 = vpop.f32.mrf.mxu0
      %v3025 = vadd.f32 %v2953, %v3024
      %v3026 = vpop.f32.mrf.mxu0
      %v3027 = vpop.f32.mrf.mxu0
      %v3028 = vadd.f32 %v2956, %v3027
      %v3029 = vpop.f32.mrf.mxu0
      %3030 = vmatprep.mubr.bf16.mxu0 %v1269
      %3031 = vmatmul.mubr.bf16.gmra.mxu0 %v1265
      %v3032 = vpop.f32.mrf.mxu0
      %v3033 = vadd.f32 %v2961, %v3032
      %v3034 = vpop.f32.mrf.mxu0
      %v3035 = vpop.f32.mrf.mxu0
      %v3036 = vadd.f32 %v2964, %v3035
      %v3037 = vpop.f32.mrf.mxu0
      %3038 = vmatprep.mubr.bf16.mxu0 %v1325
      %3039 = vmatmul.mubr.bf16.gmra.mxu0 %v1321
      %v3040 = vpop.f32.mrf.mxu0
      %v3041 = vadd.f32 %v2969, %v3040
      %v3042 = vpop.f32.mrf.mxu0
      %v3043 = vpop.f32.mrf.mxu0
      %v3044 = vadd.f32 %v2972, %v3043
      %v3045 = vpop.f32.mrf.mxu0
      %3046 = vmatprep.mubr.bf16.mxu0 %v1381
      %3047 = vmatmul.mubr.bf16.gmra.mxu0 %v1377
      %v3048 = vpop.f32.mrf.mxu0
      %v3049 = vadd.f32 %v2977, %v3048
      %v3050 = vpop.f32.mrf.mxu0
      %v3051 = vpop.f32.mrf.mxu0
      %v3052 = vadd.f32 %v2980, %v3051
      %v3053 = vpop.f32.mrf.mxu0
      %3054 = vmatprep.mubr.bf16.mxu0 %v1011
      %3055 = vmatmul.mubr.bf16.gmra.mxu0 %v1010
      %v3056 = vpop.f32.mrf.mxu0
      %v3057 = vadd.f32 %v2985, %v3056
      %v3058 = vpop.f32.mrf.mxu0
      %v3059 = vpop.f32.mrf.mxu0
      %v3060 = vpop.f32.mrf.mxu0
      %3061 = vdwg.mxu0
      %3062 = vmatprep.subr.bf16.mxu0 0
      %3063 = vmatpush1.bf16.msra.mxu0 %v2389
      %3064 = vmatprep.subr.bf16.mxu0 0
      %3065 = vmatpush1.bf16.msra.mxu0 %v2388
      %3066 = vmatprep.subr.bf16.mxu0 0
      %3067 = vmatpush1.bf16.msra.mxu0 %v2387
      %3068 = vmatprep.subr.bf16.mxu0 0
      %3069 = vmatpush1.bf16.msra.mxu0 %v2386
      %3070 = vmatprep.subr.bf16.mxu0 0
      %3071 = vmatpush1.bf16.msra.mxu0 %v2385
      %3072 = vmatprep.subr.bf16.mxu0 0
      %3073 = vmatpush1.bf16.msra.mxu0 %v2384
      %3074 = vmatprep.subr.bf16.mxu0 0
      %3075 = vmatpush1.bf16.msra.mxu0 %v2383
      %3076 = vmatprep.subr.bf16.mxu0 0
      %3077 = vmatpush1.bf16.msra.mxu0 %v2382
      %3078 = vmatprep.subr.bf16.mxu0 0
      %3079 = vmatpush2.bf16.msra.mxu0 %v2397
      %3080 = vmatprep.subr.bf16.mxu0 0
      %3081 = vmatpush2.bf16.msra.mxu0 %v2396
      %3082 = vmatprep.subr.bf16.mxu0 0
      %3083 = vmatpush2.bf16.msra.mxu0 %v2395
      %3084 = vmatprep.subr.bf16.mxu0 0
      %3085 = vmatpush2.bf16.msra.mxu0 %v2394
      %3086 = vmatprep.subr.bf16.mxu0 0
      %3087 = vmatpush2.bf16.msra.mxu0 %v2393
      %3088 = vmatprep.subr.bf16.mxu0 0
      %3089 = vmatpush2.bf16.msra.mxu0 %v2392
      %3090 = vmatprep.subr.bf16.mxu0 0
      %3091 = vmatpush2.bf16.msra.mxu0 %v2391
      %3092 = vmatprep.subr.bf16.mxu0 0
      %3093 = vmatpush2.bf16.msra.mxu0 %v2390
      %3094 = vmatprep.mubr.bf16.mxu0 %v1213
      %3095 = vmatmul.mubr.bf16.gmra.mxu0 %v1209
      %v3096 = vpop.f32.mrf.mxu0
      %v3097 = vadd.f32 %v3025, %v3096
      %v3098 = vpop.f32.mrf.mxu0
      %v3099 = vpop.f32.mrf.mxu0
      %v3100 = vadd.f32 %v3028, %v3099
      %v3101 = vpop.f32.mrf.mxu0
      %3102 = vmatprep.mubr.bf16.mxu0 %v1275
      %3103 = vmatmul.mubr.bf16.gmra.mxu0 %v1272
      %v3104 = vpop.f32.mrf.mxu0
      %v3105 = vadd.f32 %v3033, %v3104
      %v3106 = vpop.f32.mrf.mxu0
      %v3107 = vpop.f32.mrf.mxu0
      %v3108 = vadd.f32 %v3036, %v3107
      %v3109 = vpop.f32.mrf.mxu0
      %3110 = vmatprep.mubr.bf16.mxu0 %v1331
      %3111 = vmatmul.mubr.bf16.gmra.mxu0 %v1328
      %v3112 = vpop.f32.mrf.mxu0
      %v3113 = vadd.f32 %v3041, %v3112
      %v3114 = vpop.f32.mrf.mxu0
      %v3115 = vpop.f32.mrf.mxu0
      %v3116 = vadd.f32 %v3044, %v3115
      %v3117 = vpop.f32.mrf.mxu0
      %3118 = vmatprep.mubr.bf16.mxu0 %v1389
      %3119 = vmatmul.mubr.bf16.gmra.mxu0 %v1385
      %v3120 = vpop.f32.mrf.mxu0
      %v3121 = vadd.f32 %v3049, %v3120
      %v3122 = vpop.f32.mrf.mxu0
      %v3123 = vpop.f32.mrf.mxu0
      %v3124 = vadd.f32 %v3052, %v3123
      %v3125 = vpop.f32.mrf.mxu0
      %3126 = vmatprep.mubr.bf16.mxu0 %v1115
      %3127 = vmatmul.mubr.bf16.gmra.mxu0 %v1114
      %v3128 = vpop.f32.mrf.mxu0
      %v3129 = vadd.f32 %v3057, %v3128
      %v3130 = vpop.f32.mrf.mxu0
      %v3131 = vpop.f32.mrf.mxu0
      %v3132 = vpop.f32.mrf.mxu0
      %3133 = vdwg.mxu0
      %3134 = vmatprep.subr.bf16.mxu0 0
      %3135 = vmatpush1.bf16.msra.mxu0 %v2405
      %3136 = vmatprep.subr.bf16.mxu0 0
      %3137 = vmatpush1.bf16.msra.mxu0 %v2404
      %3138 = vmatprep.subr.bf16.mxu0 0
      %3139 = vmatpush1.bf16.msra.mxu0 %v2403
      %3140 = vmatprep.subr.bf16.mxu0 0
      %3141 = vmatpush1.bf16.msra.mxu0 %v2402
      %3142 = vmatprep.subr.bf16.mxu0 0
      %3143 = vmatpush1.bf16.msra.mxu0 %v2401
      %3144 = vmatprep.subr.bf16.mxu0 0
      %3145 = vmatpush1.bf16.msra.mxu0 %v2400
      %3146 = vmatprep.subr.bf16.mxu0 0
      %3147 = vmatpush1.bf16.msra.mxu0 %v2399
      %3148 = vmatprep.subr.bf16.mxu0 0
      %3149 = vmatpush1.bf16.msra.mxu0 %v2398
      %3150 = vmatprep.subr.bf16.mxu0 0
      %3151 = vmatpush2.bf16.msra.mxu0 %v2413
      %3152 = vmatprep.subr.bf16.mxu0 0
      %3153 = vmatpush2.bf16.msra.mxu0 %v2412
      %3154 = vmatprep.subr.bf16.mxu0 0
      %3155 = vmatpush2.bf16.msra.mxu0 %v2411
      %3156 = vmatprep.subr.bf16.mxu0 0
      %3157 = vmatpush2.bf16.msra.mxu0 %v2410
      %3158 = vmatprep.subr.bf16.mxu0 0
      %3159 = vmatpush2.bf16.msra.mxu0 %v2409
      %3160 = vmatprep.subr.bf16.mxu0 0
      %3161 = vmatpush2.bf16.msra.mxu0 %v2408
      %3162 = vmatprep.subr.bf16.mxu0 0
      %3163 = vmatpush2.bf16.msra.mxu0 %v2407
      %3164 = vmatprep.subr.bf16.mxu0 0
      %3165 = vmatpush2.bf16.msra.mxu0 %v2406
      %3166 = vmatprep.mubr.bf16.mxu0 %v1221
      %3167 = vmatmul.mubr.bf16.gmra.mxu0 %v1217
      %v3168 = vpop.f32.mrf.mxu0
      %v3169 = vadd.f32 %v3097, %v3168
      %v3170 = vpop.f32.mrf.mxu0
      %v3171 = vpop.f32.mrf.mxu0
      %v3172 = vadd.f32 %v3100, %v3171
      %v3173 = vpop.f32.mrf.mxu0
      %3174 = vmatprep.mubr.bf16.mxu0 %v1283
      %3175 = vmatmul.mubr.bf16.gmra.mxu0 %v1279
      %v3176 = vpop.f32.mrf.mxu0
      %v3177 = vadd.f32 %v3105, %v3176
      %v3178 = vpop.f32.mrf.mxu0
      %v3179 = vpop.f32.mrf.mxu0
      %v3180 = vadd.f32 %v3108, %v3179
      %v3181 = vpop.f32.mrf.mxu0
      %3182 = vmatprep.mubr.bf16.mxu0 %v1339
      %3183 = vmatmul.mubr.bf16.gmra.mxu0 %v1335
      %v3184 = vpop.f32.mrf.mxu0
      %v3185 = vadd.f32 %v3113, %v3184
      %v3186 = vpop.f32.mrf.mxu0
      %v3187 = vpop.f32.mrf.mxu0
      %v3188 = vadd.f32 %v3116, %v3187
      %v3189 = vpop.f32.mrf.mxu0
      %3190 = vmatprep.mubr.bf16.mxu0 %v1397
      %3191 = vmatmul.mubr.bf16.gmra.mxu0 %v1393
      %v3192 = vpop.f32.mrf.mxu0
      %v3193 = vadd.f32 %v3121, %v3192
      %v3194 = vpop.f32.mrf.mxu0
      %v3195 = vpop.f32.mrf.mxu0
      %v3196 = vadd.f32 %v3124, %v3195
      %v3197 = vpop.f32.mrf.mxu0
      %3198 = vmatprep.mubr.bf16.mxu0 %v1013
      %3199 = vmatmul.mubr.bf16.gmra.mxu0 %v1012
      %v3200 = vpop.f32.mrf.mxu0
      %v3201 = vadd.f32 %v3129, %v3200
      %v3202 = vpop.f32.mrf.mxu0
      %v3203 = vpop.f32.mrf.mxu0
      %v3204 = vpop.f32.mrf.mxu0
      %3205 = vdwg.mxu0
      %v3206 = vmax.f32 %v3169, 0.0
      %v3207 = vmax.f32 %v3172, 0.0
      %v3208 = vmax.f32 %v3177, 0.0
      %v3209 = vmax.f32 %v3180, 0.0
      %v3210 = vmax.f32 %v3185, 0.0
      %v3211 = vmax.f32 %v3188, 0.0
      %v3212 = vmax.f32 %v3193, 0.0
      %v3213 = vmax.f32 %v3196, 0.0
      %v3214 = vmax.f32 %v3201, 0.0
      %v3215 = vpack.c.bf16 %v3207, %v3206
      %v3216 = vpack.c.bf16 %v3209, %v3208
      %v3217 = vpack.c.bf16 %v3211, %v3210
      %v3218 = vpack.c.bf16 %v3213, %v3212
      %v3219 = vpack.c.bf16 %v3214, %v3214
      %v3221 = vrot.slane %v3215, 4
      %v3224 = vrot.slane %v3216, 4
      %v3227 = vrot.slane %v3217, 4
      %v3230 = vrot.slane %v3218, 4
      %v3232 = vld [vmem:[%s5] sm:$0xf]
      %v3233 = vld [vmem:[%s5 + $0x4] sm:$0xf]
      %v3234 = vld [vmem:[%s5 + $0x8] sm:$0xf]
      %v3235 = vld [vmem:[%s5 + $0xc] sm:$0xf]
      %v3236 = vld [vmem:[%s5 + $0x10] sm:$0xf]
      %v3237 = vld [vmem:[%s5 + $0x14] sm:$0xf]
      %v3238 = vld [vmem:[%s5 + $0x18] sm:$0xf]
      %v3239 = vld [vmem:[%s5 + $0x1c] sm:$0xf]
      %v3240 = vld [vmem:[%s5 + $0x20] sm:$0xf]
      %v3241 = vld [vmem:[%s5 + $0x24] sm:$0xf]
      %v3242 = vld [vmem:[%s5 + $0x28] sm:$0xf]
      %v3243 = vld [vmem:[%s5 + $0x2c] sm:$0xf]
      %v3244 = vld [vmem:[%s5 + $0x30] sm:$0xf]
      %v3245 = vld [vmem:[%s5 + $0x34] sm:$0xf]
      %v3246 = vld [vmem:[%s5 + $0x38] sm:$0xf]
      %v3247 = vld [vmem:[%s5 + $0x3c] sm:$0xf]
      %v3248 = vld [vmem:[%s5 + $0x40] sm:$0xf]
      %v3249 = vld [vmem:[%s5 + $0x44] sm:$0xf]
      %v3250 = vld [vmem:[%s5 + $0x48] sm:$0xf]
      %v3251 = vld [vmem:[%s5 + $0x4c] sm:$0xf]
      %v3252 = vld [vmem:[%s5 + $0x50] sm:$0xf]
      %v3253 = vld [vmem:[%s5 + $0x54] sm:$0xf]
      %v3254 = vld [vmem:[%s5 + $0x58] sm:$0xf]
      %v3255 = vld [vmem:[%s5 + $0x5c] sm:$0xf]
      %v3256 = vld [vmem:[%s5 + $0x60] sm:$0xf]
      %v3257 = vld [vmem:[%s5 + $0x64] sm:$0xf]
      %v3258 = vld [vmem:[%s5 + $0x68] sm:$0xf]
      %v3259 = vld [vmem:[%s5 + $0x6c] sm:$0xf]
      %v3260 = vld [vmem:[%s5 + $0x70] sm:$0xf]
      %v3261 = vld [vmem:[%s5 + $0x74] sm:$0xf]
      %v3262 = vld [vmem:[%s5 + $0x78] sm:$0xf]
      %v3263 = vld [vmem:[%s5 + $0x7c] sm:$0xf]
      %v3264 = vld [vmem:[%s5 + $0x80] sm:$0xf]
      %v3265 = vld [vmem:[%s5 + $0x84] sm:$0xf]
      %v3266 = vld [vmem:[%s5 + $0x88] sm:$0xf]
      %v3267 = vld [vmem:[%s5 + $0x8c] sm:$0xf]
      %v3268 = vld [vmem:[%s5 + $0x90] sm:$0xf]
      %v3269 = vld [vmem:[%s5 + $0x94] sm:$0xf]
      %v3270 = vld [vmem:[%s5 + $0x98] sm:$0xf]
      %v3271 = vld [vmem:[%s5 + $0x9c] sm:$0xf]
      %v3272 = vld [vmem:[%s5 + $0xa0] sm:$0xf]
      %v3273 = vld [vmem:[%s5 + $0xa4] sm:$0xf]
      %v3274 = vld [vmem:[%s5 + $0xa8] sm:$0xf]
      %v3275 = vld [vmem:[%s5 + $0xac] sm:$0xf]
      %v3276 = vld [vmem:[%s5 + $0xb0] sm:$0xf]
      %v3277 = vld [vmem:[%s5 + $0xb4] sm:$0xf]
      %v3278 = vld [vmem:[%s5 + $0xb8] sm:$0xf]
      %v3279 = vld [vmem:[%s5 + $0xbc] sm:$0xf]
      %v3280 = vld [vmem:[%s5 + $0xc0] sm:$0xf]
      %v3281 = vld [vmem:[%s5 + $0xc4] sm:$0xf]
      %v3282 = vld [vmem:[%s5 + $0xc8] sm:$0xf]
      %v3283 = vld [vmem:[%s5 + $0xcc] sm:$0xf]
      %v3284 = vld [vmem:[%s5 + $0xd0] sm:$0xf]
      %v3285 = vld [vmem:[%s5 + $0xd4] sm:$0xf]
      %v3286 = vld [vmem:[%s5 + $0xd8] sm:$0xf]
      %v3287 = vld [vmem:[%s5 + $0xdc] sm:$0xf]
      %v3288 = vld [vmem:[%s5 + $0xe0] sm:$0xf]
      %v3289 = vld [vmem:[%s5 + $0xe4] sm:$0xf]
      %v3290 = vld [vmem:[%s5 + $0xe8] sm:$0xf]
      %v3291 = vld [vmem:[%s5 + $0xec] sm:$0xf]
      %v3292 = vld [vmem:[%s5 + $0xf0] sm:$0xf]
      %v3293 = vld [vmem:[%s5 + $0xf4] sm:$0xf]
      %v3294 = vld [vmem:[%s5 + $0xf8] sm:$0xf]
      %v3295 = vld [vmem:[%s5 + $0xfc] sm:$0xf]
      %v3296 = vld [vmem:[%s5 + $0x100] sm:$0xf]
      %v3297 = vld [vmem:[%s5 + $0x104] sm:$0xf]
      %v3298 = vld [vmem:[%s5 + $0x108] sm:$0xf]
      %v3299 = vld [vmem:[%s5 + $0x10c] sm:$0xf]
      %v3300 = vld [vmem:[%s5 + $0x110] sm:$0xf]
      %v3301 = vld [vmem:[%s5 + $0x114] sm:$0xf]
      %v3302 = vld [vmem:[%s5 + $0x118] sm:$0xf]
      %v3303 = vld [vmem:[%s5 + $0x11c] sm:$0xf]
      %v3304 = vld [vmem:[%s5 + $0x120] sm:$0xf]
      %v3305 = vld [vmem:[%s5 + $0x124] sm:$0xf]
      %v3306 = vld [vmem:[%s5 + $0x128] sm:$0xf]
      %v3307 = vld [vmem:[%s5 + $0x12c] sm:$0xf]
      %v3308 = vld [vmem:[%s5 + $0x130] sm:$0xf]
      %v3309 = vld [vmem:[%s5 + $0x134] sm:$0xf]
      %v3310 = vld [vmem:[%s5 + $0x138] sm:$0xf]
      %v3311 = vld [vmem:[%s5 + $0x13c] sm:$0xf]
      %v3312 = vld [vmem:[%s5 + $0x140] sm:$0xf]
      %v3313 = vld [vmem:[%s5 + $0x144] sm:$0xf]
      %v3314 = vld [vmem:[%s5 + $0x148] sm:$0xf]
      %v3315 = vld [vmem:[%s5 + $0x14c] sm:$0xf]
      %v3316 = vld [vmem:[%s5 + $0x150] sm:$0xf]
      %v3317 = vld [vmem:[%s5 + $0x154] sm:$0xf]
      %v3318 = vld [vmem:[%s5 + $0x158] sm:$0xf]
      %v3319 = vld [vmem:[%s5 + $0x15c] sm:$0xf]
      %v3320 = vld [vmem:[%s5 + $0x160] sm:$0xf]
      %v3321 = vld [vmem:[%s5 + $0x164] sm:$0xf]
      %v3322 = vld [vmem:[%s5 + $0x168] sm:$0xf]
      %v3323 = vld [vmem:[%s5 + $0x16c] sm:$0xf]
      %v3324 = vld [vmem:[%s5 + $0x170] sm:$0xf]
      %v3325 = vld [vmem:[%s5 + $0x174] sm:$0xf]
      %v3326 = vld [vmem:[%s5 + $0x178] sm:$0xf]
      %v3327 = vld [vmem:[%s5 + $0x17c] sm:$0xf]
      %v3328 = vld [vmem:[%s5 + $0x180] sm:$0xf]
      %v3329 = vld [vmem:[%s5 + $0x184] sm:$0xf]
      %v3330 = vld [vmem:[%s5 + $0x188] sm:$0xf]
      %v3331 = vld [vmem:[%s5 + $0x18c] sm:$0xf]
      %v3332 = vld [vmem:[%s5 + $0x190] sm:$0xf]
      %v3333 = vld [vmem:[%s5 + $0x194] sm:$0xf]
      %v3334 = vld [vmem:[%s5 + $0x198] sm:$0xf]
      %v3335 = vld [vmem:[%s5 + $0x19c] sm:$0xf]
      %v3336 = vld [vmem:[%s5 + $0x1a0] sm:$0xf]
      %v3337 = vld [vmem:[%s5 + $0x1a4] sm:$0xf]
      %v3338 = vld [vmem:[%s5 + $0x1a8] sm:$0xf]
      %v3339 = vld [vmem:[%s5 + $0x1ac] sm:$0xf]
      %v3340 = vld [vmem:[%s5 + $0x1b0] sm:$0xf]
      %v3341 = vld [vmem:[%s5 + $0x1b4] sm:$0xf]
      %v3342 = vld [vmem:[%s5 + $0x1b8] sm:$0xf]
      %v3343 = vld [vmem:[%s5 + $0x1bc] sm:$0xf]
      %v3344 = vld [vmem:[%s5 + $0x1c0] sm:$0xf]
      %v3345 = vld [vmem:[%s5 + $0x1c4] sm:$0xf]
      %v3346 = vld [vmem:[%s5 + $0x1c8] sm:$0xf]
      %v3347 = vld [vmem:[%s5 + $0x1cc] sm:$0xf]
      %v3348 = vld [vmem:[%s5 + $0x1d0] sm:$0xf]
      %v3349 = vld [vmem:[%s5 + $0x1d4] sm:$0xf]
      %v3350 = vld [vmem:[%s5 + $0x1d8] sm:$0xf]
      %v3351 = vld [vmem:[%s5 + $0x1dc] sm:$0xf]
      %v3352 = vld [vmem:[%s5 + $0x1e0] sm:$0xf]
      %v3353 = vld [vmem:[%s5 + $0x1e4] sm:$0xf]
      %v3354 = vld [vmem:[%s5 + $0x1e8] sm:$0xf]
      %v3355 = vld [vmem:[%s5 + $0x1ec] sm:$0xf]
      %v3356 = vld [vmem:[%s5 + $0x1f0] sm:$0xf]
      %v3357 = vld [vmem:[%s5 + $0x1f4] sm:$0xf]
      %v3358 = vld [vmem:[%s5 + $0x1f8] sm:$0xf]
      %v3359 = vld [vmem:[%s5 + $0x1fc] sm:$0xf]
      %v3360 = vld [vmem:[%s5 + $0x200] sm:$0xf]
      %v3361 = vld [vmem:[%s5 + $0x204] sm:$0xf]
      %v3362 = vld [vmem:[%s5 + $0x208] sm:$0xf]
      %v3363 = vld [vmem:[%s5 + $0x20c] sm:$0xf]
      %v3364 = vld [vmem:[%s5 + $0x210] sm:$0xf]
      %v3365 = vld [vmem:[%s5 + $0x214] sm:$0xf]
      %v3366 = vld [vmem:[%s5 + $0x218] sm:$0xf]
      %v3367 = vld [vmem:[%s5 + $0x21c] sm:$0xf]
      %v3368 = vld [vmem:[%s5 + $0x220] sm:$0xf]
      %v3369 = vld [vmem:[%s5 + $0x224] sm:$0xf]
      %v3370 = vld [vmem:[%s5 + $0x228] sm:$0xf]
      %v3371 = vld [vmem:[%s5 + $0x22c] sm:$0xf]
      %v3372 = vld [vmem:[%s5 + $0x230] sm:$0xf]
      %v3373 = vld [vmem:[%s5 + $0x234] sm:$0xf]
      %v3374 = vld [vmem:[%s5 + $0x238] sm:$0xf]
      %v3375 = vld [vmem:[%s5 + $0x23c] sm:$0xf]
      %v3376 = vld [vmem:[%s6] sm:$0x1]
      %v3378 = vlaneseq
      %v3379 = vshrl.u32 %v3378, 7
      %v3380 = vsub.s32 0, %v3379
      %v3381 = vrot.slane %v3376, %v3380
      %v3527 = vunpack.c.l.b16 %v3232
      %v3528 = vunpack.c.l.b16 %v3233
      %v3529 = vunpack.c.l.b16 %v3234
      %v3530 = vunpack.c.l.b16 %v3235
      %v3531 = vunpack.c.l.b16 %v3236
      %v3532 = vunpack.c.l.b16 %v3237
      %v3533 = vunpack.c.l.b16 %v3238
      %v3534 = vunpack.c.l.b16 %v3239
      %v3535 = vunpack.c.l.b16 %v3240
      %v3536 = vunpack.c.l.b16 %v3241
      %v3537 = vunpack.c.l.b16 %v3242
      %v3538 = vunpack.c.l.b16 %v3243
      %v3539 = vunpack.c.l.b16 %v3244
      %v3540 = vunpack.c.l.b16 %v3245
      %v3541 = vunpack.c.l.b16 %v3246
      %v3542 = vunpack.c.l.b16 %v3247
      %v3543 = vunpack.c.l.b16 %v3248
      %v3544 = vunpack.c.l.b16 %v3249
      %v3545 = vunpack.c.l.b16 %v3250
      %v3546 = vunpack.c.l.b16 %v3251
      %v3547 = vunpack.c.l.b16 %v3252
      %v3548 = vunpack.c.l.b16 %v3253
      %v3549 = vunpack.c.l.b16 %v3254
      %v3550 = vunpack.c.l.b16 %v3255
      %v3551 = vunpack.c.l.b16 %v3256
      %v3552 = vunpack.c.l.b16 %v3257
      %v3553 = vunpack.c.l.b16 %v3258
      %v3554 = vunpack.c.l.b16 %v3259
      %v3555 = vunpack.c.l.b16 %v3260
      %v3556 = vunpack.c.l.b16 %v3261
      %v3557 = vunpack.c.l.b16 %v3262
      %v3558 = vunpack.c.l.b16 %v3263
      %v3559 = vunpack.c.l.b16 %v3264
      %v3560 = vunpack.c.l.b16 %v3265
      %v3561 = vunpack.c.l.b16 %v3266
      %v3562 = vunpack.c.l.b16 %v3267
      %v3563 = vunpack.c.l.b16 %v3268
      %v3564 = vunpack.c.l.b16 %v3269
      %v3565 = vunpack.c.l.b16 %v3270
      %v3566 = vunpack.c.l.b16 %v3271
      %v3567 = vunpack.c.l.b16 %v3272
      %v3568 = vunpack.c.l.b16 %v3273
      %v3569 = vunpack.c.l.b16 %v3274
      %v3570 = vunpack.c.l.b16 %v3275
      %v3571 = vunpack.c.l.b16 %v3276
      %v3572 = vunpack.c.l.b16 %v3277
      %v3573 = vunpack.c.l.b16 %v3278
      %v3574 = vunpack.c.l.b16 %v3279
      %v3575 = vunpack.c.l.b16 %v3280
      %v3576 = vunpack.c.l.b16 %v3281
      %v3577 = vunpack.c.l.b16 %v3282
      %v3578 = vunpack.c.l.b16 %v3283
      %v3579 = vunpack.c.l.b16 %v3284
      %v3580 = vunpack.c.l.b16 %v3285
      %v3581 = vunpack.c.l.b16 %v3286
      %v3582 = vunpack.c.l.b16 %v3287
      %v3583 = vunpack.c.l.b16 %v3288
      %v3584 = vunpack.c.l.b16 %v3289
      %v3585 = vunpack.c.l.b16 %v3290
      %v3586 = vunpack.c.l.b16 %v3291
      %v3587 = vunpack.c.l.b16 %v3292
      %v3588 = vunpack.c.l.b16 %v3293
      %v3589 = vunpack.c.l.b16 %v3294
      %v3590 = vunpack.c.l.b16 %v3295
      %v3591 = vunpack.c.l.b16 %v3296
      %v3592 = vunpack.c.l.b16 %v3297
      %v3593 = vunpack.c.l.b16 %v3298
      %v3594 = vunpack.c.l.b16 %v3299
      %v3595 = vunpack.c.l.b16 %v3300
      %v3596 = vunpack.c.l.b16 %v3301
      %v3597 = vunpack.c.l.b16 %v3302
      %v3598 = vunpack.c.l.b16 %v3303
      %v3599 = vunpack.c.l.b16 %v3304
      %v3600 = vunpack.c.l.b16 %v3305
      %v3601 = vunpack.c.l.b16 %v3306
      %v3602 = vunpack.c.l.b16 %v3307
      %v3603 = vunpack.c.l.b16 %v3308
      %v3604 = vunpack.c.l.b16 %v3309
      %v3605 = vunpack.c.l.b16 %v3310
      %v3606 = vunpack.c.l.b16 %v3311
      %v3607 = vunpack.c.l.b16 %v3312
      %v3608 = vunpack.c.l.b16 %v3313
      %v3609 = vunpack.c.l.b16 %v3314
      %v3610 = vunpack.c.l.b16 %v3315
      %v3611 = vunpack.c.l.b16 %v3316
      %v3612 = vunpack.c.l.b16 %v3317
      %v3613 = vunpack.c.l.b16 %v3318
      %v3614 = vunpack.c.l.b16 %v3319
      %v3615 = vunpack.c.l.b16 %v3320
      %v3616 = vunpack.c.l.b16 %v3321
      %v3617 = vunpack.c.l.b16 %v3322
      %v3618 = vunpack.c.l.b16 %v3323
      %v3619 = vunpack.c.l.b16 %v3324
      %v3620 = vunpack.c.l.b16 %v3325
      %v3621 = vunpack.c.l.b16 %v3326
      %v3622 = vunpack.c.l.b16 %v3327
      %v3623 = vunpack.c.l.b16 %v3328
      %v3624 = vunpack.c.l.b16 %v3329
      %v3625 = vunpack.c.l.b16 %v3330
      %v3626 = vunpack.c.l.b16 %v3331
      %v3627 = vunpack.c.l.b16 %v3332
      %v3628 = vunpack.c.l.b16 %v3333
      %v3629 = vunpack.c.l.b16 %v3334
      %v3630 = vunpack.c.l.b16 %v3335
      %v3631 = vunpack.c.l.b16 %v3336
      %v3632 = vunpack.c.l.b16 %v3337
      %v3633 = vunpack.c.l.b16 %v3338
      %v3634 = vunpack.c.l.b16 %v3339
      %v3635 = vunpack.c.l.b16 %v3340
      %v3636 = vunpack.c.l.b16 %v3341
      %v3637 = vunpack.c.l.b16 %v3342
      %v3638 = vunpack.c.l.b16 %v3343
      %v3639 = vunpack.c.l.b16 %v3344
      %v3640 = vunpack.c.l.b16 %v3345
      %v3641 = vunpack.c.l.b16 %v3346
      %v3642 = vunpack.c.l.b16 %v3347
      %v3643 = vunpack.c.l.b16 %v3348
      %v3644 = vunpack.c.l.b16 %v3349
      %v3645 = vunpack.c.l.b16 %v3350
      %v3646 = vunpack.c.l.b16 %v3351
      %v3647 = vunpack.c.l.b16 %v3352
      %v3648 = vunpack.c.l.b16 %v3353
      %v3649 = vunpack.c.l.b16 %v3354
      %v3650 = vunpack.c.l.b16 %v3355
      %v3651 = vunpack.c.l.b16 %v3356
      %v3652 = vunpack.c.l.b16 %v3357
      %v3653 = vunpack.c.l.b16 %v3358
      %v3654 = vunpack.c.l.b16 %v3359
      %v3655 = vunpack.c.l.b16 %v3360
      %v3656 = vunpack.c.l.b16 %v3361
      %v3657 = vunpack.c.l.b16 %v3362
      %v3658 = vunpack.c.l.b16 %v3363
      %v3659 = vunpack.c.l.b16 %v3364
      %v3660 = vunpack.c.l.b16 %v3365
      %v3661 = vunpack.c.l.b16 %v3366
      %v3662 = vunpack.c.l.b16 %v3367
      %v3663 = vunpack.c.l.b16 %v3368
      %v3664 = vunpack.c.l.b16 %v3369
      %v3665 = vunpack.c.l.b16 %v3370
      %v3666 = vunpack.c.l.b16 %v3371
      %v3667 = vunpack.c.l.b16 %v3372
      %v3668 = vunpack.c.l.b16 %v3373
      %v3669 = vunpack.c.l.b16 %v3374
      %v3670 = vunpack.c.l.b16 %v3375
      %v3671 = vpack.c.b16 %v3528, %v3527
      %v3672 = vpack.c.b16 %v3530, %v3529
      %v3673 = vpack.c.b16 %v3532, %v3531
      %v3674 = vpack.c.b16 %v3534, %v3533
      %v3675 = vpack.c.b16 %v3536, %v3535
      %v3676 = vpack.c.b16 %v3538, %v3537
      %v3677 = vpack.c.b16 %v3540, %v3539
      %v3678 = vpack.c.b16 %v3542, %v3541
      %v3679 = vpack.c.b16 %v3544, %v3543
      %v3680 = vpack.c.b16 %v3546, %v3545
      %v3681 = vpack.c.b16 %v3548, %v3547
      %v3682 = vpack.c.b16 %v3550, %v3549
      %v3683 = vpack.c.b16 %v3552, %v3551
      %v3684 = vpack.c.b16 %v3554, %v3553
      %v3685 = vpack.c.b16 %v3556, %v3555
      %v3686 = vpack.c.b16 %v3558, %v3557
      %v3687 = vpack.c.b16 %v3560, %v3559
      %v3688 = vpack.c.b16 %v3562, %v3561
      %v3689 = vpack.c.b16 %v3564, %v3563
      %v3690 = vpack.c.b16 %v3566, %v3565
      %v3691 = vpack.c.b16 %v3568, %v3567
      %v3692 = vpack.c.b16 %v3570, %v3569
      %v3693 = vpack.c.b16 %v3572, %v3571
      %v3694 = vpack.c.b16 %v3574, %v3573
      %v3695 = vpack.c.b16 %v3576, %v3575
      %v3696 = vpack.c.b16 %v3578, %v3577
      %v3697 = vpack.c.b16 %v3580, %v3579
      %v3698 = vpack.c.b16 %v3582, %v3581
      %v3699 = vpack.c.b16 %v3584, %v3583
      %v3700 = vpack.c.b16 %v3586, %v3585
      %v3701 = vpack.c.b16 %v3588, %v3587
      %v3702 = vpack.c.b16 %v3590, %v3589
      %v3703 = vpack.c.b16 %v3592, %v3591
      %v3704 = vpack.c.b16 %v3594, %v3593
      %v3705 = vpack.c.b16 %v3596, %v3595
      %v3706 = vpack.c.b16 %v3598, %v3597
      %v3707 = vpack.c.b16 %v3600, %v3599
      %v3708 = vpack.c.b16 %v3602, %v3601
      %v3709 = vpack.c.b16 %v3604, %v3603
      %v3710 = vpack.c.b16 %v3606, %v3605
      %v3711 = vpack.c.b16 %v3608, %v3607
      %v3712 = vpack.c.b16 %v3610, %v3609
      %v3713 = vpack.c.b16 %v3612, %v3611
      %v3714 = vpack.c.b16 %v3614, %v3613
      %v3715 = vpack.c.b16 %v3616, %v3615
      %v3716 = vpack.c.b16 %v3618, %v3617
      %v3717 = vpack.c.b16 %v3620, %v3619
      %v3718 = vpack.c.b16 %v3622, %v3621
      %v3719 = vpack.c.b16 %v3624, %v3623
      %v3720 = vpack.c.b16 %v3626, %v3625
      %v3721 = vpack.c.b16 %v3628, %v3627
      %v3722 = vpack.c.b16 %v3630, %v3629
      %v3723 = vpack.c.b16 %v3632, %v3631
      %v3724 = vpack.c.b16 %v3634, %v3633
      %v3725 = vpack.c.b16 %v3636, %v3635
      %v3726 = vpack.c.b16 %v3638, %v3637
      %v3727 = vpack.c.b16 %v3640, %v3639
      %v3728 = vpack.c.b16 %v3642, %v3641
      %v3729 = vpack.c.b16 %v3644, %v3643
      %v3730 = vpack.c.b16 %v3646, %v3645
      %v3731 = vpack.c.b16 %v3648, %v3647
      %v3732 = vpack.c.b16 %v3650, %v3649
      %v3733 = vpack.c.b16 %v3652, %v3651
      %v3734 = vpack.c.b16 %v3654, %v3653
      %v3735 = vpack.c.b16 %v3656, %v3655
      %v3736 = vpack.c.b16 %v3658, %v3657
      %v3737 = vpack.c.b16 %v3660, %v3659
      %v3738 = vpack.c.b16 %v3662, %v3661
      %v3739 = vpack.c.b16 %v3664, %v3663
      %v3740 = vpack.c.b16 %v3666, %v3665
      %v3741 = vpack.c.b16 %v3668, %v3667
      %v3742 = vpack.c.b16 %v3670, %v3669
      %3815 = vmatprep.subr.bf16.mxu0 0
      %3816 = vmatpush1.bf16.msra.mxu0 %v3678
      %3817 = vmatprep.subr.bf16.mxu0 0
      %3818 = vmatpush1.bf16.msra.mxu0 %v3677
      %3819 = vmatprep.subr.bf16.mxu0 0
      %3820 = vmatpush1.bf16.msra.mxu0 %v3676
      %3821 = vmatprep.subr.bf16.mxu0 0
      %3822 = vmatpush1.bf16.msra.mxu0 %v3675
      %3823 = vmatprep.subr.bf16.mxu0 0
      %3824 = vmatpush1.bf16.msra.mxu0 %v3674
      %3825 = vmatprep.subr.bf16.mxu0 0
      %3826 = vmatpush1.bf16.msra.mxu0 %v3673
      %3827 = vmatprep.subr.bf16.mxu0 0
      %3828 = vmatpush1.bf16.msra.mxu0 %v3672
      %3829 = vmatprep.subr.bf16.mxu0 0
      %3830 = vmatpush1.bf16.msra.mxu0 %v3671
      %3831 = vmatprep.subr.bf16.mxu0 0
      %3832 = vmatpush2.bf16.msra.mxu0 %v3686
      %3833 = vmatprep.subr.bf16.mxu0 0
      %3834 = vmatpush2.bf16.msra.mxu0 %v3685
      %3835 = vmatprep.subr.bf16.mxu0 0
      %3836 = vmatpush2.bf16.msra.mxu0 %v3684
      %3837 = vmatprep.subr.bf16.mxu0 0
      %3838 = vmatpush2.bf16.msra.mxu0 %v3683
      %3839 = vmatprep.subr.bf16.mxu0 0
      %3840 = vmatpush2.bf16.msra.mxu0 %v3682
      %3841 = vmatprep.subr.bf16.mxu0 0
      %3842 = vmatpush2.bf16.msra.mxu0 %v3681
      %3843 = vmatprep.subr.bf16.mxu0 0
      %3844 = vmatpush2.bf16.msra.mxu0 %v3680
      %3845 = vmatprep.subr.bf16.mxu0 0
      %3846 = vmatpush2.bf16.msra.mxu0 %v3679
      %3847 = vmatprep.mubr.bf16.mxu0 %v3221
      %3848 = vmatmul.mubr.bf16.gmra.mxu0 %v3215
      %v3849 = vpop.f32.mrf.mxu0
      %v3850 = vadd.f32 %v3381, %v3849
      %v3851 = vpop.f32.mrf.mxu0
      %v3852 = vpop.f32.mrf.mxu0
      %v3853 = vpop.f32.mrf.mxu0
      %3854 = vdwg.mxu0
      %3855 = vmatprep.subr.bf16.mxu0 0
      %3856 = vmatpush1.bf16.msra.mxu0 %v3694
      %3857 = vmatprep.subr.bf16.mxu0 0
      %3858 = vmatpush1.bf16.msra.mxu0 %v3693
      %3859 = vmatprep.subr.bf16.mxu0 0
      %3860 = vmatpush1.bf16.msra.mxu0 %v3692
      %3861 = vmatprep.subr.bf16.mxu0 0
      %3862 = vmatpush1.bf16.msra.mxu0 %v3691
      %3863 = vmatprep.subr.bf16.mxu0 0
      %3864 = vmatpush1.bf16.msra.mxu0 %v3690
      %3865 = vmatprep.subr.bf16.mxu0 0
      %3866 = vmatpush1.bf16.msra.mxu0 %v3689
      %3867 = vmatprep.subr.bf16.mxu0 0
      %3868 = vmatpush1.bf16.msra.mxu0 %v3688
      %3869 = vmatprep.subr.bf16.mxu0 0
      %3870 = vmatpush1.bf16.msra.mxu0 %v3687
      %3871 = vmatprep.subr.bf16.mxu0 0
      %3872 = vmatpush2.bf16.msra.mxu0 %v3702
      %3873 = vmatprep.subr.bf16.mxu0 0
      %3874 = vmatpush2.bf16.msra.mxu0 %v3701
      %3875 = vmatprep.subr.bf16.mxu0 0
      %3876 = vmatpush2.bf16.msra.mxu0 %v3700
      %3877 = vmatprep.subr.bf16.mxu0 0
      %3878 = vmatpush2.bf16.msra.mxu0 %v3699
      %3879 = vmatprep.subr.bf16.mxu0 0
      %3880 = vmatpush2.bf16.msra.mxu0 %v3698
      %3881 = vmatprep.subr.bf16.mxu0 0
      %3882 = vmatpush2.bf16.msra.mxu0 %v3697
      %3883 = vmatprep.subr.bf16.mxu0 0
      %3884 = vmatpush2.bf16.msra.mxu0 %v3696
      %3885 = vmatprep.subr.bf16.mxu0 0
      %3886 = vmatpush2.bf16.msra.mxu0 %v3695
      %3887 = vmatprep.mubr.bf16.mxu0 %v3224
      %3888 = vmatmul.mubr.bf16.gmra.mxu0 %v3216
      %v3889 = vpop.f32.mrf.mxu0
      %v3890 = vadd.f32 %v3850, %v3889
      %v3891 = vpop.f32.mrf.mxu0
      %v3892 = vpop.f32.mrf.mxu0
      %v3893 = vpop.f32.mrf.mxu0
      %3894 = vdwg.mxu0
      %3895 = vmatprep.subr.bf16.mxu0 0
      %3896 = vmatpush1.bf16.msra.mxu0 %v3710
      %3897 = vmatprep.subr.bf16.mxu0 0
      %3898 = vmatpush1.bf16.msra.mxu0 %v3709
      %3899 = vmatprep.subr.bf16.mxu0 0
      %3900 = vmatpush1.bf16.msra.mxu0 %v3708
      %3901 = vmatprep.subr.bf16.mxu0 0
      %3902 = vmatpush1.bf16.msra.mxu0 %v3707
      %3903 = vmatprep.subr.bf16.mxu0 0
      %3904 = vmatpush1.bf16.msra.mxu0 %v3706
      %3905 = vmatprep.subr.bf16.mxu0 0
      %3906 = vmatpush1.bf16.msra.mxu0 %v3705
      %3907 = vmatprep.subr.bf16.mxu0 0
      %3908 = vmatpush1.bf16.msra.mxu0 %v3704
      %3909 = vmatprep.subr.bf16.mxu0 0
      %3910 = vmatpush1.bf16.msra.mxu0 %v3703
      %3911 = vmatprep.subr.bf16.mxu0 0
      %3912 = vmatpush2.bf16.msra.mxu0 %v3718
      %3913 = vmatprep.subr.bf16.mxu0 0
      %3914 = vmatpush2.bf16.msra.mxu0 %v3717
      %3915 = vmatprep.subr.bf16.mxu0 0
      %3916 = vmatpush2.bf16.msra.mxu0 %v3716
      %3917 = vmatprep.subr.bf16.mxu0 0
      %3918 = vmatpush2.bf16.msra.mxu0 %v3715
      %3919 = vmatprep.subr.bf16.mxu0 0
      %3920 = vmatpush2.bf16.msra.mxu0 %v3714
      %3921 = vmatprep.subr.bf16.mxu0 0
      %3922 = vmatpush2.bf16.msra.mxu0 %v3713
      %3923 = vmatprep.subr.bf16.mxu0 0
      %3924 = vmatpush2.bf16.msra.mxu0 %v3712
      %3925 = vmatprep.subr.bf16.mxu0 0
      %3926 = vmatpush2.bf16.msra.mxu0 %v3711
      %3927 = vmatprep.mubr.bf16.mxu0 %v3227
      %3928 = vmatmul.mubr.bf16.gmra.mxu0 %v3217
      %v3929 = vpop.f32.mrf.mxu0
      %v3930 = vadd.f32 %v3890, %v3929
      %v3931 = vpop.f32.mrf.mxu0
      %v3932 = vpop.f32.mrf.mxu0
      %v3933 = vpop.f32.mrf.mxu0
      %3934 = vdwg.mxu0
      %3935 = vmatprep.subr.bf16.mxu0 0
      %3936 = vmatpush1.bf16.msra.mxu0 %v3726
      %3937 = vmatprep.subr.bf16.mxu0 0
      %3938 = vmatpush1.bf16.msra.mxu0 %v3725
      %3939 = vmatprep.subr.bf16.mxu0 0
      %3940 = vmatpush1.bf16.msra.mxu0 %v3724
      %3941 = vmatprep.subr.bf16.mxu0 0
      %3942 = vmatpush1.bf16.msra.mxu0 %v3723
      %3943 = vmatprep.subr.bf16.mxu0 0
      %3944 = vmatpush1.bf16.msra.mxu0 %v3722
      %3945 = vmatprep.subr.bf16.mxu0 0
      %3946 = vmatpush1.bf16.msra.mxu0 %v3721
      %3947 = vmatprep.subr.bf16.mxu0 0
      %3948 = vmatpush1.bf16.msra.mxu0 %v3720
      %3949 = vmatprep.subr.bf16.mxu0 0
      %3950 = vmatpush1.bf16.msra.mxu0 %v3719
      %3951 = vmatprep.subr.bf16.mxu0 0
      %3952 = vmatpush2.bf16.msra.mxu0 %v3734
      %3953 = vmatprep.subr.bf16.mxu0 0
      %3954 = vmatpush2.bf16.msra.mxu0 %v3733
      %3955 = vmatprep.subr.bf16.mxu0 0
      %3956 = vmatpush2.bf16.msra.mxu0 %v3732
      %3957 = vmatprep.subr.bf16.mxu0 0
      %3958 = vmatpush2.bf16.msra.mxu0 %v3731
      %3959 = vmatprep.subr.bf16.mxu0 0
      %3960 = vmatpush2.bf16.msra.mxu0 %v3730
      %3961 = vmatprep.subr.bf16.mxu0 0
      %3962 = vmatpush2.bf16.msra.mxu0 %v3729
      %3963 = vmatprep.subr.bf16.mxu0 0
      %3964 = vmatpush2.bf16.msra.mxu0 %v3728
      %3965 = vmatprep.subr.bf16.mxu0 0
      %3966 = vmatpush2.bf16.msra.mxu0 %v3727
      %3967 = vmatprep.mubr.bf16.mxu0 %v3230
      %3968 = vmatmul.mubr.bf16.gmra.mxu0 %v3218
      %v3969 = vpop.f32.mrf.mxu0
      %v3970 = vadd.f32 %v3930, %v3969
      %v3971 = vpop.f32.mrf.mxu0
      %v3972 = vpop.f32.mrf.mxu0
      %v3973 = vpop.f32.mrf.mxu0
      %3974 = vdwg.mxu0
      %3975 = vmatprep.subr.bf16.mxu0 0
      %3976 = vmatpush1.bf16.msra.mxu0 %v3742
      %3977 = vmatprep.subr.bf16.mxu0 0
      %3978 = vmatpush1.bf16.msra.mxu0 %v3741
      %3979 = vmatprep.subr.bf16.mxu0 0
      %3980 = vmatpush1.bf16.msra.mxu0 %v3740
      %3981 = vmatprep.subr.bf16.mxu0 0
      %3982 = vmatpush1.bf16.msra.mxu0 %v3739
      %3983 = vmatprep.subr.bf16.mxu0 0
      %3984 = vmatpush1.bf16.msra.mxu0 %v3738
      %3985 = vmatprep.subr.bf16.mxu0 0
      %3986 = vmatpush1.bf16.msra.mxu0 %v3737
      %3987 = vmatprep.subr.bf16.mxu0 0
      %3988 = vmatpush1.bf16.msra.mxu0 %v3736
      %3989 = vmatprep.subr.bf16.mxu0 0
      %3990 = vmatpush1.bf16.msra.mxu0 %v3735
      %3991 = vmatprep.subr.bf16.mxu0 0
      %3992 = vmatpush2.bf16.msra.mxu0 0
      %3993 = vmatprep.subr.bf16.mxu0 0
      %3994 = vmatpush2.bf16.msra.mxu0 0
      %3995 = vmatprep.subr.bf16.mxu0 0
      %3996 = vmatpush2.bf16.msra.mxu0 0
      %3997 = vmatprep.subr.bf16.mxu0 0
      %3998 = vmatpush2.bf16.msra.mxu0 0
      %3999 = vmatprep.subr.bf16.mxu0 0
      %4000 = vmatpush2.bf16.msra.mxu0 0
      %4001 = vmatprep.subr.bf16.mxu0 0
      %4002 = vmatpush2.bf16.msra.mxu0 0
      %4003 = vmatprep.subr.bf16.mxu0 0
      %4004 = vmatpush2.bf16.msra.mxu0 0
      %4005 = vmatprep.subr.bf16.mxu0 0
      %4006 = vmatpush2.bf16.msra.mxu0 0
      %4007 = vmatprep.mubr.bf16.mxu0 0
      %4008 = vmatmul.mubr.bf16.gmra.mxu0 %v3219
      %v4009 = vpop.f32.mrf.mxu0
      %v4010 = vadd.f32 %v3970, %v4009
      %v4011 = vpop.f32.mrf.mxu0
      %v4012 = vpop.f32.mrf.mxu0
      %v4013 = vpop.f32.mrf.mxu0
      %4014 = vdwg.mxu0
      %v4015 = vmax.f32 %v4010, 0.0
      %4016 = vst [vmem:[%s278] sm:$0xff] %v4015
      %p4017 = scmp.lt.s32.totalorder %s18, 1
      %s4018 = scalar_select %p4017, %s18, 1
      %s4019 = smul.addr %s4018, 8
      %s4020 = scalar_lea.vmem %s7, %s4019
      // Predicated region
      $region49: #{forward.2} parent=47 // pred_check
        %p4021 = pneg %p188
      $region50: #{forward.2} parent=47 // pred_check_branch
        %4023 = sbr.rel (%p4021) target = $region52
      $region51: #{forward.2} parent=47 // pred_region
        _
      $region52: #{forward.2} parent=47 // pred_fallthru
        _
    $region48: #{forward.2} parent=5 // pred_fallthru
      _
    %p4024 = scmp.le.s32.totalorder 2, %s13
    // Predicated region
    $region53: #{forward.2} parent=5 // pred_check
      %p4025 = pneg %p4024
    $region54: #{forward.2} parent=5 // pred_check_branch
      %4027 = sbr.rel (%p4025) target = $region56
    $region55: #{forward.2} parent=5 // pred_region
      %s4028 = ssub.s32 %s13, 2
      // Predicated region
      $region57: #{forward.2} parent=55 // pred_check
        %p4029 = pneg %p194
      $region58: #{forward.2} parent=55 // pred_check_branch
        %4031 = sbr.rel (%p4029) target = $region60
      $region59: #{forward.2} parent=55 // pred_region
        %p4032 = scmp.lt.s32.totalorder %s19, 1
        %s4033 = scalar_select %p4032, %s19, 1
        %s4034 = smul.addr %s4033, 8
        %s4035 = scalar_lea.vmem %s7, %s4034
      $region60: #{forward.2} parent=55 // pred_fallthru
        _
    $region56: #{forward.2} parent=5 // pred_fallthru
      _
  $region6: #{forward.2} parent=0 // loop_footer
    %s17 = sadd.s32 1, %s13
  $region7: #{forward.2} parent=0 // loop_footer_branch
    %12 = sbr.rel target = $region3
  $region8: #{forward.2} parent=0 // loop_exit
    _

</llo_original>
